<compile_context>
chip_gen: v6e
topology: v6e:2x2x1
jax: 0.10.0
libtpu: 0.0.40
codegen_flags: <defaults>
</compile_context>

<pallas_src>
import numpy as np
import jax
import jax.numpy as jnp
from jax.experimental import pallas as pl
from jax.experimental.pallas import tpu as pltpu


# ------------------------------ static dims ----------------------------------
def _round_up(x, m):
    return (x + m - 1) // m * m


SCAN_LEN = 360                              # implied by state_num=216 in the PyTorch module
L1 = (SCAN_LEN - 5) // 2 + 1                # 178
L2 = (L1 - 5) // 2 + 1                      # 87
L3 = (L2 - 5) // 2 + 1                      # 42
SCAN_FEAT = 5 * L3                          # 210  (channel-major flatten, matches nn.Flatten)

PHASE_LEN = SCAN_LEN // 2                   # 180 (even / odd stride-2 phases of the scan)
PHASE_PAD = _round_up(PHASE_LEN, 128)       # 256
N1_PAD = _round_up(5 * L1, 128)             # 896
N2_PAD = _round_up(5 * L2, 128)             # 448
FC_IN = _round_up(SCAN_FEAT + 6, 128)       # 256 (holds scan features + normal + action)
H1, H2, H3 = 256, 256, 128


# ----------------------------- Pallas kernel ---------------------------------
def _critic_kernel(cs_ref,                  # SMEM scalars: conv1 w (25), conv1 b (5), fc4 b (1)
                   scan_ref, tail_ref,
                   m2_ref, b2_ref, m3_ref, b3_ref,
                   w1_ref, bf1_ref, w2_ref, bf2_ref, w3_ref, bf3_ref,
                   w4_ref, out_ref):
    f32, bf16 = jnp.float32, jnp.bfloat16

    def mm(x_bf16, w_ref):
        # bf16 x bf16 MXU matmul with f32 accumulation.
        return jnp.dot(x_bf16, w_ref[...], preferred_element_type=f32)

    # ---- conv1 (in=1, out=5, k=5, stride=2): real 5-tap conv as VPU FMAs -------------
    # scan_ref holds the even phase at lanes [0:180] and the odd phase at [256:436].
    # Tap k of output position t reads phase (k % 2) at position t + k//2.
    sph = scan_ref[...].astype(f32)                                   # (bb, 512)
    taps = []
    for k in range(5):
        base = (k % 2) * PHASE_PAD + (k // 2)
        taps.append(sph[:, base:base + L1])                           # (bb, 178)
    chans = []
    for co in range(5):
        acc = cs_ref[25 + co] + cs_ref[co * 5 + 0] * taps[0]
        for k in range(1, 5):
            acc = acc + cs_ref[co * 5 + k] * taps[k]
        chans.append(jnp.maximum(acc, 0.0))                           # ReLU, (bb, 178)
    bb = sph.shape[0]
    x1 = jnp.concatenate(chans + [jnp.zeros((bb, N1_PAD - 5 * L1), f32)], axis=1)
    x1 = x1.astype(bf16)                                              # (bb, 896) channel-major

    # ---- conv2, conv3 as padded Toeplitz matmuls (MXU) -------------------------------
    h = jnp.maximum(mm(x1, m2_ref) + b2_ref[...], 0.0).astype(bf16)   # (bb, 448)
    h = jnp.maximum(mm(h, m3_ref) + b3_ref[...], 0.0)                 # (bb, 256); lanes >=210 are 0

    # ---- cat([scan_out, normal, action], 1): normal/action live in lanes [210:216] ---
    z = (h + tail_ref[...]).astype(bf16)                              # exact concat (disjoint lanes)

    # ---- net2: Linear+ReLU x3 ---------------------------------------------------------
    z = jnp.maximum(mm(z, w1_ref) + bf1_ref[...], 0.0).astype(bf16)   # (bb, 256)
    z = jnp.maximum(mm(z, w2_ref) + bf2_ref[...], 0.0).astype(bf16)   # (bb, 256)
    z = jnp.maximum(mm(z, w3_ref) + bf3_ref[...], 0.0)                # (bb, 128) f32

    # ---- final Linear(128 -> 1): VPU multiply + lane reduction, narrow writeback ------
    q = jnp.sum(z * w4_ref[...], axis=1, keepdims=True) + cs_ref[30]  # (bb, 1)
    out_ref[...] = q


# ------------------------- one-time weight preprocessing ----------------------
def _toeplitz(w, b, l_in, stride):
    """Valid-padding strided Conv1d as a (C_in*L_in, C_out*L_out) dense matmul.
    Output flatten is channel-major: index = c_out*L_out + t (matches nn.Flatten)."""
    c_out, c_in, k = w.shape
    l_out = (l_in - k) // stride + 1
    m = np.zeros((c_in * l_in, c_out * l_out), dtype=np.float32)
    t = np.arange(l_out)
    for co in range(c_out):
        for ci in range(c_in):
            for kk in range(k):
                m[ci * l_in + stride * t + kk, co * l_out + t] = w[co, ci, kk]
    bias = np.repeat(np.asarray(b, np.float32), l_out)
    return m, bias, l_out


def _pad2(x, rows, cols):
    return np.pad(x, ((0, rows - x.shape[0]), (0, cols - x.shape[1])))


def prepare_params(params, weight_dtype=jnp.bfloat16):
    """One-time preprocessing.  Call OUTSIDE jit, cache the result, reuse every step."""
    c1w = np.asarray(params["c1_w"], np.float32)
    c1b = np.asarray(params["c1_b"], np.float32)
    c2w = np.asarray(params["c2_w"], np.float32); c2b = np.asarray(params["c2_b"], np.float32)
    c3w = np.asarray(params["c3_w"], np.float32); c3b = np.asarray(params["c3_b"], np.float32)

    m2, b2, l2 = _toeplitz(c2w, c2b, L1, 2)
    m3, b3, l3 = _toeplitz(c3w, c3b, L2, 2)
    assert (l2, l3) == (L2, L3)

    m2p = _pad2(m2, N1_PAD, N2_PAD)                           # (896, 448)
    m3p = _pad2(m3, N2_PAD, FC_IN)                            # (448, 256)
    b2p = np.pad(b2, (0, N2_PAD - b2.shape[0])).reshape(1, -1)
    b3p = np.pad(b3, (0, FC_IN - b3.shape[0])).reshape(1, -1)

    # The disjoint-lane concat (h + tail) in the kernel requires these pads to be exactly 0.
    assert np.all(m3p[:, SCAN_FEAT:] == 0.0) and np.all(b3p[:, SCAN_FEAT:] == 0.0)

    w1 = np.asarray(params["f1_w"], np.float32).T             # (216, 256); rows = [scan|normal|action]
    w2 = np.asarray(params["f2_w"], np.float32).T             # (256, 256)
    w3 = np.asarray(params["f3_w"], np.float32).T             # (256, 128)
    w1p = _pad2(w1, FC_IN, H1)                                # (256, 256)
    bf1 = np.asarray(params["f1_b"], np.float32).reshape(1, -1)
    bf2 = np.asarray(params["f2_b"], np.float32).reshape(1, -1)
    bf3 = np.asarray(params["f3_b"], np.float32).reshape(1, -1)
    w4row = np.asarray(params["f4_w"], np.float32).reshape(1, H3)   # (1, 128)

    # conv1 weights/bias + fc4 bias packed into one SMEM scalar table (31 floats).
    conv_scalars = np.concatenate([
        c1w.reshape(-1),                                      # [co*5 + k]
        c1b.reshape(-1),                                      # [25 + co]
        np.asarray(params["f4_b"], np.float32).reshape(-1),   # [30]
    ]).astype(np.float32)

    wd = weight_dtype
    return {
        "conv_scalars": jnp.asarray(conv_scalars, jnp.float32),
        "m2": jnp.asarray(m2p, wd), "b2": jnp.asarray(b2p, jnp.float32),
        "m3": jnp.asarray(m3p, wd), "b3": jnp.asarray(b3p, jnp.float32),
        "w1": jnp.asarray(w1p, wd), "bf1": jnp.asarray(bf1, jnp.float32),
        "w2": jnp.asarray(w2, wd),  "bf2": jnp.asarray(bf2, jnp.float32),
        "w3": jnp.asarray(w3, wd),  "bf3": jnp.asarray(bf3, jnp.float32),
        "w4": jnp.asarray(w4row, jnp.float32),
    }


# -------------------------------- forward ------------------------------------
def critic_forward(prepared, normal_state, scan_state, action, block_b=256):
    """Pallas forward; xa == ((normal_state, scan_state), action) in the PyTorch module.
    `prepared` is the cached output of prepare_params().  block_b=256 fills the 256-wide
    MXU on v6e/v7x; use 128 on v5e."""
    b = scan_state.shape[0]
    scan2d = scan_state.reshape(b, -1).astype(jnp.float32)
    assert scan2d.shape[1] == SCAN_LEN
    na = jnp.concatenate([normal_state, action], axis=1).astype(jnp.float32)
    assert SCAN_FEAT + na.shape[1] == 216, "cat width must equal state_num=216"

    # Adaptive batch tiling: minimize dead rows, keep rows a multiple of 16 (bf16 packing).
    n_steps = max(1, -(-b // block_b))
    bb = _round_up(-(-b // n_steps), 16)
    pb = bb * n_steps

    # Even / odd stride-2 phases of the scan (lets the kernel do conv1 as 5 tap FMAs).
    s_even = jnp.pad(scan2d[:, 0::2], ((0, pb - b), (0, PHASE_PAD - PHASE_LEN)))
    s_odd = jnp.pad(scan2d[:, 1::2], ((0, pb - b), (0, PHASE_PAD - PHASE_LEN)))
    scan_ph = jnp.concatenate([s_even, s_odd], axis=1).astype(jnp.bfloat16)      # (pb, 512)
    # normal+action placed in lanes [SCAN_FEAT : SCAN_FEAT+6] of a 256-wide zero slab.
    tail = jnp.pad(na, ((0, pb - b), (SCAN_FEAT, FC_IN - SCAN_FEAT - na.shape[1])))
    tail = tail.astype(jnp.bfloat16)                                             # (pb, 256)

    weights = (prepared["m2"], prepared["b2"], prepared["m3"], prepared["b3"],
               prepared["w1"], prepared["bf1"], prepared["w2"], prepared["bf2"],
               prepared["w3"], prepared["bf3"], prepared["w4"])

    row_spec = lambda shape: pl.BlockSpec(shape, lambda i, *_: (i, 0))
    cst_spec = lambda shape: pl.BlockSpec(shape, lambda i, *_: (0, 0))

    in_specs = ([row_spec((bb, 2 * PHASE_PAD)), row_spec((bb, FC_IN))]
                + [cst_spec(w.shape) for w in weights])

    out = pl.pallas_call(
        _critic_kernel,
        out_shape=jax.ShapeDtypeStruct((pb, 1), jnp.float32),
        grid_spec=pltpu.PrefetchScalarGridSpec(
            num_scalar_prefetch=1,
            grid=(pb // bb,),
            in_specs=in_specs,
            out_specs=row_spec((bb, 1)),
        ),
        compiler_params=pltpu.CompilerParams(
            dimension_semantics=("parallel",),
            vmem_limit_bytes=32 << 20),
    )(prepared["conv_scalars"], scan_ph, tail, *weights)

    return out[:b]


# ------------------------------ param init -----------------------------------
def init_params(key, hidden1=256, hidden2=256, hidden3=128):
    """Deterministic params with the same shapes as the PyTorch module (uniform +-1/sqrt(fan_in))."""
    keys = jax.random.split(key, 14)

    def u(k, shape, fan_in):
        bound = 1.0 / np.sqrt(fan_in)
        return jax.random.uniform(k, shape, jnp.float32, -bound, bound)

    state_num = 216  # hard-coded in the PyTorch module
    p = {}
    p["c1_w"] = u(keys[0], (5, 1, 5), 1 * 5);  p["c1_b"] = u(keys[1], (5,), 1 * 5)
    p["c2_w"] = u(keys[2], (5, 5, 5), 5 * 5);  p["c2_b"] = u(keys[3], (5,), 5 * 5)
    p["c3_w"] = u(keys[4], (5, 5, 5), 5 * 5);  p["c3_b"] = u(keys[5], (5,), 5 * 5)
    p["f1_w"] = u(keys[6], (hidden1, state_num), state_num); p["f1_b"] = u(keys[7], (hidden1,), state_num)
    p["f2_w"] = u(keys[8], (hidden2, hidden1), hidden1);     p["f2_b"] = u(keys[9], (hidden2,), hidden1)
    p["f3_w"] = u(keys[10], (hidden3, hidden2), hidden2);    p["f3_b"] = u(keys[11], (hidden3,), hidden2)
    p["f4_w"] = u(keys[12], (1, hidden3), hidden3);          p["f4_b"] = u(keys[13], (1,), hidden3)
    return p


# ----------------------------- pure-JAX reference ----------------------------
def critic_forward_ref(params, normal_state, scan_state, action):
    x = scan_state.astype(jnp.float32)

    def conv(x, w, b):
        y = jax.lax.conv_general_dilated(
            x, w, window_strides=(2,), padding="VALID",
            dimension_numbers=("NCH", "OIH", "NCH"))
        return y + b.reshape(1, -1, 1)

    x = jax.nn.relu(conv(x, params["c1_w"], params["c1_b"]))
    x = jax.nn.relu(conv(x, params["c2_w"], params["c2_b"]))
    x = conv(x, params["c3_w"], params["c3_b"])
    x = jax.nn.relu(x.reshape(x.shape[0], -1))
    z = jnp.concatenate([x, normal_state.astype(jnp.float32), action.astype(jnp.float32)], axis=1)
    z = jax.nn.relu(z @ params["f1_w"].T + params["f1_b"])
    z = jax.nn.relu(z @ params["f2_w"].T + params["f2_b"])
    z = jax.nn.relu(z @ params["f3_w"].T + params["f3_b"])
    return z @ params["f4_w"].T + params["f4_b"]


# ---------------------------------- main --------------------------------------
if __name__ == "__main__":
    key = jax.random.PRNGKey(0)
    k_p, k_n, k_s, k_a = jax.random.split(key, 4)

    B = 2
    NORMAL_DIM = 4
    ACTION_DIM = 2

    params = init_params(k_p)
    prepared = prepare_params(params)          # one-time preprocessing, reused every call

    normal_state = jax.random.normal(k_n, (B, NORMAL_DIM), jnp.float32)
    scan_state = jax.random.normal(k_s, (B, 1, SCAN_LEN), jnp.float32)
    action = jax.random.uniform(k_a, (B, ACTION_DIM), jnp.float32, -1.0, 1.0)

    fwd = jax.jit(critic_forward)
    out = jax.block_until_ready(fwd(prepared, normal_state, scan_state, action))

    ref = jax.block_until_ready(critic_forward_ref(params, normal_state, scan_state, action))
    # bf16 weights / bf16 activations (f32 accumulation) -> loosened tolerance vs f32 ref.
    np.testing.assert_allclose(np.asarray(out), np.asarray(ref), rtol=5e-2, atol=5e-2)
    assert out.shape == (B, 1)

    print("KERNEL_OK")
</pallas_src>

<mosaic_0001>
module attributes {stable_mosaic.version = 11 : i64} {
  func.func @_critic_kernel(%arg0: i32, %arg1: memref<31xf32, #tpu.memory_space<smem>>, %arg2: memref<16x512xbf16, #tpu.memory_space<vmem>>, %arg3: memref<16x256xbf16, #tpu.memory_space<vmem>>, %arg4: memref<896x512xbf16, #tpu.memory_space<vmem>>, %arg5: memref<1x512xf32, #tpu.memory_space<vmem>>, %arg6: memref<512x256xbf16, #tpu.memory_space<vmem>>, %arg7: memref<1x256xf32, #tpu.memory_space<vmem>>, %arg8: memref<256x256xbf16, #tpu.memory_space<vmem>>, %arg9: memref<1x256xf32, #tpu.memory_space<vmem>>, %arg10: memref<256x256xbf16, #tpu.memory_space<vmem>>, %arg11: memref<1x256xf32, #tpu.memory_space<vmem>>, %arg12: memref<256x128xbf16, #tpu.memory_space<vmem>>, %arg13: memref<1x128xf32, #tpu.memory_space<vmem>>, %arg14: memref<1x128xf32, #tpu.memory_space<vmem>>, %arg15: memref<16x1xf32, #tpu.memory_space<vmem>>) attributes {dimension_semantics = [#tpu.dimension_semantics<parallel>], iteration_bounds = array<i64: 1>, scalar_prefetch = 1 : i64, scratch_operands = 0 : i64, tpu.core_type = #tpu.core_type<tc>, window_params = [{transform_indices = @transform_0, window_bounds = array<i64: 16, 512>}, {transform_indices = @transform_1, window_bounds = array<i64: 16, 256>}, {pipeline_mode = #tpu.pipeline_mode<synchronous>, transform_indices = @transform_2, window_bounds = array<i64: 896, 512>}, {pipeline_mode = #tpu.pipeline_mode<synchronous>, transform_indices = @transform_3, window_bounds = array<i64: 1, 512>}, {pipeline_mode = #tpu.pipeline_mode<synchronous>, transform_indices = @transform_4, window_bounds = array<i64: 512, 256>}, {pipeline_mode = #tpu.pipeline_mode<synchronous>, transform_indices = @transform_5, window_bounds = array<i64: 1, 256>}, {pipeline_mode = #tpu.pipeline_mode<synchronous>, transform_indices = @transform_6, window_bounds = array<i64: 256, 256>}, {pipeline_mode = #tpu.pipeline_mode<synchronous>, transform_indices = @transform_7, window_bounds = array<i64: 1, 256>}, {pipeline_mode = #tpu.pipeline_mode<synchronous>, transform_indices = @transform_8, window_bounds = array<i64: 256, 256>}, {pipeline_mode = #tpu.pipeline_mode<synchronous>, transform_indices = @transform_9, window_bounds = array<i64: 1, 256>}, {pipeline_mode = #tpu.pipeline_mode<synchronous>, transform_indices = @transform_10, window_bounds = array<i64: 256, 128>}, {pipeline_mode = #tpu.pipeline_mode<synchronous>, transform_indices = @transform_11, window_bounds = array<i64: 1, 128>}, {pipeline_mode = #tpu.pipeline_mode<synchronous>, transform_indices = @transform_12, window_bounds = array<i64: 1, 128>}, {transform_indices = @transform_13, window_bounds = array<i64: 16, 1>}]} {
    %c0 = arith.constant 0 : index
    %c0_0 = arith.constant 0 : index
    %0 = vector.load %arg2[%c0, %c0_0] : memref<16x512xbf16, #tpu.memory_space<vmem>>, vector<16x512xbf16>
    %1 = arith.extf %0 : vector<16x512xbf16> to vector<16x512xf32>
    %2 = vector.extract_strided_slice %1 {offsets = [0, 0], sizes = [16, 178], strides = [1, 1]} : vector<16x512xf32> to vector<16x178xf32>
    %3 = vector.extract_strided_slice %1 {offsets = [0, 256], sizes = [16, 178], strides = [1, 1]} : vector<16x512xf32> to vector<16x178xf32>
    %4 = vector.extract_strided_slice %1 {offsets = [0, 1], sizes = [16, 178], strides = [1, 1]} : vector<16x512xf32> to vector<16x178xf32>
    %5 = vector.extract_strided_slice %1 {offsets = [0, 257], sizes = [16, 178], strides = [1, 1]} : vector<16x512xf32> to vector<16x178xf32>
    %6 = vector.extract_strided_slice %1 {offsets = [0, 2], sizes = [16, 178], strides = [1, 1]} : vector<16x512xf32> to vector<16x178xf32>
    %c25 = arith.constant 25 : index
    %7 = memref.load %arg1[%c25] : memref<31xf32, #tpu.memory_space<smem>>
    %c0_1 = arith.constant 0 : index
    %8 = memref.load %arg1[%c0_1] : memref<31xf32, #tpu.memory_space<smem>>
    %9 = vector.broadcast %8 : f32 to vector<16x178xf32>
    %10 = arith.mulf %9, %2 : vector<16x178xf32>
    %11 = vector.broadcast %7 : f32 to vector<16x178xf32>
    %12 = arith.addf %11, %10 : vector<16x178xf32>
    %c1 = arith.constant 1 : index
    %13 = memref.load %arg1[%c1] : memref<31xf32, #tpu.memory_space<smem>>
    %14 = vector.broadcast %13 : f32 to vector<16x178xf32>
    %15 = arith.mulf %14, %3 : vector<16x178xf32>
    %16 = arith.addf %12, %15 : vector<16x178xf32>
    %c2 = arith.constant 2 : index
    %17 = memref.load %arg1[%c2] : memref<31xf32, #tpu.memory_space<smem>>
    %18 = vector.broadcast %17 : f32 to vector<16x178xf32>
    %19 = arith.mulf %18, %4 : vector<16x178xf32>
    %20 = arith.addf %16, %19 : vector<16x178xf32>
    %c3 = arith.constant 3 : index
    %21 = memref.load %arg1[%c3] : memref<31xf32, #tpu.memory_space<smem>>
    %22 = vector.broadcast %21 : f32 to vector<16x178xf32>
    %23 = arith.mulf %22, %5 : vector<16x178xf32>
    %24 = arith.addf %20, %23 : vector<16x178xf32>
    %c4 = arith.constant 4 : index
    %25 = memref.load %arg1[%c4] : memref<31xf32, #tpu.memory_space<smem>>
    %26 = vector.broadcast %25 : f32 to vector<16x178xf32>
    %27 = arith.mulf %26, %6 : vector<16x178xf32>
    %28 = arith.addf %24, %27 : vector<16x178xf32>
    %cst = arith.constant 0.000000e+00 : f32
    %29 = vector.broadcast %cst : f32 to vector<16x178xf32>
    %30 = arith.maximumf %28, %29 : vector<16x178xf32>
    %c26 = arith.constant 26 : index
    %31 = memref.load %arg1[%c26] : memref<31xf32, #tpu.memory_space<smem>>
    %c5 = arith.constant 5 : index
    %32 = memref.load %arg1[%c5] : memref<31xf32, #tpu.memory_space<smem>>
    %33 = vector.broadcast %32 : f32 to vector<16x178xf32>
    %34 = arith.mulf %33, %2 : vector<16x178xf32>
    %35 = vector.broadcast %31 : f32 to vector<16x178xf32>
    %36 = arith.addf %35, %34 : vector<16x178xf32>
    %c6 = arith.constant 6 : index
    %37 = memref.load %arg1[%c6] : memref<31xf32, #tpu.memory_space<smem>>
    %38 = vector.broadcast %37 : f32 to vector<16x178xf32>
    %39 = arith.mulf %38, %3 : vector<16x178xf32>
    %40 = arith.addf %36, %39 : vector<16x178xf32>
    %c7 = arith.constant 7 : index
    %41 = memref.load %arg1[%c7] : memref<31xf32, #tpu.memory_space<smem>>
    %42 = vector.broadcast %41 : f32 to vector<16x178xf32>
    %43 = arith.mulf %42, %4 : vector<16x178xf32>
    %44 = arith.addf %40, %43 : vector<16x178xf32>
    %c8 = arith.constant 8 : index
    %45 = memref.load %arg1[%c8] : memref<31xf32, #tpu.memory_space<smem>>
    %46 = vector.broadcast %45 : f32 to vector<16x178xf32>
    %47 = arith.mulf %46, %5 : vector<16x178xf32>
    %48 = arith.addf %44, %47 : vector<16x178xf32>
    %c9 = arith.constant 9 : index
    %49 = memref.load %arg1[%c9] : memref<31xf32, #tpu.memory_space<smem>>
    %50 = vector.broadcast %49 : f32 to vector<16x178xf32>
    %51 = arith.mulf %50, %6 : vector<16x178xf32>
    %52 = arith.addf %48, %51 : vector<16x178xf32>
    %cst_2 = arith.constant 0.000000e+00 : f32
    %53 = vector.broadcast %cst_2 : f32 to vector<16x178xf32>
    %54 = arith.maximumf %52, %53 : vector<16x178xf32>
    %c27 = arith.constant 27 : index
    %55 = memref.load %arg1[%c27] : memref<31xf32, #tpu.memory_space<smem>>
    %c10 = arith.constant 10 : index
    %56 = memref.load %arg1[%c10] : memref<31xf32, #tpu.memory_space<smem>>
    %57 = vector.broadcast %56 : f32 to vector<16x178xf32>
    %58 = arith.mulf %57, %2 : vector<16x178xf32>
    %59 = vector.broadcast %55 : f32 to vector<16x178xf32>
    %60 = arith.addf %59, %58 : vector<16x178xf32>
    %c11 = arith.constant 11 : index
    %61 = memref.load %arg1[%c11] : memref<31xf32, #tpu.memory_space<smem>>
    %62 = vector.broadcast %61 : f32 to vector<16x178xf32>
    %63 = arith.mulf %62, %3 : vector<16x178xf32>
    %64 = arith.addf %60, %63 : vector<16x178xf32>
    %c12 = arith.constant 12 : index
    %65 = memref.load %arg1[%c12] : memref<31xf32, #tpu.memory_space<smem>>
    %66 = vector.broadcast %65 : f32 to vector<16x178xf32>
    %67 = arith.mulf %66, %4 : vector<16x178xf32>
    %68 = arith.addf %64, %67 : vector<16x178xf32>
    %c13 = arith.constant 13 : index
    %69 = memref.load %arg1[%c13] : memref<31xf32, #tpu.memory_space<smem>>
    %70 = vector.broadcast %69 : f32 to vector<16x178xf32>
    %71 = arith.mulf %70, %5 : vector<16x178xf32>
    %72 = arith.addf %68, %71 : vector<16x178xf32>
    %c14 = arith.constant 14 : index
    %73 = memref.load %arg1[%c14] : memref<31xf32, #tpu.memory_space<smem>>
    %74 = vector.broadcast %73 : f32 to vector<16x178xf32>
    %75 = arith.mulf %74, %6 : vector<16x178xf32>
    %76 = arith.addf %72, %75 : vector<16x178xf32>
    %cst_3 = arith.constant 0.000000e+00 : f32
    %77 = vector.broadcast %cst_3 : f32 to vector<16x178xf32>
    %78 = arith.maximumf %76, %77 : vector<16x178xf32>
    %c28 = arith.constant 28 : index
    %79 = memref.load %arg1[%c28] : memref<31xf32, #tpu.memory_space<smem>>
    %c15 = arith.constant 15 : index
    %80 = memref.load %arg1[%c15] : memref<31xf32, #tpu.memory_space<smem>>
    %81 = vector.broadcast %80 : f32 to vector<16x178xf32>
    %82 = arith.mulf %81, %2 : vector<16x178xf32>
    %83 = vector.broadcast %79 : f32 to vector<16x178xf32>
    %84 = arith.addf %83, %82 : vector<16x178xf32>
    %c16 = arith.constant 16 : index
    %85 = memref.load %arg1[%c16] : memref<31xf32, #tpu.memory_space<smem>>
    %86 = vector.broadcast %85 : f32 to vector<16x178xf32>
    %87 = arith.mulf %86, %3 : vector<16x178xf32>
    %88 = arith.addf %84, %87 : vector<16x178xf32>
    %c17 = arith.constant 17 : index
    %89 = memref.load %arg1[%c17] : memref<31xf32, #tpu.memory_space<smem>>
    %90 = vector.broadcast %89 : f32 to vector<16x178xf32>
    %91 = arith.mulf %90, %4 : vector<16x178xf32>
    %92 = arith.addf %88, %91 : vector<16x178xf32>
    %c18 = arith.constant 18 : index
    %93 = memref.load %arg1[%c18] : memref<31xf32, #tpu.memory_space<smem>>
    %94 = vector.broadcast %93 : f32 to vector<16x178xf32>
    %95 = arith.mulf %94, %5 : vector<16x178xf32>
    %96 = arith.addf %92, %95 : vector<16x178xf32>
    %c19 = arith.constant 19 : index
    %97 = memref.load %arg1[%c19] : memref<31xf32, #tpu.memory_space<smem>>
    %98 = vector.broadcast %97 : f32 to vector<16x178xf32>
    %99 = arith.mulf %98, %6 : vector<16x178xf32>
    %100 = arith.addf %96, %99 : vector<16x178xf32>
    %cst_4 = arith.constant 0.000000e+00 : f32
    %101 = vector.broadcast %cst_4 : f32 to vector<16x178xf32>
    %102 = arith.maximumf %100, %101 : vector<16x178xf32>
    %c29 = arith.constant 29 : index
    %103 = memref.load %arg1[%c29] : memref<31xf32, #tpu.memory_space<smem>>
    %c20 = arith.constant 20 : index
    %104 = memref.load %arg1[%c20] : memref<31xf32, #tpu.memory_space<smem>>
    %105 = vector.broadcast %104 : f32 to vector<16x178xf32>
    %106 = arith.mulf %105, %2 : vector<16x178xf32>
    %107 = vector.broadcast %103 : f32 to vector<16x178xf32>
    %108 = arith.addf %107, %106 : vector<16x178xf32>
    %c21 = arith.constant 21 : index
    %109 = memref.load %arg1[%c21] : memref<31xf32, #tpu.memory_space<smem>>
    %110 = vector.broadcast %109 : f32 to vector<16x178xf32>
    %111 = arith.mulf %110, %3 : vector<16x178xf32>
    %112 = arith.addf %108, %111 : vector<16x178xf32>
    %c22 = arith.constant 22 : index
    %113 = memref.load %arg1[%c22] : memref<31xf32, #tpu.memory_space<smem>>
    %114 = vector.broadcast %113 : f32 to vector<16x178xf32>
    %115 = arith.mulf %114, %4 : vector<16x178xf32>
    %116 = arith.addf %112, %115 : vector<16x178xf32>
    %c23 = arith.constant 23 : index
    %117 = memref.load %arg1[%c23] : memref<31xf32, #tpu.memory_space<smem>>
    %118 = vector.broadcast %117 : f32 to vector<16x178xf32>
    %119 = arith.mulf %118, %5 : vector<16x178xf32>
    %120 = arith.addf %116, %119 : vector<16x178xf32>
    %c24 = arith.constant 24 : index
    %121 = memref.load %arg1[%c24] : memref<31xf32, #tpu.memory_space<smem>>
    %122 = vector.broadcast %121 : f32 to vector<16x178xf32>
    %123 = arith.mulf %122, %6 : vector<16x178xf32>
    %124 = arith.addf %120, %123 : vector<16x178xf32>
    %cst_5 = arith.constant 0.000000e+00 : f32
    %125 = vector.broadcast %cst_5 : f32 to vector<16x178xf32>
    %126 = arith.maximumf %124, %125 : vector<16x178xf32>
    %cst_6 = arith.constant 0.000000e+00 : f32
    %127 = vector.broadcast %cst_6 : f32 to vector<16x6xf32>
    %128 = tpu.concatenate %30, %54, %78, %102, %126, %127 in 1 : vector<16x178xf32>, vector<16x178xf32>, vector<16x178xf32>, vector<16x178xf32>, vector<16x178xf32>, vector<16x6xf32> -> vector<16x896xf32>
    %129 = arith.truncf %128 : vector<16x896xf32> to vector<16x896xbf16>
    %c0_7 = arith.constant 0 : index
    %c0_8 = arith.constant 0 : index
    %130 = vector.load %arg4[%c0_7, %c0_8] : memref<896x512xbf16, #tpu.memory_space<vmem>>, vector<896x512xbf16>
    %cst_9 = arith.constant dense<0.000000e+00> : vector<16x512xf32>
    %131 = tpu.matmul %129, %130, %cst_9 {dimension_numbers = #tpu.dot_dimension_numbers<[1], [0], [0], [1], [0, 0, 1, 1], [], []>} : vector<16x896xbf16>, vector<896x512xbf16>, vector<16x512xf32> -> vector<16x512xf32>
    %c0_10 = arith.constant 0 : index
    %c0_11 = arith.constant 0 : index
    %132 = vector.load %arg5[%c0_10, %c0_11] : memref<1x512xf32, #tpu.memory_space<vmem>>, vector<1x512xf32>
    %133 = vector.broadcast %132 : vector<1x512xf32> to vector<16x512xf32>
    %134 = arith.addf %131, %133 : vector<16x512xf32>
    %cst_12 = arith.constant 0.000000e+00 : f32
    %135 = vector.broadcast %cst_12 : f32 to vector<16x512xf32>
    %136 = arith.maximumf %134, %135 : vector<16x512xf32>
    %137 = arith.truncf %136 : vector<16x512xf32> to vector<16x512xbf16>
    %c0_13 = arith.constant 0 : index
    %c0_14 = arith.constant 0 : index
    %138 = vector.load %arg6[%c0_13, %c0_14] : memref<512x256xbf16, #tpu.memory_space<vmem>>, vector<512x256xbf16>
    %cst_15 = arith.constant dense<0.000000e+00> : vector<16x256xf32>
    %139 = tpu.matmul %137, %138, %cst_15 {dimension_numbers = #tpu.dot_dimension_numbers<[1], [0], [0], [1], [0, 0, 1, 1], [], []>} : vector<16x512xbf16>, vector<512x256xbf16>, vector<16x256xf32> -> vector<16x256xf32>
    %c0_16 = arith.constant 0 : index
    %c0_17 = arith.constant 0 : index
    %140 = vector.load %arg7[%c0_16, %c0_17] : memref<1x256xf32, #tpu.memory_space<vmem>>, vector<1x256xf32>
    %141 = vector.broadcast %140 : vector<1x256xf32> to vector<16x256xf32>
    %142 = arith.addf %139, %141 : vector<16x256xf32>
    %cst_18 = arith.constant 0.000000e+00 : f32
    %143 = vector.broadcast %cst_18 : f32 to vector<16x256xf32>
    %144 = arith.maximumf %142, %143 : vector<16x256xf32>
    %c0_19 = arith.constant 0 : index
    %c0_20 = arith.constant 0 : index
    %145 = vector.load %arg3[%c0_19, %c0_20] : memref<16x256xbf16, #tpu.memory_space<vmem>>, vector<16x256xbf16>
    %146 = arith.extf %145 : vector<16x256xbf16> to vector<16x256xf32>
    %147 = arith.addf %144, %146 : vector<16x256xf32>
    %148 = arith.truncf %147 : vector<16x256xf32> to vector<16x256xbf16>
    %c0_21 = arith.constant 0 : index
    %c0_22 = arith.constant 0 : index
    %149 = vector.load %arg8[%c0_21, %c0_22] : memref<256x256xbf16, #tpu.memory_space<vmem>>, vector<256x256xbf16>
    %cst_23 = arith.constant dense<0.000000e+00> : vector<16x256xf32>
    %150 = tpu.matmul %148, %149, %cst_23 {dimension_numbers = #tpu.dot_dimension_numbers<[1], [0], [0], [1], [0, 0, 1, 1], [], []>} : vector<16x256xbf16>, vector<256x256xbf16>, vector<16x256xf32> -> vector<16x256xf32>
    %c0_24 = arith.constant 0 : index
    %c0_25 = arith.constant 0 : index
    %151 = vector.load %arg9[%c0_24, %c0_25] : memref<1x256xf32, #tpu.memory_space<vmem>>, vector<1x256xf32>
    %152 = vector.broadcast %151 : vector<1x256xf32> to vector<16x256xf32>
    %153 = arith.addf %150, %152 : vector<16x256xf32>
    %cst_26 = arith.constant 0.000000e+00 : f32
    %154 = vector.broadcast %cst_26 : f32 to vector<16x256xf32>
    %155 = arith.maximumf %153, %154 : vector<16x256xf32>
    %156 = arith.truncf %155 : vector<16x256xf32> to vector<16x256xbf16>
    %c0_27 = arith.constant 0 : index
    %c0_28 = arith.constant 0 : index
    %157 = vector.load %arg10[%c0_27, %c0_28] : memref<256x256xbf16, #tpu.memory_space<vmem>>, vector<256x256xbf16>
    %cst_29 = arith.constant dense<0.000000e+00> : vector<16x256xf32>
    %158 = tpu.matmul %156, %157, %cst_29 {dimension_numbers = #tpu.dot_dimension_numbers<[1], [0], [0], [1], [0, 0, 1, 1], [], []>} : vector<16x256xbf16>, vector<256x256xbf16>, vector<16x256xf32> -> vector<16x256xf32>
    %c0_30 = arith.constant 0 : index
    %c0_31 = arith.constant 0 : index
    %159 = vector.load %arg11[%c0_30, %c0_31] : memref<1x256xf32, #tpu.memory_space<vmem>>, vector<1x256xf32>
    %160 = vector.broadcast %159 : vector<1x256xf32> to vector<16x256xf32>
    %161 = arith.addf %158, %160 : vector<16x256xf32>
    %cst_32 = arith.constant 0.000000e+00 : f32
    %162 = vector.broadcast %cst_32 : f32 to vector<16x256xf32>
    %163 = arith.maximumf %161, %162 : vector<16x256xf32>
    %164 = arith.truncf %163 : vector<16x256xf32> to vector<16x256xbf16>
    %c0_33 = arith.constant 0 : index
    %c0_34 = arith.constant 0 : index
    %165 = vector.load %arg12[%c0_33, %c0_34] : memref<256x128xbf16, #tpu.memory_space<vmem>>, vector<256x128xbf16>
    %cst_35 = arith.constant dense<0.000000e+00> : vector<16x128xf32>
    %166 = tpu.matmul %164, %165, %cst_35 {dimension_numbers = #tpu.dot_dimension_numbers<[1], [0], [0], [1], [0, 0, 1, 1], [], []>} : vector<16x256xbf16>, vector<256x128xbf16>, vector<16x128xf32> -> vector<16x128xf32>
    %c0_36 = arith.constant 0 : index
    %c0_37 = arith.constant 0 : index
    %167 = vector.load %arg13[%c0_36, %c0_37] : memref<1x128xf32, #tpu.memory_space<vmem>>, vector<1x128xf32>
    %168 = vector.broadcast %167 : vector<1x128xf32> to vector<16x128xf32>
    %169 = arith.addf %166, %168 : vector<16x128xf32>
    %cst_38 = arith.constant 0.000000e+00 : f32
    %170 = vector.broadcast %cst_38 : f32 to vector<16x128xf32>
    %171 = arith.maximumf %169, %170 : vector<16x128xf32>
    %c0_39 = arith.constant 0 : index
    %c0_40 = arith.constant 0 : index
    %172 = vector.load %arg14[%c0_39, %c0_40] : memref<1x128xf32, #tpu.memory_space<vmem>>, vector<1x128xf32>
    %173 = vector.broadcast %172 : vector<1x128xf32> to vector<16x128xf32>
    %174 = arith.mulf %171, %173 : vector<16x128xf32>
    %cst_41 = arith.constant dense<0.000000e+00> : vector<16xf32>
    %175 = vector.multi_reduction <add>, %174, %cst_41 [1] : vector<16x128xf32> to vector<16xf32>
    %176 = vector.shape_cast %175 : vector<16xf32> to vector<16x1xf32>
    %c30 = arith.constant 30 : index
    %177 = memref.load %arg1[%c30] : memref<31xf32, #tpu.memory_space<smem>>
    %178 = vector.broadcast %177 : f32 to vector<16x1xf32>
    %179 = arith.addf %176, %178 : vector<16x1xf32>
    %c0_42 = arith.constant 0 : index
    %c0_43 = arith.constant 0 : index
    %180 = vector.load %arg15[%c0_42, %c0_43] : memref<16x1xf32, #tpu.memory_space<vmem>>, vector<16x1xf32>
    tpu.vector_store %arg15[%c0_42, %c0_43], %179 {strides = array<i32>} : memref<16x1xf32, #tpu.memory_space<vmem>>, vector<16x1xf32>,
    return
  }
  func.func @transform_0(%arg0: i32, %arg1: memref<31xf32, #tpu.memory_space<smem>>) -> (i32, i32) {
    %c0_i32 = arith.constant 0 : i32
    %c0_i32_0 = arith.constant 0 : i32
    return %arg0, %c0_i32 : i32, i32
  }
  func.func @transform_1(%arg0: i32, %arg1: memref<31xf32, #tpu.memory_space<smem>>) -> (i32, i32) {
    %c0_i32 = arith.constant 0 : i32
    %c0_i32_0 = arith.constant 0 : i32
    return %arg0, %c0_i32 : i32, i32
  }
  func.func @transform_2(%arg0: i32, %arg1: memref<31xf32, #tpu.memory_space<smem>>) -> (i32, i32) {
    %c0_i32 = arith.constant 0 : i32
    %c0_i32_0 = arith.constant 0 : i32
    %c0_i32_1 = arith.constant 0 : i32
    return %c0_i32, %c0_i32_0 : i32, i32
  }
  func.func @transform_3(%arg0: i32, %arg1: memref<31xf32, #tpu.memory_space<smem>>) -> (i32, i32) {
    %c0_i32 = arith.constant 0 : i32
    %c0_i32_0 = arith.constant 0 : i32
    %c0_i32_1 = arith.constant 0 : i32
    return %c0_i32, %c0_i32_0 : i32, i32
  }
  func.func @transform_4(%arg0: i32, %arg1: memref<31xf32, #tpu.memory_space<smem>>) -> (i32, i32) {
    %c0_i32 = arith.constant 0 : i32
    %c0_i32_0 = arith.constant 0 : i32
    %c0_i32_1 = arith.constant 0 : i32
    return %c0_i32, %c0_i32_0 : i32, i32
  }
  func.func @transform_5(%arg0: i32, %arg1: memref<31xf32, #tpu.memory_space<smem>>) -> (i32, i32) {
    %c0_i32 = arith.constant 0 : i32
    %c0_i32_0 = arith.constant 0 : i32
    %c0_i32_1 = arith.constant 0 : i32
    return %c0_i32, %c0_i32_0 : i32, i32
  }
  func.func @transform_6(%arg0: i32, %arg1: memref<31xf32, #tpu.memory_space<smem>>) -> (i32, i32) {
    %c0_i32 = arith.constant 0 : i32
    %c0_i32_0 = arith.constant 0 : i32
    %c0_i32_1 = arith.constant 0 : i32
    return %c0_i32, %c0_i32_0 : i32, i32
  }
  func.func @transform_7(%arg0: i32, %arg1: memref<31xf32, #tpu.memory_space<smem>>) -> (i32, i32) {
    %c0_i32 = arith.constant 0 : i32
    %c0_i32_0 = arith.constant 0 : i32
    %c0_i32_1 = arith.constant 0 : i32
    return %c0_i32, %c0_i32_0 : i32, i32
  }
  func.func @transform_8(%arg0: i32, %arg1: memref<31xf32, #tpu.memory_space<smem>>) -> (i32, i32) {
    %c0_i32 = arith.constant 0 : i32
    %c0_i32_0 = arith.constant 0 : i32
    %c0_i32_1 = arith.constant 0 : i32
    return %c0_i32, %c0_i32_0 : i32, i32
  }
  func.func @transform_9(%arg0: i32, %arg1: memref<31xf32, #tpu.memory_space<smem>>) -> (i32, i32) {
    %c0_i32 = arith.constant 0 : i32
    %c0_i32_0 = arith.constant 0 : i32
    %c0_i32_1 = arith.constant 0 : i32
    return %c0_i32, %c0_i32_0 : i32, i32
  }
  func.func @transform_10(%arg0: i32, %arg1: memref<31xf32, #tpu.memory_space<smem>>) -> (i32, i32) {
    %c0_i32 = arith.constant 0 : i32
    %c0_i32_0 = arith.constant 0 : i32
    %c0_i32_1 = arith.constant 0 : i32
    return %c0_i32, %c0_i32_0 : i32, i32
  }
  func.func @transform_11(%arg0: i32, %arg1: memref<31xf32, #tpu.memory_space<smem>>) -> (i32, i32) {
    %c0_i32 = arith.constant 0 : i32
    %c0_i32_0 = arith.constant 0 : i32
    %c0_i32_1 = arith.constant 0 : i32
    return %c0_i32, %c0_i32_0 : i32, i32
  }
  func.func @transform_12(%arg0: i32, %arg1: memref<31xf32, #tpu.memory_space<smem>>) -> (i32, i32) {
    %c0_i32 = arith.constant 0 : i32
    %c0_i32_0 = arith.constant 0 : i32
    %c0_i32_1 = arith.constant 0 : i32
    return %c0_i32, %c0_i32_0 : i32, i32
  }
  func.func @transform_13(%arg0: i32, %arg1: memref<31xf32, #tpu.memory_space<smem>>) -> (i32, i32) {
    %c0_i32 = arith.constant 0 : i32
    %c0_i32_0 = arith.constant 0 : i32
    return %arg0, %c0_i32 : i32, i32
  }
}

</mosaic_0001>

<llo_original>
// kernel: critic_forward.1
$region0: #{critic_forward.1}
  #allocation0 [shape = 'u32[]', space=smem, size = 0x4, offset = 0x4, fixed_abs, tag = 'smem constant byte address 0x4 - core index']
  #allocation1 [shape = 'u32[144,128]{1,0:T(1,128)}', space=vmem, size = 0x12000, scoped, tag = 'internal scratch']
  #allocation2 [shape = 's32[1]{0}', space=sflag, size = 0x4, scoped, tag = 'scoped memory for critic_forward.1']
  #allocation3 [shape = 'u8[512]{0}', space=smem, size = 0x200, scoped, tag = 'prefetched SMEM operand 0']
  %s0 = inlined_call_operand.vmem [shape: f32[31], index: 0, kind: input, shape index: {}]
  %s1 = inlined_call_operand.vmem [shape: bf16[16,512], index: 1, kind: input, shape index: {}]
  %s2 = inlined_call_operand.vmem [shape: bf16[16,256], index: 2, kind: input, shape index: {}]
  %s3 = inlined_call_operand.hbm [shape: bf16[896,512], index: 3, kind: input, shape index: {}]
  %s4 = inlined_call_operand.vmem [shape: f32[1,512], index: 4, kind: input, shape index: {}]
  %s5 = inlined_call_operand.hbm [shape: bf16[512,256], index: 5, kind: input, shape index: {}]
  %s6 = inlined_call_operand.vmem [shape: f32[1,256], index: 6, kind: input, shape index: {}]
  %s7 = inlined_call_operand.hbm [shape: bf16[256,256], index: 7, kind: input, shape index: {}]
  %s8 = inlined_call_operand.vmem [shape: f32[1,256], index: 8, kind: input, shape index: {}]
  %s9 = inlined_call_operand.hbm [shape: bf16[256,256], index: 9, kind: input, shape index: {}]
  %s10 = inlined_call_operand.vmem [shape: f32[1,256], index: 10, kind: input, shape index: {}]
  %s11 = inlined_call_operand.hbm [shape: bf16[256,128], index: 11, kind: input, shape index: {}]
  %s12 = inlined_call_operand.vmem [shape: f32[1,128], index: 12, kind: input, shape index: {}]
  %s13 = inlined_call_operand.vmem [shape: f32[1,128], index: 13, kind: input, shape index: {}]
  %s14 = inlined_call_operand.vmem [shape: f32[16,1], index: 14, kind: output, shape index: {}]
  %s15 = sld [smem:[#allocation0]]
  $region82: #{critic_forward.1} parent=0
    _
  %s17 = ssub.s32 1, %s15
  %s18 = scalar_select 0, %s17, %s15
  %s19 = sshll.u32 %s0, 4
  %s20 = int_to_ptr.vmem [resolvable:$true] %s19
  %22 = dma.vmem_to_smem %s20, 16, [#allocation3], [#allocation2]
  %23 = dma.done [#allocation2], 16
  %24 = sfence
  $region1: #{critic_forward.1} parent=0
    #allocation4 [shape = 'u8[917504]{0}', space=vmem, size = 0xe0000, scoped, tag = 'input window, operand 3, single buffered']
    #allocation5 [shape = 's32[1]{0}', space=sflag, size = 0x4, scoped, tag = 'scoped memory for critic_forward.1']
    #allocation6 [shape = 'u8[262144]{0}', space=vmem, size = 0x40000, scoped, tag = 'input window, operand 5, single buffered']
    #allocation7 [shape = 's32[1]{0}', space=sflag, size = 0x4, scoped, tag = 'scoped memory for critic_forward.1']
    #allocation8 [shape = 'u8[131072]{0}', space=vmem, size = 0x20000, scoped, tag = 'input window, operand 7, single buffered']
    #allocation9 [shape = 'u8[131072]{0}', space=vmem, size = 0x20000, scoped, tag = 'input window, operand 9, single buffered']
    #allocation10 [shape = 's32[1]{0}', space=sflag, size = 0x4, scoped, tag = 'scoped memory for critic_forward.1']
    #allocation11 [shape = 'u8[65536]{0}', space=vmem, size = 0x10000, scoped, tag = 'input window, operand 11, single buffered']
    %25 = vsyncpa [#allocation5], 0
    %26 = vsyncpa [#allocation7], 0
    %27 = vsyncpa [#allocation10], 0
    // Predicated region
    $region2: #{critic_forward.1} parent=1 // pred_check
      _
    $region3: #{critic_forward.1} parent=1 // pred_check_branch
      %29 = sbr.rel (0) target = $region5
    $region4: #{critic_forward.1} parent=1 // pred_region
      _
    $region5: #{critic_forward.1} parent=1 // pred_fallthru
      _
    // Predicated region
    $region6: #{critic_forward.1} parent=1 // pred_check
      _
    $region7: #{critic_forward.1} parent=1 // pred_check_branch
      %31 = sbr.rel (0) target = $region9
    $region8: #{critic_forward.1} parent=1 // pred_region
      _
    $region9: #{critic_forward.1} parent=1 // pred_fallthru
      _
    // Predicated region
    $region10: #{critic_forward.1} parent=1 // pred_check
      _
    $region11: #{critic_forward.1} parent=1 // pred_check_branch
      %33 = sbr.rel (0) target = $region13
    $region12: #{critic_forward.1} parent=1 // pred_region
      %s35 = ssub.s32 28672, 28672
      %36 = vsyncadd [#allocation5], %s35
      %s37 = sshll.u32 [#allocation4], 4
      %s38 = int_to_ptr.vmem [resolvable:$true] %s37
      %43 = dma.hbm_to_vmem [thread:$0]  %s3, 28672, %s38, [#allocation5], 256, 256, 16
    $region13: #{critic_forward.1} parent=1 // pred_fallthru
      _
    // Predicated region
    $region14: #{critic_forward.1} parent=1 // pred_check
      _
    $region15: #{critic_forward.1} parent=1 // pred_check_branch
      %45 = sbr.rel (0) target = $region17
    $region16: #{critic_forward.1} parent=1 // pred_region
      _
    $region17: #{critic_forward.1} parent=1 // pred_fallthru
      _
    // Predicated region
    $region18: #{critic_forward.1} parent=1 // pred_check
      _
    $region19: #{critic_forward.1} parent=1 // pred_check_branch
      %47 = sbr.rel (0) target = $region21
    $region20: #{critic_forward.1} parent=1 // pred_region
      %s49 = ssub.s32 8192, 8192
      %50 = vsyncadd [#allocation7], %s49
      %s51 = sshll.u32 [#allocation6], 4
      %s52 = int_to_ptr.vmem [resolvable:$true] %s51
      %57 = dma.hbm_to_vmem [thread:$0]  %s5, 8192, %s52, [#allocation7], 128, 128, 8
    $region21: #{critic_forward.1} parent=1 // pred_fallthru
      _
    // Predicated region
    $region22: #{critic_forward.1} parent=1 // pred_check
      _
    $region23: #{critic_forward.1} parent=1 // pred_check_branch
      %59 = sbr.rel (0) target = $region25
    $region24: #{critic_forward.1} parent=1 // pred_region
      _
    $region25: #{critic_forward.1} parent=1 // pred_fallthru
      _
    // Predicated region
    $region26: #{critic_forward.1} parent=1 // pred_check
      _
    $region27: #{critic_forward.1} parent=1 // pred_check_branch
      %61 = sbr.rel (0) target = $region29
    $region28: #{critic_forward.1} parent=1 // pred_region
      %s63 = ssub.s32 4096, 4096
      %64 = vsyncadd [#allocation7], %s63
      %s65 = sshll.u32 [#allocation8], 4
      %s66 = int_to_ptr.vmem [resolvable:$true] %s65
      %71 = dma.hbm_to_vmem [thread:$0]  %s7, 4096, %s66, [#allocation7], 128, 128, 8
    $region29: #{critic_forward.1} parent=1 // pred_fallthru
      _
    // Predicated region
    $region30: #{critic_forward.1} parent=1 // pred_check
      _
    $region31: #{critic_forward.1} parent=1 // pred_check_branch
      %73 = sbr.rel (0) target = $region33
    $region32: #{critic_forward.1} parent=1 // pred_region
      _
    $region33: #{critic_forward.1} parent=1 // pred_fallthru
      _
    // Predicated region
    $region34: #{critic_forward.1} parent=1 // pred_check
      _
    $region35: #{critic_forward.1} parent=1 // pred_check_branch
      %75 = sbr.rel (0) target = $region37
    $region36: #{critic_forward.1} parent=1 // pred_region
      %s77 = ssub.s32 4096, 4096
      %78 = vsyncadd [#allocation10], %s77
      %s79 = sshll.u32 [#allocation9], 4
      %s80 = int_to_ptr.vmem [resolvable:$true] %s79
      %85 = dma.hbm_to_vmem [thread:$0]  %s9, 4096, %s80, [#allocation10], 128, 128, 8
    $region37: #{critic_forward.1} parent=1 // pred_fallthru
      _
    // Predicated region
    $region38: #{critic_forward.1} parent=1 // pred_check
      _
    $region39: #{critic_forward.1} parent=1 // pred_check_branch
      %87 = sbr.rel (0) target = $region41
    $region40: #{critic_forward.1} parent=1 // pred_region
      _
    $region41: #{critic_forward.1} parent=1 // pred_fallthru
      _
    // Predicated region
    $region42: #{critic_forward.1} parent=1 // pred_check
      _
    $region43: #{critic_forward.1} parent=1 // pred_check_branch
      %89 = sbr.rel (0) target = $region45
    $region44: #{critic_forward.1} parent=1 // pred_region
      %s91 = ssub.s32 2048, 2048
      %92 = vsyncadd [#allocation10], %s91
      %s93 = sshll.u32 [#allocation11], 4
      %s94 = int_to_ptr.vmem [resolvable:$true] %s93
      %99 = dma.hbm_to_vmem [thread:$0]  %s11, 2048, %s94, [#allocation10], 64, 64, 4
    $region45: #{critic_forward.1} parent=1 // pred_fallthru
      _
    // Predicated region
    $region46: #{critic_forward.1} parent=1 // pred_check
      _
    $region47: #{critic_forward.1} parent=1 // pred_check_branch
      %101 = sbr.rel (0) target = $region49
    $region48: #{critic_forward.1} parent=1 // pred_region
      _
    $region49: #{critic_forward.1} parent=1 // pred_fallthru
      _
    // Predicated region
    $region50: #{critic_forward.1} parent=1 // pred_check
      _
    $region51: #{critic_forward.1} parent=1 // pred_check_branch
      %103 = sbr.rel (0) target = $region53
    $region52: #{critic_forward.1} parent=1 // pred_region
      _
    $region53: #{critic_forward.1} parent=1 // pred_fallthru
      _
    // Predicated region
    $region54: #{critic_forward.1} parent=1 // pred_check
      _
    $region55: #{critic_forward.1} parent=1 // pred_check_branch
      %105 = sbr.rel (0) target = $region57
    $region56: #{critic_forward.1} parent=1 // pred_region
      %106 = dma.done [#allocation5], 28672
    $region57: #{critic_forward.1} parent=1 // pred_fallthru
      _
    // Predicated region
    $region58: #{critic_forward.1} parent=1 // pred_check
      _
    $region59: #{critic_forward.1} parent=1 // pred_check_branch
      %108 = sbr.rel (0) target = $region61
    $region60: #{critic_forward.1} parent=1 // pred_region
      %109 = dma.done [#allocation7], 8192
    $region61: #{critic_forward.1} parent=1 // pred_fallthru
      _
    // Predicated region
    $region62: #{critic_forward.1} parent=1 // pred_check
      _
    $region63: #{critic_forward.1} parent=1 // pred_check_branch
      %111 = sbr.rel (0) target = $region65
    $region64: #{critic_forward.1} parent=1 // pred_region
      %112 = dma.done [#allocation7], 4096
    $region65: #{critic_forward.1} parent=1 // pred_fallthru
      _
    // Predicated region
    $region66: #{critic_forward.1} parent=1 // pred_check
      _
    $region67: #{critic_forward.1} parent=1 // pred_check_branch
      %114 = sbr.rel (0) target = $region69
    $region68: #{critic_forward.1} parent=1 // pred_region
      %115 = dma.done [#allocation10], 4096
    $region69: #{critic_forward.1} parent=1 // pred_fallthru
      _
    // Predicated region
    $region70: #{critic_forward.1} parent=1 // pred_check
      _
    $region71: #{critic_forward.1} parent=1 // pred_check_branch
      %117 = sbr.rel (0) target = $region73
    $region72: #{critic_forward.1} parent=1 // pred_region
      %118 = dma.done [#allocation10], 2048
    $region73: #{critic_forward.1} parent=1 // pred_fallthru
      _
    %v120 = vld [vmem:[%s1] sm:$0xff]
    %v121 = vld [vmem:[%s1 + $0x8] sm:$0xff]
    %v122 = vld [vmem:[%s1 + $0x10] sm:$0xff]
    %v123 = vld [vmem:[%s1 + $0x18] sm:$0xff]
    %v124 = vunpack.c.l.bf16 %v120
    %v125 = vunpack.c.h.bf16 %v120
    %v126 = vunpack.c.l.bf16 %v121
    %v127 = vunpack.c.h.bf16 %v121
    %v128 = vunpack.c.l.bf16 %v122
    %v129 = vunpack.c.h.bf16 %v122
    %v130 = vunpack.c.l.bf16 %v123
    %v131 = vunpack.c.h.bf16 %v123
    %s132 = sld [smem:[#allocation3 + $0x19]]
    %s133 = sld [smem:[#allocation3]]
    %v134 = vstv %s133
    %v135 = vmul.f32 %v134, %v124
    %v136 = vmul.f32 %v134, %v125
    %v137 = vmul.f32 %v134, %v128
    %v138 = vmul.f32 %v134, %v129
    %v139 = vstv %s132
    %v140 = vadd.f32 %v139, %v135
    %v141 = vadd.f32 %v139, %v136
    %v142 = vadd.f32 %v139, %v137
    %v143 = vadd.f32 %v139, %v138
    %s144 = sld [smem:[#allocation3 + $0x1]]
    %v145 = vstv %s144
    %v146 = vmul.f32 %v145, %v126
    %v147 = vmul.f32 %v145, %v127
    %v148 = vmul.f32 %v145, %v130
    %v149 = vmul.f32 %v145, %v131
    %v150 = vadd.f32 %v140, %v146
    %v151 = vadd.f32 %v141, %v147
    %v152 = vadd.f32 %v142, %v148
    %v153 = vadd.f32 %v143, %v149
    %s154 = sld [smem:[#allocation3 + $0x2]]
    %v155 = vstv %s154
    %v156 = vmul.f32 %v155, %v124
    %v157 = vmul.f32 %v155, %v125
    %v158 = vmul.f32 %v155, %v128
    %v159 = vmul.f32 %v155, %v129
    %164 = vrot.lane.b32.xlu0 %v156, 127
    %v165 = vpop.permute.xlu0 %164
    %166 = vrot.lane.b32.xlu0 %v157, 127
    %v167 = vpop.permute.xlu0 %166
    %168 = vrot.lane.b32.xlu0 %v158, 127
    %v169 = vpop.permute.xlu0 %168
    %170 = vrot.lane.b32.xlu0 %v159, 127
    %v171 = vpop.permute.xlu0 %170
    %vm172 = vcmask 1039360
    %v173 = vsel %vm172, %v165, %v167
    %v174 = vsel %vm172, %v169, %v171
    %v179 = vadd.f32 %v150, %v173
    %v180 = vadd.f32 %v151, %v167
    %v181 = vadd.f32 %v152, %v174
    %v182 = vadd.f32 %v153, %v171
    %s183 = sld [smem:[#allocation3 + $0x3]]
    %v184 = vstv %s183
    %v185 = vmul.f32 %v184, %v126
    %v186 = vmul.f32 %v184, %v127
    %v187 = vmul.f32 %v184, %v130
    %v188 = vmul.f32 %v184, %v131
    %193 = vrot.lane.b32.xlu0 %v185, 127
    %v194 = vpop.permute.xlu0 %193
    %195 = vrot.lane.b32.xlu0 %v186, 127
    %v196 = vpop.permute.xlu0 %195
    %197 = vrot.lane.b32.xlu0 %v187, 127
    %v198 = vpop.permute.xlu0 %197
    %199 = vrot.lane.b32.xlu0 %v188, 127
    %v200 = vpop.permute.xlu0 %199
    %v201 = vsel %vm172, %v194, %v196
    %v202 = vsel %vm172, %v198, %v200
    %v207 = vadd.f32 %v179, %v201
    %v208 = vadd.f32 %v180, %v196
    %v209 = vadd.f32 %v181, %v202
    %v210 = vadd.f32 %v182, %v200
    %s211 = sld [smem:[#allocation3 + $0x4]]
    %v212 = vstv %s211
    %v213 = vmul.f32 %v212, %v124
    %v214 = vmul.f32 %v212, %v125
    %v215 = vmul.f32 %v212, %v128
    %v216 = vmul.f32 %v212, %v129
    %221 = vrot.lane.b32.xlu0 %v213, 126
    %v222 = vpop.permute.xlu0 %221
    %223 = vrot.lane.b32.xlu0 %v214, 126
    %v224 = vpop.permute.xlu0 %223
    %225 = vrot.lane.b32.xlu0 %v215, 126
    %v226 = vpop.permute.xlu0 %225
    %227 = vrot.lane.b32.xlu0 %v216, 126
    %v228 = vpop.permute.xlu0 %227
    %vm229 = vcmask 1031168
    %v230 = vsel %vm229, %v222, %v224
    %v231 = vsel %vm229, %v226, %v228
    %v236 = vadd.f32 %v207, %v230
    %v237 = vadd.f32 %v208, %v224
    %v238 = vadd.f32 %v209, %v231
    %v239 = vadd.f32 %v210, %v228
    %v240 = vmax.f32 %v236, 0.0
    %v241 = vmax.f32 %v237, 0.0
    %v242 = vmax.f32 %v238, 0.0
    %v243 = vmax.f32 %v239, 0.0
    %s244 = sld [smem:[#allocation3 + $0x1a]]
    %s245 = sld [smem:[#allocation3 + $0x5]]
    %v246 = vstv %s245
    %v247 = vmul.f32 %v246, %v124
    %v248 = vmul.f32 %v246, %v125
    %v249 = vmul.f32 %v246, %v128
    %v250 = vmul.f32 %v246, %v129
    %v251 = vstv %s244
    %v252 = vadd.f32 %v251, %v247
    %v253 = vadd.f32 %v251, %v248
    %v254 = vadd.f32 %v251, %v249
    %v255 = vadd.f32 %v251, %v250
    %s256 = sld [smem:[#allocation3 + $0x6]]
    %v257 = vstv %s256
    %v258 = vmul.f32 %v257, %v126
    %v259 = vmul.f32 %v257, %v127
    %v260 = vmul.f32 %v257, %v130
    %v261 = vmul.f32 %v257, %v131
    %v262 = vadd.f32 %v252, %v258
    %v263 = vadd.f32 %v253, %v259
    %v264 = vadd.f32 %v254, %v260
    %v265 = vadd.f32 %v255, %v261
    %s266 = sld [smem:[#allocation3 + $0x7]]
    %v267 = vstv %s266
    %v268 = vmul.f32 %v267, %v124
    %v269 = vmul.f32 %v267, %v125
    %v270 = vmul.f32 %v267, %v128
    %v271 = vmul.f32 %v267, %v129
    %276 = vrot.lane.b32.xlu0 %v268, 127
    %v277 = vpop.permute.xlu0 %276
    %278 = vrot.lane.b32.xlu0 %v269, 127
    %v279 = vpop.permute.xlu0 %278
    %280 = vrot.lane.b32.xlu0 %v270, 127
    %v281 = vpop.permute.xlu0 %280
    %282 = vrot.lane.b32.xlu0 %v271, 127
    %v283 = vpop.permute.xlu0 %282
    %v284 = vsel %vm172, %v277, %v279
    %v285 = vsel %vm172, %v281, %v283
    %v290 = vadd.f32 %v262, %v284
    %v291 = vadd.f32 %v263, %v279
    %v292 = vadd.f32 %v264, %v285
    %v293 = vadd.f32 %v265, %v283
    %s294 = sld [smem:[#allocation3 + $0x8]]
    %v295 = vstv %s294
    %v296 = vmul.f32 %v295, %v126
    %v297 = vmul.f32 %v295, %v127
    %v298 = vmul.f32 %v295, %v130
    %v299 = vmul.f32 %v295, %v131
    %304 = vrot.lane.b32.xlu0 %v296, 127
    %v305 = vpop.permute.xlu0 %304
    %306 = vrot.lane.b32.xlu0 %v297, 127
    %v307 = vpop.permute.xlu0 %306
    %308 = vrot.lane.b32.xlu0 %v298, 127
    %v309 = vpop.permute.xlu0 %308
    %310 = vrot.lane.b32.xlu0 %v299, 127
    %v311 = vpop.permute.xlu0 %310
    %v312 = vsel %vm172, %v305, %v307
    %v313 = vsel %vm172, %v309, %v311
    %v318 = vadd.f32 %v290, %v312
    %v319 = vadd.f32 %v291, %v307
    %v320 = vadd.f32 %v292, %v313
    %v321 = vadd.f32 %v293, %v311
    %s322 = sld [smem:[#allocation3 + $0x9]]
    %v323 = vstv %s322
    %v324 = vmul.f32 %v323, %v124
    %v325 = vmul.f32 %v323, %v125
    %v326 = vmul.f32 %v323, %v128
    %v327 = vmul.f32 %v323, %v129
    %332 = vrot.lane.b32.xlu0 %v324, 126
    %v333 = vpop.permute.xlu0 %332
    %334 = vrot.lane.b32.xlu0 %v325, 126
    %v335 = vpop.permute.xlu0 %334
    %336 = vrot.lane.b32.xlu0 %v326, 126
    %v337 = vpop.permute.xlu0 %336
    %338 = vrot.lane.b32.xlu0 %v327, 126
    %v339 = vpop.permute.xlu0 %338
    %v340 = vsel %vm229, %v333, %v335
    %v341 = vsel %vm229, %v337, %v339
    %v346 = vadd.f32 %v318, %v340
    %v347 = vadd.f32 %v319, %v335
    %v348 = vadd.f32 %v320, %v341
    %v349 = vadd.f32 %v321, %v339
    %v350 = vmax.f32 %v346, 0.0
    %v351 = vmax.f32 %v347, 0.0
    %v352 = vmax.f32 %v348, 0.0
    %v353 = vmax.f32 %v349, 0.0
    %s354 = sld [smem:[#allocation3 + $0x1b]]
    %s355 = sld [smem:[#allocation3 + $0xa]]
    %v356 = vstv %s355
    %v357 = vmul.f32 %v356, %v124
    %v358 = vmul.f32 %v356, %v125
    %v359 = vmul.f32 %v356, %v128
    %v360 = vmul.f32 %v356, %v129
    %v361 = vstv %s354
    %v362 = vadd.f32 %v361, %v357
    %v363 = vadd.f32 %v361, %v358
    %v364 = vadd.f32 %v361, %v359
    %v365 = vadd.f32 %v361, %v360
    %s366 = sld [smem:[#allocation3 + $0xb]]
    %v367 = vstv %s366
    %v368 = vmul.f32 %v367, %v126
    %v369 = vmul.f32 %v367, %v127
    %v370 = vmul.f32 %v367, %v130
    %v371 = vmul.f32 %v367, %v131
    %v372 = vadd.f32 %v362, %v368
    %v373 = vadd.f32 %v363, %v369
    %v374 = vadd.f32 %v364, %v370
    %v375 = vadd.f32 %v365, %v371
    %s376 = sld [smem:[#allocation3 + $0xc]]
    %v377 = vstv %s376
    %v378 = vmul.f32 %v377, %v124
    %v379 = vmul.f32 %v377, %v125
    %v380 = vmul.f32 %v377, %v128
    %v381 = vmul.f32 %v377, %v129
    %386 = vrot.lane.b32.xlu0 %v378, 127
    %v387 = vpop.permute.xlu0 %386
    %388 = vrot.lane.b32.xlu0 %v379, 127
    %v389 = vpop.permute.xlu0 %388
    %390 = vrot.lane.b32.xlu0 %v380, 127
    %v391 = vpop.permute.xlu0 %390
    %392 = vrot.lane.b32.xlu0 %v381, 127
    %v393 = vpop.permute.xlu0 %392
    %v394 = vsel %vm172, %v387, %v389
    %v395 = vsel %vm172, %v391, %v393
    %v400 = vadd.f32 %v372, %v394
    %v401 = vadd.f32 %v373, %v389
    %v402 = vadd.f32 %v374, %v395
    %v403 = vadd.f32 %v375, %v393
    %s404 = sld [smem:[#allocation3 + $0xd]]
    %v405 = vstv %s404
    %v406 = vmul.f32 %v405, %v126
    %v407 = vmul.f32 %v405, %v127
    %v408 = vmul.f32 %v405, %v130
    %v409 = vmul.f32 %v405, %v131
    %414 = vrot.lane.b32.xlu0 %v406, 127
    %v415 = vpop.permute.xlu0 %414
    %416 = vrot.lane.b32.xlu0 %v407, 127
    %v417 = vpop.permute.xlu0 %416
    %418 = vrot.lane.b32.xlu0 %v408, 127
    %v419 = vpop.permute.xlu0 %418
    %420 = vrot.lane.b32.xlu0 %v409, 127
    %v421 = vpop.permute.xlu0 %420
    %v422 = vsel %vm172, %v415, %v417
    %v423 = vsel %vm172, %v419, %v421
    %v428 = vadd.f32 %v400, %v422
    %v429 = vadd.f32 %v401, %v417
    %v430 = vadd.f32 %v402, %v423
    %v431 = vadd.f32 %v403, %v421
    %s432 = sld [smem:[#allocation3 + $0xe]]
    %v433 = vstv %s432
    %v434 = vmul.f32 %v433, %v124
    %v435 = vmul.f32 %v433, %v125
    %v436 = vmul.f32 %v433, %v128
    %v437 = vmul.f32 %v433, %v129
    %442 = vrot.lane.b32.xlu0 %v434, 126
    %v443 = vpop.permute.xlu0 %442
    %444 = vrot.lane.b32.xlu0 %v435, 126
    %v445 = vpop.permute.xlu0 %444
    %446 = vrot.lane.b32.xlu0 %v436, 126
    %v447 = vpop.permute.xlu0 %446
    %448 = vrot.lane.b32.xlu0 %v437, 126
    %v449 = vpop.permute.xlu0 %448
    %v450 = vsel %vm229, %v443, %v445
    %v451 = vsel %vm229, %v447, %v449
    %v456 = vadd.f32 %v428, %v450
    %v457 = vadd.f32 %v429, %v445
    %v458 = vadd.f32 %v430, %v451
    %v459 = vadd.f32 %v431, %v449
    %v460 = vmax.f32 %v456, 0.0
    %v461 = vmax.f32 %v457, 0.0
    %v462 = vmax.f32 %v458, 0.0
    %v463 = vmax.f32 %v459, 0.0
    %s464 = sld [smem:[#allocation3 + $0x1c]]
    %s465 = sld [smem:[#allocation3 + $0xf]]
    %v466 = vstv %s465
    %v467 = vmul.f32 %v466, %v124
    %v468 = vmul.f32 %v466, %v125
    %v469 = vmul.f32 %v466, %v128
    %v470 = vmul.f32 %v466, %v129
    %v471 = vstv %s464
    %v472 = vadd.f32 %v471, %v467
    %v473 = vadd.f32 %v471, %v468
    %v474 = vadd.f32 %v471, %v469
    %v475 = vadd.f32 %v471, %v470
    %s476 = sld [smem:[#allocation3 + $0x10]]
    %v477 = vstv %s476
    %v478 = vmul.f32 %v477, %v126
    %v479 = vmul.f32 %v477, %v127
    %v480 = vmul.f32 %v477, %v130
    %v481 = vmul.f32 %v477, %v131
    %v482 = vadd.f32 %v472, %v478
    %v483 = vadd.f32 %v473, %v479
    %v484 = vadd.f32 %v474, %v480
    %v485 = vadd.f32 %v475, %v481
    %s486 = sld [smem:[#allocation3 + $0x11]]
    %v487 = vstv %s486
    %v488 = vmul.f32 %v487, %v124
    %v489 = vmul.f32 %v487, %v125
    %v490 = vmul.f32 %v487, %v128
    %v491 = vmul.f32 %v487, %v129
    %496 = vrot.lane.b32.xlu0 %v488, 127
    %v497 = vpop.permute.xlu0 %496
    %498 = vrot.lane.b32.xlu0 %v489, 127
    %v499 = vpop.permute.xlu0 %498
    %500 = vrot.lane.b32.xlu0 %v490, 127
    %v501 = vpop.permute.xlu0 %500
    %502 = vrot.lane.b32.xlu0 %v491, 127
    %v503 = vpop.permute.xlu0 %502
    %v504 = vsel %vm172, %v497, %v499
    %v505 = vsel %vm172, %v501, %v503
    %v510 = vadd.f32 %v482, %v504
    %v511 = vadd.f32 %v483, %v499
    %v512 = vadd.f32 %v484, %v505
    %v513 = vadd.f32 %v485, %v503
    %s514 = sld [smem:[#allocation3 + $0x12]]
    %v515 = vstv %s514
    %v516 = vmul.f32 %v515, %v126
    %v517 = vmul.f32 %v515, %v127
    %v518 = vmul.f32 %v515, %v130
    %v519 = vmul.f32 %v515, %v131
    %524 = vrot.lane.b32.xlu0 %v516, 127
    %v525 = vpop.permute.xlu0 %524
    %526 = vrot.lane.b32.xlu0 %v517, 127
    %v527 = vpop.permute.xlu0 %526
    %528 = vrot.lane.b32.xlu0 %v518, 127
    %v529 = vpop.permute.xlu0 %528
    %530 = vrot.lane.b32.xlu0 %v519, 127
    %v531 = vpop.permute.xlu0 %530
    %v532 = vsel %vm172, %v525, %v527
    %v533 = vsel %vm172, %v529, %v531
    %v538 = vadd.f32 %v510, %v532
    %v539 = vadd.f32 %v511, %v527
    %v540 = vadd.f32 %v512, %v533
    %v541 = vadd.f32 %v513, %v531
    %s542 = sld [smem:[#allocation3 + $0x13]]
    %v543 = vstv %s542
    %v544 = vmul.f32 %v543, %v124
    %v545 = vmul.f32 %v543, %v125
    %v546 = vmul.f32 %v543, %v128
    %v547 = vmul.f32 %v543, %v129
    %552 = vrot.lane.b32.xlu0 %v544, 126
    %v553 = vpop.permute.xlu0 %552
    %554 = vrot.lane.b32.xlu0 %v545, 126
    %v555 = vpop.permute.xlu0 %554
    %556 = vrot.lane.b32.xlu0 %v546, 126
    %v557 = vpop.permute.xlu0 %556
    %558 = vrot.lane.b32.xlu0 %v547, 126
    %v559 = vpop.permute.xlu0 %558
    %v560 = vsel %vm229, %v553, %v555
    %v561 = vsel %vm229, %v557, %v559
    %v566 = vadd.f32 %v538, %v560
    %v567 = vadd.f32 %v539, %v555
    %v568 = vadd.f32 %v540, %v561
    %v569 = vadd.f32 %v541, %v559
    %v570 = vmax.f32 %v566, 0.0
    %v571 = vmax.f32 %v567, 0.0
    %v572 = vmax.f32 %v568, 0.0
    %v573 = vmax.f32 %v569, 0.0
    %s574 = sld [smem:[#allocation3 + $0x1d]]
    %s575 = sld [smem:[#allocation3 + $0x14]]
    %v576 = vstv %s575
    %v577 = vmul.f32 %v576, %v124
    %v578 = vmul.f32 %v576, %v125
    %v579 = vmul.f32 %v576, %v128
    %v580 = vmul.f32 %v576, %v129
    %v581 = vstv %s574
    %v582 = vadd.f32 %v581, %v577
    %v583 = vadd.f32 %v581, %v578
    %v584 = vadd.f32 %v581, %v579
    %v585 = vadd.f32 %v581, %v580
    %s586 = sld [smem:[#allocation3 + $0x15]]
    %v587 = vstv %s586
    %v588 = vmul.f32 %v587, %v126
    %v589 = vmul.f32 %v587, %v127
    %v590 = vmul.f32 %v587, %v130
    %v591 = vmul.f32 %v587, %v131
    %v592 = vadd.f32 %v582, %v588
    %v593 = vadd.f32 %v583, %v589
    %v594 = vadd.f32 %v584, %v590
    %v595 = vadd.f32 %v585, %v591
    %s596 = sld [smem:[#allocation3 + $0x16]]
    %v597 = vstv %s596
    %v598 = vmul.f32 %v597, %v124
    %v599 = vmul.f32 %v597, %v125
    %v600 = vmul.f32 %v597, %v128
    %v601 = vmul.f32 %v597, %v129
    %606 = vrot.lane.b32.xlu0 %v598, 127
    %v607 = vpop.permute.xlu0 %606
    %608 = vrot.lane.b32.xlu0 %v599, 127
    %v609 = vpop.permute.xlu0 %608
    %610 = vrot.lane.b32.xlu0 %v600, 127
    %v611 = vpop.permute.xlu0 %610
    %612 = vrot.lane.b32.xlu0 %v601, 127
    %v613 = vpop.permute.xlu0 %612
    %v614 = vsel %vm172, %v607, %v609
    %v615 = vsel %vm172, %v611, %v613
    %v620 = vadd.f32 %v592, %v614
    %v621 = vadd.f32 %v593, %v609
    %v622 = vadd.f32 %v594, %v615
    %v623 = vadd.f32 %v595, %v613
    %s624 = sld [smem:[#allocation3 + $0x17]]
    %v625 = vstv %s624
    %v626 = vmul.f32 %v625, %v126
    %v627 = vmul.f32 %v625, %v127
    %v628 = vmul.f32 %v625, %v130
    %v629 = vmul.f32 %v625, %v131
    %634 = vrot.lane.b32.xlu0 %v626, 127
    %v635 = vpop.permute.xlu0 %634
    %636 = vrot.lane.b32.xlu0 %v627, 127
    %v637 = vpop.permute.xlu0 %636
    %638 = vrot.lane.b32.xlu0 %v628, 127
    %v639 = vpop.permute.xlu0 %638
    %640 = vrot.lane.b32.xlu0 %v629, 127
    %v641 = vpop.permute.xlu0 %640
    %v642 = vsel %vm172, %v635, %v637
    %v643 = vsel %vm172, %v639, %v641
    %v648 = vadd.f32 %v620, %v642
    %v649 = vadd.f32 %v621, %v637
    %v650 = vadd.f32 %v622, %v643
    %v651 = vadd.f32 %v623, %v641
    %s652 = sld [smem:[#allocation3 + $0x18]]
    %v653 = vstv %s652
    %v654 = vmul.f32 %v653, %v124
    %v655 = vmul.f32 %v653, %v125
    %v656 = vmul.f32 %v653, %v128
    %v657 = vmul.f32 %v653, %v129
    %662 = vrot.lane.b32.xlu0 %v654, 126
    %v663 = vpop.permute.xlu0 %662
    %664 = vrot.lane.b32.xlu0 %v655, 126
    %v665 = vpop.permute.xlu0 %664
    %666 = vrot.lane.b32.xlu0 %v656, 126
    %v667 = vpop.permute.xlu0 %666
    %668 = vrot.lane.b32.xlu0 %v657, 126
    %v669 = vpop.permute.xlu0 %668
    %v670 = vsel %vm229, %v663, %v665
    %v671 = vsel %vm229, %v667, %v669
    %v676 = vadd.f32 %v648, %v670
    %v677 = vadd.f32 %v649, %v665
    %v678 = vadd.f32 %v650, %v671
    %v679 = vadd.f32 %v651, %v669
    %v680 = vmax.f32 %v676, 0.0
    %v681 = vmax.f32 %v677, 0.0
    %v682 = vmax.f32 %v678, 0.0
    %v683 = vmax.f32 %v679, 0.0
    %688 = vrot.lane.b32.xlu0 %v350, 50
    %v689 = vpop.permute.xlu0 %688
    %690 = vrot.lane.b32.xlu0 %v351, 50
    %v691 = vpop.permute.xlu0 %690
    %692 = vrot.lane.b32.xlu0 %v352, 50
    %v693 = vpop.permute.xlu0 %692
    %694 = vrot.lane.b32.xlu0 %v353, 50
    %v695 = vpop.permute.xlu0 %694
    %vm696 = vcmask 408576
    %v697 = vsel %vm696, %v689, %v691
    %v698 = vsel %vm696, %v693, %v695
    %707 = vrot.lane.b32.xlu0 %v460, 100
    %v708 = vpop.permute.xlu0 %707
    %709 = vrot.lane.b32.xlu0 %v461, 100
    %v710 = vpop.permute.xlu0 %709
    %711 = vrot.lane.b32.xlu0 %v462, 100
    %v712 = vpop.permute.xlu0 %711
    %713 = vrot.lane.b32.xlu0 %v463, 100
    %v714 = vpop.permute.xlu0 %713
    %vm715 = vcmask 818176
    %v716 = vsel %vm715, %v708, %v710
    %v717 = vsel %vm715, %v712, %v714
    %728 = vrot.lane.b32.xlu0 %v570, 22
    %v729 = vpop.permute.xlu0 %728
    %730 = vrot.lane.b32.xlu0 %v571, 22
    %v731 = vpop.permute.xlu0 %730
    %732 = vrot.lane.b32.xlu0 %v572, 22
    %v733 = vpop.permute.xlu0 %732
    %734 = vrot.lane.b32.xlu0 %v573, 22
    %v735 = vpop.permute.xlu0 %734
    %vm736 = vcmask 179200
    %v737 = vsel %vm736, %v729, %v731
    %v738 = vsel %vm736, %v733, %v735
    %747 = vrot.lane.b32.xlu0 %v680, 72
    %v748 = vpop.permute.xlu0 %747
    %749 = vrot.lane.b32.xlu0 %v681, 72
    %v750 = vpop.permute.xlu0 %749
    %751 = vrot.lane.b32.xlu0 %v682, 72
    %v752 = vpop.permute.xlu0 %751
    %753 = vrot.lane.b32.xlu0 %v683, 72
    %v754 = vpop.permute.xlu0 %753
    %vm755 = vcmask 588800
    %v756 = vsel %vm755, %v748, %v750
    %v757 = vsel %vm755, %v752, %v754
    %v762 = vsel %vm696, %v241, %v689
    %v763 = vsel %vm696, %v243, %v693
    %v764 = vsel %vm715, %v697, %v708
    %v765 = vsel %vm715, %v698, %v712
    %v766 = vsel %vm736, %v710, %v729
    %v767 = vsel %vm736, %v714, %v733
    %v768 = vsel %vm755, %v737, %v748
    %v769 = vsel %vm755, %v738, %v752
    %vm770 = vcmask 998400
    %v771 = vsel %vm770, %v756, 0.0
    %v772 = vsel %vm770, %v757, 0.0
    %v773 = vpack.c.bf16 %v242, %v240
    %v774 = vpack.c.bf16 %v763, %v762
    %v775 = vpack.c.bf16 %v765, %v764
    %v776 = vpack.c.bf16 %v717, %v716
    %v777 = vpack.c.bf16 %v767, %v766
    %v778 = vpack.c.bf16 %v769, %v768
    %v779 = vpack.c.bf16 %v772, %v771
    %v780 = vld [vmem:[#allocation4] sm:$0xff]
    %v781 = vld [vmem:[#allocation4 + $0x8] sm:$0xff]
    %v782 = vld [vmem:[#allocation4 + $0x10] sm:$0xff]
    %v783 = vld [vmem:[#allocation4 + $0x18] sm:$0xff]
    %v784 = vld [vmem:[#allocation4 + $0x20] sm:$0xff]
    %v785 = vld [vmem:[#allocation4 + $0x28] sm:$0xff]
    %v786 = vld [vmem:[#allocation4 + $0x30] sm:$0xff]
    %v787 = vld [vmem:[#allocation4 + $0x38] sm:$0xff]
    %v788 = vld [vmem:[#allocation4 + $0x40] sm:$0xff]
    %v789 = vld [vmem:[#allocation4 + $0x48] sm:$0xff]
    %v790 = vld [vmem:[#allocation4 + $0x50] sm:$0xff]
    %v791 = vld [vmem:[#allocation4 + $0x58] sm:$0xff]
    %v792 = vld [vmem:[#allocation4 + $0x60] sm:$0xff]
    %v793 = vld [vmem:[#allocation4 + $0x68] sm:$0xff]
    %v794 = vld [vmem:[#allocation4 + $0x70] sm:$0xff]
    %v795 = vld [vmem:[#allocation4 + $0x78] sm:$0xff]
    %v796 = vld [vmem:[#allocation4 + $0x80] sm:$0xff]
    %v797 = vld [vmem:[#allocation4 + $0x88] sm:$0xff]
    %v798 = vld [vmem:[#allocation4 + $0x90] sm:$0xff]
    %v799 = vld [vmem:[#allocation4 + $0x98] sm:$0xff]
    %v800 = vld [vmem:[#allocation4 + $0xa0] sm:$0xff]
    %v801 = vld [vmem:[#allocation4 + $0xa8] sm:$0xff]
    %v802 = vld [vmem:[#allocation4 + $0xb0] sm:$0xff]
    %v803 = vld [vmem:[#allocation4 + $0xb8] sm:$0xff]
    %v804 = vld [vmem:[#allocation4 + $0xc0] sm:$0xff]
    %v805 = vld [vmem:[#allocation4 + $0xc8] sm:$0xff]
    %v806 = vld [vmem:[#allocation4 + $0xd0] sm:$0xff]
    %v807 = vld [vmem:[#allocation4 + $0xd8] sm:$0xff]
    %v808 = vld [vmem:[#allocation4 + $0xe0] sm:$0xff]
    %v809 = vld [vmem:[#allocation4 + $0xe8] sm:$0xff]
    %v810 = vld [vmem:[#allocation4 + $0xf0] sm:$0xff]
    %v811 = vld [vmem:[#allocation4 + $0xf8] sm:$0xff]
    %v812 = vld [vmem:[#allocation4 + $0x100] sm:$0xff]
    %v813 = vld [vmem:[#allocation4 + $0x108] sm:$0xff]
    %v814 = vld [vmem:[#allocation4 + $0x110] sm:$0xff]
    %v815 = vld [vmem:[#allocation4 + $0x118] sm:$0xff]
    %v816 = vld [vmem:[#allocation4 + $0x120] sm:$0xff]
    %v817 = vld [vmem:[#allocation4 + $0x128] sm:$0xff]
    %v818 = vld [vmem:[#allocation4 + $0x130] sm:$0xff]
    %v819 = vld [vmem:[#allocation4 + $0x138] sm:$0xff]
    %v820 = vld [vmem:[#allocation4 + $0x140] sm:$0xff]
    %v821 = vld [vmem:[#allocation4 + $0x148] sm:$0xff]
    %v822 = vld [vmem:[#allocation4 + $0x150] sm:$0xff]
    %v823 = vld [vmem:[#allocation4 + $0x158] sm:$0xff]
    %v824 = vld [vmem:[#allocation4 + $0x160] sm:$0xff]
    %v825 = vld [vmem:[#allocation4 + $0x168] sm:$0xff]
    %v826 = vld [vmem:[#allocation4 + $0x170] sm:$0xff]
    %v827 = vld [vmem:[#allocation4 + $0x178] sm:$0xff]
    %v828 = vld [vmem:[#allocation4 + $0x180] sm:$0xff]
    %v829 = vld [vmem:[#allocation4 + $0x188] sm:$0xff]
    %v830 = vld [vmem:[#allocation4 + $0x190] sm:$0xff]
    %v831 = vld [vmem:[#allocation4 + $0x198] sm:$0xff]
    %v832 = vld [vmem:[#allocation4 + $0x1a0] sm:$0xff]
    %v833 = vld [vmem:[#allocation4 + $0x1a8] sm:$0xff]
    %v834 = vld [vmem:[#allocation4 + $0x1b0] sm:$0xff]
    %v835 = vld [vmem:[#allocation4 + $0x1b8] sm:$0xff]
    %v836 = vld [vmem:[#allocation4 + $0x1c0] sm:$0xff]
    %v837 = vld [vmem:[#allocation4 + $0x1c8] sm:$0xff]
    %v838 = vld [vmem:[#allocation4 + $0x1d0] sm:$0xff]
    %v839 = vld [vmem:[#allocation4 + $0x1d8] sm:$0xff]
    %v840 = vld [vmem:[#allocation4 + $0x1e0] sm:$0xff]
    %v841 = vld [vmem:[#allocation4 + $0x1e8] sm:$0xff]
    %v842 = vld [vmem:[#allocation4 + $0x1f0] sm:$0xff]
    %v843 = vld [vmem:[#allocation4 + $0x1f8] sm:$0xff]
    %v844 = vld [vmem:[#allocation4 + $0x200] sm:$0xff]
    %v845 = vld [vmem:[#allocation4 + $0x208] sm:$0xff]
    %v846 = vld [vmem:[#allocation4 + $0x210] sm:$0xff]
    %v847 = vld [vmem:[#allocation4 + $0x218] sm:$0xff]
    %v848 = vld [vmem:[#allocation4 + $0x220] sm:$0xff]
    %v849 = vld [vmem:[#allocation4 + $0x228] sm:$0xff]
    %v850 = vld [vmem:[#allocation4 + $0x230] sm:$0xff]
    %v851 = vld [vmem:[#allocation4 + $0x238] sm:$0xff]
    %v852 = vld [vmem:[#allocation4 + $0x240] sm:$0xff]
    %v853 = vld [vmem:[#allocation4 + $0x248] sm:$0xff]
    %v854 = vld [vmem:[#allocation4 + $0x250] sm:$0xff]
    %v855 = vld [vmem:[#allocation4 + $0x258] sm:$0xff]
    %v856 = vld [vmem:[#allocation4 + $0x260] sm:$0xff]
    %v857 = vld [vmem:[#allocation4 + $0x268] sm:$0xff]
    %v858 = vld [vmem:[#allocation4 + $0x270] sm:$0xff]
    %v859 = vld [vmem:[#allocation4 + $0x278] sm:$0xff]
    %v860 = vld [vmem:[#allocation4 + $0x280] sm:$0xff]
    %v861 = vld [vmem:[#allocation4 + $0x288] sm:$0xff]
    %v862 = vld [vmem:[#allocation4 + $0x290] sm:$0xff]
    %v863 = vld [vmem:[#allocation4 + $0x298] sm:$0xff]
    %v864 = vld [vmem:[#allocation4 + $0x2a0] sm:$0xff]
    %v865 = vld [vmem:[#allocation4 + $0x2a8] sm:$0xff]
    %v866 = vld [vmem:[#allocation4 + $0x2b0] sm:$0xff]
    %v867 = vld [vmem:[#allocation4 + $0x2b8] sm:$0xff]
    %v868 = vld [vmem:[#allocation4 + $0x2c0] sm:$0xff]
    %v869 = vld [vmem:[#allocation4 + $0x2c8] sm:$0xff]
    %v870 = vld [vmem:[#allocation4 + $0x2d0] sm:$0xff]
    %v871 = vld [vmem:[#allocation4 + $0x2d8] sm:$0xff]
    %v872 = vld [vmem:[#allocation4 + $0x2e0] sm:$0xff]
    %v873 = vld [vmem:[#allocation4 + $0x2e8] sm:$0xff]
    %v874 = vld [vmem:[#allocation4 + $0x2f0] sm:$0xff]
    %v875 = vld [vmem:[#allocation4 + $0x2f8] sm:$0xff]
    %v876 = vld [vmem:[#allocation4 + $0x300] sm:$0xff]
    %v877 = vld [vmem:[#allocation4 + $0x308] sm:$0xff]
    %v878 = vld [vmem:[#allocation4 + $0x310] sm:$0xff]
    %v879 = vld [vmem:[#allocation4 + $0x318] sm:$0xff]
    %v880 = vld [vmem:[#allocation4 + $0x320] sm:$0xff]
    %v881 = vld [vmem:[#allocation4 + $0x328] sm:$0xff]
    %v882 = vld [vmem:[#allocation4 + $0x330] sm:$0xff]
    %v883 = vld [vmem:[#allocation4 + $0x338] sm:$0xff]
    %v884 = vld [vmem:[#allocation4 + $0x340] sm:$0xff]
    %v885 = vld [vmem:[#allocation4 + $0x348] sm:$0xff]
    %v886 = vld [vmem:[#allocation4 + $0x350] sm:$0xff]
    %v887 = vld [vmem:[#allocation4 + $0x358] sm:$0xff]
    %v888 = vld [vmem:[#allocation4 + $0x360] sm:$0xff]
    %v889 = vld [vmem:[#allocation4 + $0x368] sm:$0xff]
    %v890 = vld [vmem:[#allocation4 + $0x370] sm:$0xff]
    %v891 = vld [vmem:[#allocation4 + $0x378] sm:$0xff]
    %v892 = vld [vmem:[#allocation4 + $0x380] sm:$0xff]
    %v893 = vld [vmem:[#allocation4 + $0x388] sm:$0xff]
    %v894 = vld [vmem:[#allocation4 + $0x390] sm:$0xff]
    %v895 = vld [vmem:[#allocation4 + $0x398] sm:$0xff]
    %v896 = vld [vmem:[#allocation4 + $0x3a0] sm:$0xff]
    %v897 = vld [vmem:[#allocation4 + $0x3a8] sm:$0xff]
    %v898 = vld [vmem:[#allocation4 + $0x3b0] sm:$0xff]
    %v899 = vld [vmem:[#allocation4 + $0x3b8] sm:$0xff]
    %v900 = vld [vmem:[#allocation4 + $0x3c0] sm:$0xff]
    %v901 = vld [vmem:[#allocation4 + $0x3c8] sm:$0xff]
    %v902 = vld [vmem:[#allocation4 + $0x3d0] sm:$0xff]
    %v903 = vld [vmem:[#allocation4 + $0x3d8] sm:$0xff]
    %v904 = vld [vmem:[#allocation4 + $0x3e0] sm:$0xff]
    %v905 = vld [vmem:[#allocation4 + $0x3e8] sm:$0xff]
    %v906 = vld [vmem:[#allocation4 + $0x3f0] sm:$0xff]
    %v907 = vld [vmem:[#allocation4 + $0x3f8] sm:$0xff]
    %v908 = vld [vmem:[#allocation4 + $0x400] sm:$0xff]
    %v909 = vld [vmem:[#allocation4 + $0x408] sm:$0xff]
    %v910 = vld [vmem:[#allocation4 + $0x410] sm:$0xff]
    %v911 = vld [vmem:[#allocation4 + $0x418] sm:$0xff]
    %v912 = vld [vmem:[#allocation4 + $0x420] sm:$0xff]
    %v913 = vld [vmem:[#allocation4 + $0x428] sm:$0xff]
    %v914 = vld [vmem:[#allocation4 + $0x430] sm:$0xff]
    %v915 = vld [vmem:[#allocation4 + $0x438] sm:$0xff]
    %v916 = vld [vmem:[#allocation4 + $0x440] sm:$0xff]
    %v917 = vld [vmem:[#allocation4 + $0x448] sm:$0xff]
    %v918 = vld [vmem:[#allocation4 + $0x450] sm:$0xff]
    %v919 = vld [vmem:[#allocation4 + $0x458] sm:$0xff]
    %v920 = vld [vmem:[#allocation4 + $0x460] sm:$0xff]
    %v921 = vld [vmem:[#allocation4 + $0x468] sm:$0xff]
    %v922 = vld [vmem:[#allocation4 + $0x470] sm:$0xff]
    %v923 = vld [vmem:[#allocation4 + $0x478] sm:$0xff]
    %v924 = vld [vmem:[#allocation4 + $0x480] sm:$0xff]
    %v925 = vld [vmem:[#allocation4 + $0x488] sm:$0xff]
    %v926 = vld [vmem:[#allocation4 + $0x490] sm:$0xff]
    %v927 = vld [vmem:[#allocation4 + $0x498] sm:$0xff]
    %v928 = vld [vmem:[#allocation4 + $0x4a0] sm:$0xff]
    %v929 = vld [vmem:[#allocation4 + $0x4a8] sm:$0xff]
    %v930 = vld [vmem:[#allocation4 + $0x4b0] sm:$0xff]
    %v931 = vld [vmem:[#allocation4 + $0x4b8] sm:$0xff]
    %v932 = vld [vmem:[#allocation4 + $0x4c0] sm:$0xff]
    %v933 = vld [vmem:[#allocation4 + $0x4c8] sm:$0xff]
    %v934 = vld [vmem:[#allocation4 + $0x4d0] sm:$0xff]
    %v935 = vld [vmem:[#allocation4 + $0x4d8] sm:$0xff]
    %v936 = vld [vmem:[#allocation4 + $0x4e0] sm:$0xff]
    %v937 = vld [vmem:[#allocation4 + $0x4e8] sm:$0xff]
    %v938 = vld [vmem:[#allocation4 + $0x4f0] sm:$0xff]
    %v939 = vld [vmem:[#allocation4 + $0x4f8] sm:$0xff]
    %v940 = vld [vmem:[#allocation4 + $0x500] sm:$0xff]
    %v941 = vld [vmem:[#allocation4 + $0x508] sm:$0xff]
    %v942 = vld [vmem:[#allocation4 + $0x510] sm:$0xff]
    %v943 = vld [vmem:[#allocation4 + $0x518] sm:$0xff]
    %v944 = vld [vmem:[#allocation4 + $0x520] sm:$0xff]
    %v945 = vld [vmem:[#allocation4 + $0x528] sm:$0xff]
    %v946 = vld [vmem:[#allocation4 + $0x530] sm:$0xff]
    %v947 = vld [vmem:[#allocation4 + $0x538] sm:$0xff]
    %v948 = vld [vmem:[#allocation4 + $0x540] sm:$0xff]
    %v949 = vld [vmem:[#allocation4 + $0x548] sm:$0xff]
    %v950 = vld [vmem:[#allocation4 + $0x550] sm:$0xff]
    %v951 = vld [vmem:[#allocation4 + $0x558] sm:$0xff]
    %v952 = vld [vmem:[#allocation4 + $0x560] sm:$0xff]
    %v953 = vld [vmem:[#allocation4 + $0x568] sm:$0xff]
    %v954 = vld [vmem:[#allocation4 + $0x570] sm:$0xff]
    %v955 = vld [vmem:[#allocation4 + $0x578] sm:$0xff]
    %v956 = vld [vmem:[#allocation4 + $0x580] sm:$0xff]
    %v957 = vld [vmem:[#allocation4 + $0x588] sm:$0xff]
    %v958 = vld [vmem:[#allocation4 + $0x590] sm:$0xff]
    %v959 = vld [vmem:[#allocation4 + $0x598] sm:$0xff]
    %v960 = vld [vmem:[#allocation4 + $0x5a0] sm:$0xff]
    %v961 = vld [vmem:[#allocation4 + $0x5a8] sm:$0xff]
    %v962 = vld [vmem:[#allocation4 + $0x5b0] sm:$0xff]
    %v963 = vld [vmem:[#allocation4 + $0x5b8] sm:$0xff]
    %v964 = vld [vmem:[#allocation4 + $0x5c0] sm:$0xff]
    %v965 = vld [vmem:[#allocation4 + $0x5c8] sm:$0xff]
    %v966 = vld [vmem:[#allocation4 + $0x5d0] sm:$0xff]
    %v967 = vld [vmem:[#allocation4 + $0x5d8] sm:$0xff]
    %v968 = vld [vmem:[#allocation4 + $0x5e0] sm:$0xff]
    %v969 = vld [vmem:[#allocation4 + $0x5e8] sm:$0xff]
    %v970 = vld [vmem:[#allocation4 + $0x5f0] sm:$0xff]
    %v971 = vld [vmem:[#allocation4 + $0x5f8] sm:$0xff]
    %v972 = vld [vmem:[#allocation4 + $0x600] sm:$0xff]
    %v973 = vld [vmem:[#allocation4 + $0x608] sm:$0xff]
    %v974 = vld [vmem:[#allocation4 + $0x610] sm:$0xff]
    %v975 = vld [vmem:[#allocation4 + $0x618] sm:$0xff]
    %v976 = vld [vmem:[#allocation4 + $0x620] sm:$0xff]
    %v977 = vld [vmem:[#allocation4 + $0x628] sm:$0xff]
    %v978 = vld [vmem:[#allocation4 + $0x630] sm:$0xff]
    %v979 = vld [vmem:[#allocation4 + $0x638] sm:$0xff]
    %v980 = vld [vmem:[#allocation4 + $0x640] sm:$0xff]
    %v981 = vld [vmem:[#allocation4 + $0x648] sm:$0xff]
    %v982 = vld [vmem:[#allocation4 + $0x650] sm:$0xff]
    %v983 = vld [vmem:[#allocation4 + $0x658] sm:$0xff]
    %v984 = vld [vmem:[#allocation4 + $0x660] sm:$0xff]
    %v985 = vld [vmem:[#allocation4 + $0x668] sm:$0xff]
    %v986 = vld [vmem:[#allocation4 + $0x670] sm:$0xff]
    %v987 = vld [vmem:[#allocation4 + $0x678] sm:$0xff]
    %v988 = vld [vmem:[#allocation4 + $0x680] sm:$0xff]
    %v989 = vld [vmem:[#allocation4 + $0x688] sm:$0xff]
    %v990 = vld [vmem:[#allocation4 + $0x690] sm:$0xff]
    %v991 = vld [vmem:[#allocation4 + $0x698] sm:$0xff]
    %v992 = vld [vmem:[#allocation4 + $0x6a0] sm:$0xff]
    %v993 = vld [vmem:[#allocation4 + $0x6a8] sm:$0xff]
    %v994 = vld [vmem:[#allocation4 + $0x6b0] sm:$0xff]
    %v995 = vld [vmem:[#allocation4 + $0x6b8] sm:$0xff]
    %v996 = vld [vmem:[#allocation4 + $0x6c0] sm:$0xff]
    %v997 = vld [vmem:[#allocation4 + $0x6c8] sm:$0xff]
    %v998 = vld [vmem:[#allocation4 + $0x6d0] sm:$0xff]
    %v999 = vld [vmem:[#allocation4 + $0x6d8] sm:$0xff]
    %v1000 = vld [vmem:[#allocation4 + $0x6e0] sm:$0xff]
    %v1001 = vld [vmem:[#allocation4 + $0x6e8] sm:$0xff]
    %v1002 = vld [vmem:[#allocation4 + $0x6f0] sm:$0xff]
    %v1003 = vld [vmem:[#allocation4 + $0x6f8] sm:$0xff]
    %v1004 = vld [vmem:[%s4] sm:$0xf]
    %v1006 = vlaneseq
    %v1007 = vshrl.u32 %v1006, 7
    %v1008 = vsub.s32 0, %v1007
    %v1009 = vrot.slane %v1004, %v1008
    %v1010 = vlaneseq
    %v1011 = vshrl.u32 %v1010, 7
    %v1012 = vsub.s32 1, %v1011
    %v1013 = vrot.slane %v1004, %v1012
    %v1014 = vlaneseq
    %v1015 = vshrl.u32 %v1014, 7
    %v1016 = vsub.s32 2, %v1015
    %v1017 = vrot.slane %v1004, %v1016
    %v1018 = vlaneseq
    %v1019 = vshrl.u32 %v1018, 7
    %v1020 = vsub.s32 3, %v1019
    %v1021 = vrot.slane %v1004, %v1020
    %v1250 = vunpack.c.l.b16 %v780
    %v1251 = vunpack.c.h.b16 %v780
    %v1252 = vunpack.c.l.b16 %v781
    %v1253 = vunpack.c.h.b16 %v781
    %v1254 = vunpack.c.l.b16 %v782
    %v1255 = vunpack.c.h.b16 %v782
    %v1256 = vunpack.c.l.b16 %v783
    %v1257 = vunpack.c.h.b16 %v783
    %v1258 = vunpack.c.l.b16 %v784
    %v1259 = vunpack.c.h.b16 %v784
    %v1260 = vunpack.c.l.b16 %v785
    %v1261 = vunpack.c.h.b16 %v785
    %v1262 = vunpack.c.l.b16 %v786
    %v1263 = vunpack.c.h.b16 %v786
    %v1264 = vunpack.c.l.b16 %v787
    %v1265 = vunpack.c.h.b16 %v787
    %v1266 = vunpack.c.l.b16 %v788
    %v1267 = vunpack.c.h.b16 %v788
    %v1268 = vunpack.c.l.b16 %v789
    %v1269 = vunpack.c.h.b16 %v789
    %v1270 = vunpack.c.l.b16 %v790
    %v1271 = vunpack.c.h.b16 %v790
    %v1272 = vunpack.c.l.b16 %v791
    %v1273 = vunpack.c.h.b16 %v791
    %v1274 = vunpack.c.l.b16 %v792
    %v1275 = vunpack.c.h.b16 %v792
    %v1276 = vunpack.c.l.b16 %v793
    %v1277 = vunpack.c.h.b16 %v793
    %v1278 = vunpack.c.l.b16 %v794
    %v1279 = vunpack.c.h.b16 %v794
    %v1280 = vunpack.c.l.b16 %v795
    %v1281 = vunpack.c.h.b16 %v795
    %v1282 = vunpack.c.l.b16 %v796
    %v1283 = vunpack.c.h.b16 %v796
    %v1284 = vunpack.c.l.b16 %v797
    %v1285 = vunpack.c.h.b16 %v797
    %v1286 = vunpack.c.l.b16 %v798
    %v1287 = vunpack.c.h.b16 %v798
    %v1288 = vunpack.c.l.b16 %v799
    %v1289 = vunpack.c.h.b16 %v799
    %v1290 = vunpack.c.l.b16 %v800
    %v1291 = vunpack.c.h.b16 %v800
    %v1292 = vunpack.c.l.b16 %v801
    %v1293 = vunpack.c.h.b16 %v801
    %v1294 = vunpack.c.l.b16 %v802
    %v1295 = vunpack.c.h.b16 %v802
    %v1296 = vunpack.c.l.b16 %v803
    %v1297 = vunpack.c.h.b16 %v803
    %v1298 = vunpack.c.l.b16 %v804
    %v1299 = vunpack.c.h.b16 %v804
    %v1300 = vunpack.c.l.b16 %v805
    %v1301 = vunpack.c.h.b16 %v805
    %v1302 = vunpack.c.l.b16 %v806
    %v1303 = vunpack.c.h.b16 %v806
    %v1304 = vunpack.c.l.b16 %v807
    %v1305 = vunpack.c.h.b16 %v807
    %v1306 = vunpack.c.l.b16 %v808
    %v1307 = vunpack.c.h.b16 %v808
    %v1308 = vunpack.c.l.b16 %v809
    %v1309 = vunpack.c.h.b16 %v809
    %v1310 = vunpack.c.l.b16 %v810
    %v1311 = vunpack.c.h.b16 %v810
    %v1312 = vunpack.c.l.b16 %v811
    %v1313 = vunpack.c.h.b16 %v811
    %v1314 = vunpack.c.l.b16 %v812
    %v1315 = vunpack.c.h.b16 %v812
    %v1316 = vunpack.c.l.b16 %v813
    %v1317 = vunpack.c.h.b16 %v813
    %v1318 = vunpack.c.l.b16 %v814
    %v1319 = vunpack.c.h.b16 %v814
    %v1320 = vunpack.c.l.b16 %v815
    %v1321 = vunpack.c.h.b16 %v815
    %v1322 = vunpack.c.l.b16 %v816
    %v1323 = vunpack.c.h.b16 %v816
    %v1324 = vunpack.c.l.b16 %v817
    %v1325 = vunpack.c.h.b16 %v817
    %v1326 = vunpack.c.l.b16 %v818
    %v1327 = vunpack.c.h.b16 %v818
    %v1328 = vunpack.c.l.b16 %v819
    %v1329 = vunpack.c.h.b16 %v819
    %v1330 = vunpack.c.l.b16 %v820
    %v1331 = vunpack.c.h.b16 %v820
    %v1332 = vunpack.c.l.b16 %v821
    %v1333 = vunpack.c.h.b16 %v821
    %v1334 = vunpack.c.l.b16 %v822
    %v1335 = vunpack.c.h.b16 %v822
    %v1336 = vunpack.c.l.b16 %v823
    %v1337 = vunpack.c.h.b16 %v823
    %v1338 = vunpack.c.l.b16 %v824
    %v1339 = vunpack.c.h.b16 %v824
    %v1340 = vunpack.c.l.b16 %v825
    %v1341 = vunpack.c.h.b16 %v825
    %v1342 = vunpack.c.l.b16 %v826
    %v1343 = vunpack.c.h.b16 %v826
    %v1344 = vunpack.c.l.b16 %v827
    %v1345 = vunpack.c.h.b16 %v827
    %v1346 = vunpack.c.l.b16 %v828
    %v1347 = vunpack.c.h.b16 %v828
    %v1348 = vunpack.c.l.b16 %v829
    %v1349 = vunpack.c.h.b16 %v829
    %v1350 = vunpack.c.l.b16 %v830
    %v1351 = vunpack.c.h.b16 %v830
    %v1352 = vunpack.c.l.b16 %v831
    %v1353 = vunpack.c.h.b16 %v831
    %v1354 = vunpack.c.l.b16 %v832
    %v1355 = vunpack.c.h.b16 %v832
    %v1356 = vunpack.c.l.b16 %v833
    %v1357 = vunpack.c.h.b16 %v833
    %v1358 = vunpack.c.l.b16 %v834
    %v1359 = vunpack.c.h.b16 %v834
    %v1360 = vunpack.c.l.b16 %v835
    %v1361 = vunpack.c.h.b16 %v835
    %v1362 = vunpack.c.l.b16 %v836
    %v1363 = vunpack.c.h.b16 %v836
    %v1364 = vunpack.c.l.b16 %v837
    %v1365 = vunpack.c.h.b16 %v837
    %v1366 = vunpack.c.l.b16 %v838
    %v1367 = vunpack.c.h.b16 %v838
    %v1368 = vunpack.c.l.b16 %v839
    %v1369 = vunpack.c.h.b16 %v839
    %v1370 = vunpack.c.l.b16 %v840
    %v1371 = vunpack.c.h.b16 %v840
    %v1372 = vunpack.c.l.b16 %v841
    %v1373 = vunpack.c.h.b16 %v841
    %v1374 = vunpack.c.l.b16 %v842
    %v1375 = vunpack.c.h.b16 %v842
    %v1376 = vunpack.c.l.b16 %v843
    %v1377 = vunpack.c.h.b16 %v843
    %v1378 = vunpack.c.l.b16 %v844
    %v1379 = vunpack.c.h.b16 %v844
    %v1380 = vunpack.c.l.b16 %v845
    %v1381 = vunpack.c.h.b16 %v845
    %v1382 = vunpack.c.l.b16 %v846
    %v1383 = vunpack.c.h.b16 %v846
    %v1384 = vunpack.c.l.b16 %v847
    %v1385 = vunpack.c.h.b16 %v847
    %v1386 = vunpack.c.l.b16 %v848
    %v1387 = vunpack.c.h.b16 %v848
    %v1388 = vunpack.c.l.b16 %v849
    %v1389 = vunpack.c.h.b16 %v849
    %v1390 = vunpack.c.l.b16 %v850
    %v1391 = vunpack.c.h.b16 %v850
    %v1392 = vunpack.c.l.b16 %v851
    %v1393 = vunpack.c.h.b16 %v851
    %v1394 = vunpack.c.l.b16 %v852
    %v1395 = vunpack.c.h.b16 %v852
    %v1396 = vunpack.c.l.b16 %v853
    %v1397 = vunpack.c.h.b16 %v853
    %v1398 = vunpack.c.l.b16 %v854
    %v1399 = vunpack.c.h.b16 %v854
    %v1400 = vunpack.c.l.b16 %v855
    %v1401 = vunpack.c.h.b16 %v855
    %v1402 = vunpack.c.l.b16 %v856
    %v1403 = vunpack.c.h.b16 %v856
    %v1404 = vunpack.c.l.b16 %v857
    %v1405 = vunpack.c.h.b16 %v857
    %v1406 = vunpack.c.l.b16 %v858
    %v1407 = vunpack.c.h.b16 %v858
    %v1408 = vunpack.c.l.b16 %v859
    %v1409 = vunpack.c.h.b16 %v859
    %v1410 = vunpack.c.l.b16 %v860
    %v1411 = vunpack.c.h.b16 %v860
    %v1412 = vunpack.c.l.b16 %v861
    %v1413 = vunpack.c.h.b16 %v861
    %v1414 = vunpack.c.l.b16 %v862
    %v1415 = vunpack.c.h.b16 %v862
    %v1416 = vunpack.c.l.b16 %v863
    %v1417 = vunpack.c.h.b16 %v863
    %v1418 = vunpack.c.l.b16 %v864
    %v1419 = vunpack.c.h.b16 %v864
    %v1420 = vunpack.c.l.b16 %v865
    %v1421 = vunpack.c.h.b16 %v865
    %v1422 = vunpack.c.l.b16 %v866
    %v1423 = vunpack.c.h.b16 %v866
    %v1424 = vunpack.c.l.b16 %v867
    %v1425 = vunpack.c.h.b16 %v867
    %v1426 = vunpack.c.l.b16 %v868
    %v1427 = vunpack.c.h.b16 %v868
    %v1428 = vunpack.c.l.b16 %v869
    %v1429 = vunpack.c.h.b16 %v869
    %v1430 = vunpack.c.l.b16 %v870
    %v1431 = vunpack.c.h.b16 %v870
    %v1432 = vunpack.c.l.b16 %v871
    %v1433 = vunpack.c.h.b16 %v871
    %v1434 = vunpack.c.l.b16 %v872
    %v1435 = vunpack.c.h.b16 %v872
    %v1436 = vunpack.c.l.b16 %v873
    %v1437 = vunpack.c.h.b16 %v873
    %v1438 = vunpack.c.l.b16 %v874
    %v1439 = vunpack.c.h.b16 %v874
    %v1440 = vunpack.c.l.b16 %v875
    %v1441 = vunpack.c.h.b16 %v875
    %v1442 = vunpack.c.l.b16 %v876
    %v1443 = vunpack.c.h.b16 %v876
    %v1444 = vunpack.c.l.b16 %v877
    %v1445 = vunpack.c.h.b16 %v877
    %v1446 = vunpack.c.l.b16 %v878
    %v1447 = vunpack.c.h.b16 %v878
    %v1448 = vunpack.c.l.b16 %v879
    %v1449 = vunpack.c.h.b16 %v879
    %v1450 = vunpack.c.l.b16 %v880
    %v1451 = vunpack.c.h.b16 %v880
    %v1452 = vunpack.c.l.b16 %v881
    %v1453 = vunpack.c.h.b16 %v881
    %v1454 = vunpack.c.l.b16 %v882
    %v1455 = vunpack.c.h.b16 %v882
    %v1456 = vunpack.c.l.b16 %v883
    %v1457 = vunpack.c.h.b16 %v883
    %v1458 = vunpack.c.l.b16 %v884
    %v1459 = vunpack.c.h.b16 %v884
    %v1460 = vunpack.c.l.b16 %v885
    %v1461 = vunpack.c.h.b16 %v885
    %v1462 = vunpack.c.l.b16 %v886
    %v1463 = vunpack.c.h.b16 %v886
    %v1464 = vunpack.c.l.b16 %v887
    %v1465 = vunpack.c.h.b16 %v887
    %v1466 = vunpack.c.l.b16 %v888
    %v1467 = vunpack.c.h.b16 %v888
    %v1468 = vunpack.c.l.b16 %v889
    %v1469 = vunpack.c.h.b16 %v889
    %v1470 = vunpack.c.l.b16 %v890
    %v1471 = vunpack.c.h.b16 %v890
    %v1472 = vunpack.c.l.b16 %v891
    %v1473 = vunpack.c.h.b16 %v891
    %v1474 = vunpack.c.l.b16 %v892
    %v1475 = vunpack.c.h.b16 %v892
    %v1476 = vunpack.c.l.b16 %v893
    %v1477 = vunpack.c.h.b16 %v893
    %v1478 = vunpack.c.l.b16 %v894
    %v1479 = vunpack.c.h.b16 %v894
    %v1480 = vunpack.c.l.b16 %v895
    %v1481 = vunpack.c.h.b16 %v895
    %v1482 = vunpack.c.l.b16 %v896
    %v1483 = vunpack.c.h.b16 %v896
    %v1484 = vunpack.c.l.b16 %v897
    %v1485 = vunpack.c.h.b16 %v897
    %v1486 = vunpack.c.l.b16 %v898
    %v1487 = vunpack.c.h.b16 %v898
    %v1488 = vunpack.c.l.b16 %v899
    %v1489 = vunpack.c.h.b16 %v899
    %v1490 = vunpack.c.l.b16 %v900
    %v1491 = vunpack.c.h.b16 %v900
    %v1492 = vunpack.c.l.b16 %v901
    %v1493 = vunpack.c.h.b16 %v901
    %v1494 = vunpack.c.l.b16 %v902
    %v1495 = vunpack.c.h.b16 %v902
    %v1496 = vunpack.c.l.b16 %v903
    %v1497 = vunpack.c.h.b16 %v903
    %v1498 = vunpack.c.l.b16 %v904
    %v1499 = vunpack.c.h.b16 %v904
    %v1500 = vunpack.c.l.b16 %v905
    %v1501 = vunpack.c.h.b16 %v905
    %v1502 = vunpack.c.l.b16 %v906
    %v1503 = vunpack.c.h.b16 %v906
    %v1504 = vunpack.c.l.b16 %v907
    %v1505 = vunpack.c.h.b16 %v907
    %v1506 = vunpack.c.l.b16 %v908
    %v1507 = vunpack.c.h.b16 %v908
    %v1508 = vunpack.c.l.b16 %v909
    %v1509 = vunpack.c.h.b16 %v909
    %v1510 = vunpack.c.l.b16 %v910
    %v1511 = vunpack.c.h.b16 %v910
    %v1512 = vunpack.c.l.b16 %v911
    %v1513 = vunpack.c.h.b16 %v911
    %v1514 = vunpack.c.l.b16 %v912
    %v1515 = vunpack.c.h.b16 %v912
    %v1516 = vunpack.c.l.b16 %v913
    %v1517 = vunpack.c.h.b16 %v913
    %v1518 = vunpack.c.l.b16 %v914
    %v1519 = vunpack.c.h.b16 %v914
    %v1520 = vunpack.c.l.b16 %v915
    %v1521 = vunpack.c.h.b16 %v915
    %v1522 = vunpack.c.l.b16 %v916
    %v1523 = vunpack.c.h.b16 %v916
    %v1524 = vunpack.c.l.b16 %v917
    %v1525 = vunpack.c.h.b16 %v917
    %v1526 = vunpack.c.l.b16 %v918
    %v1527 = vunpack.c.h.b16 %v918
    %v1528 = vunpack.c.l.b16 %v919
    %v1529 = vunpack.c.h.b16 %v919
    %v1530 = vunpack.c.l.b16 %v920
    %v1531 = vunpack.c.h.b16 %v920
    %v1532 = vunpack.c.l.b16 %v921
    %v1533 = vunpack.c.h.b16 %v921
    %v1534 = vunpack.c.l.b16 %v922
    %v1535 = vunpack.c.h.b16 %v922
    %v1536 = vunpack.c.l.b16 %v923
    %v1537 = vunpack.c.h.b16 %v923
    %v1538 = vunpack.c.l.b16 %v924
    %v1539 = vunpack.c.h.b16 %v924
    %v1540 = vunpack.c.l.b16 %v925
    %v1541 = vunpack.c.h.b16 %v925
    %v1542 = vunpack.c.l.b16 %v926
    %v1543 = vunpack.c.h.b16 %v926
    %v1544 = vunpack.c.l.b16 %v927
    %v1545 = vunpack.c.h.b16 %v927
    %v1546 = vunpack.c.l.b16 %v928
    %v1547 = vunpack.c.h.b16 %v928
    %v1548 = vunpack.c.l.b16 %v929
    %v1549 = vunpack.c.h.b16 %v929
    %v1550 = vunpack.c.l.b16 %v930
    %v1551 = vunpack.c.h.b16 %v930
    %v1552 = vunpack.c.l.b16 %v931
    %v1553 = vunpack.c.h.b16 %v931
    %v1554 = vunpack.c.l.b16 %v932
    %v1555 = vunpack.c.h.b16 %v932
    %v1556 = vunpack.c.l.b16 %v933
    %v1557 = vunpack.c.h.b16 %v933
    %v1558 = vunpack.c.l.b16 %v934
    %v1559 = vunpack.c.h.b16 %v934
    %v1560 = vunpack.c.l.b16 %v935
    %v1561 = vunpack.c.h.b16 %v935
    %v1562 = vunpack.c.l.b16 %v936
    %v1563 = vunpack.c.h.b16 %v936
    %v1564 = vunpack.c.l.b16 %v937
    %v1565 = vunpack.c.h.b16 %v937
    %v1566 = vunpack.c.l.b16 %v938
    %v1567 = vunpack.c.h.b16 %v938
    %v1568 = vunpack.c.l.b16 %v939
    %v1569 = vunpack.c.h.b16 %v939
    %v1570 = vunpack.c.l.b16 %v940
    %v1571 = vunpack.c.h.b16 %v940
    %v1572 = vunpack.c.l.b16 %v941
    %v1573 = vunpack.c.h.b16 %v941
    %v1574 = vunpack.c.l.b16 %v942
    %v1575 = vunpack.c.h.b16 %v942
    %v1576 = vunpack.c.l.b16 %v943
    %v1577 = vunpack.c.h.b16 %v943
    %v1578 = vunpack.c.l.b16 %v944
    %v1579 = vunpack.c.h.b16 %v944
    %v1580 = vunpack.c.l.b16 %v945
    %v1581 = vunpack.c.h.b16 %v945
    %v1582 = vunpack.c.l.b16 %v946
    %v1583 = vunpack.c.h.b16 %v946
    %v1584 = vunpack.c.l.b16 %v947
    %v1585 = vunpack.c.h.b16 %v947
    %v1586 = vunpack.c.l.b16 %v948
    %v1587 = vunpack.c.h.b16 %v948
    %v1588 = vunpack.c.l.b16 %v949
    %v1589 = vunpack.c.h.b16 %v949
    %v1590 = vunpack.c.l.b16 %v950
    %v1591 = vunpack.c.h.b16 %v950
    %v1592 = vunpack.c.l.b16 %v951
    %v1593 = vunpack.c.h.b16 %v951
    %v1594 = vunpack.c.l.b16 %v952
    %v1595 = vunpack.c.h.b16 %v952
    %v1596 = vunpack.c.l.b16 %v953
    %v1597 = vunpack.c.h.b16 %v953
    %v1598 = vunpack.c.l.b16 %v954
    %v1599 = vunpack.c.h.b16 %v954
    %v1600 = vunpack.c.l.b16 %v955
    %v1601 = vunpack.c.h.b16 %v955
    %v1602 = vunpack.c.l.b16 %v956
    %v1603 = vunpack.c.h.b16 %v956
    %v1604 = vunpack.c.l.b16 %v957
    %v1605 = vunpack.c.h.b16 %v957
    %v1606 = vunpack.c.l.b16 %v958
    %v1607 = vunpack.c.h.b16 %v958
    %v1608 = vunpack.c.l.b16 %v959
    %v1609 = vunpack.c.h.b16 %v959
    %v1610 = vunpack.c.l.b16 %v960
    %v1611 = vunpack.c.h.b16 %v960
    %v1612 = vunpack.c.l.b16 %v961
    %v1613 = vunpack.c.h.b16 %v961
    %v1614 = vunpack.c.l.b16 %v962
    %v1615 = vunpack.c.h.b16 %v962
    %v1616 = vunpack.c.l.b16 %v963
    %v1617 = vunpack.c.h.b16 %v963
    %v1618 = vunpack.c.l.b16 %v964
    %v1619 = vunpack.c.h.b16 %v964
    %v1620 = vunpack.c.l.b16 %v965
    %v1621 = vunpack.c.h.b16 %v965
    %v1622 = vunpack.c.l.b16 %v966
    %v1623 = vunpack.c.h.b16 %v966
    %v1624 = vunpack.c.l.b16 %v967
    %v1625 = vunpack.c.h.b16 %v967
    %v1626 = vunpack.c.l.b16 %v968
    %v1627 = vunpack.c.h.b16 %v968
    %v1628 = vunpack.c.l.b16 %v969
    %v1629 = vunpack.c.h.b16 %v969
    %v1630 = vunpack.c.l.b16 %v970
    %v1631 = vunpack.c.h.b16 %v970
    %v1632 = vunpack.c.l.b16 %v971
    %v1633 = vunpack.c.h.b16 %v971
    %v1634 = vunpack.c.l.b16 %v972
    %v1635 = vunpack.c.h.b16 %v972
    %v1636 = vunpack.c.l.b16 %v973
    %v1637 = vunpack.c.h.b16 %v973
    %v1638 = vunpack.c.l.b16 %v974
    %v1639 = vunpack.c.h.b16 %v974
    %v1640 = vunpack.c.l.b16 %v975
    %v1641 = vunpack.c.h.b16 %v975
    %v1642 = vunpack.c.l.b16 %v976
    %v1643 = vunpack.c.h.b16 %v976
    %v1644 = vunpack.c.l.b16 %v977
    %v1645 = vunpack.c.h.b16 %v977
    %v1646 = vunpack.c.l.b16 %v978
    %v1647 = vunpack.c.h.b16 %v978
    %v1648 = vunpack.c.l.b16 %v979
    %v1649 = vunpack.c.h.b16 %v979
    %v1650 = vunpack.c.l.b16 %v980
    %v1651 = vunpack.c.h.b16 %v980
    %v1652 = vunpack.c.l.b16 %v981
    %v1653 = vunpack.c.h.b16 %v981
    %v1654 = vunpack.c.l.b16 %v982
    %v1655 = vunpack.c.h.b16 %v982
    %v1656 = vunpack.c.l.b16 %v983
    %v1657 = vunpack.c.h.b16 %v983
    %v1658 = vunpack.c.l.b16 %v984
    %v1659 = vunpack.c.h.b16 %v984
    %v1660 = vunpack.c.l.b16 %v985
    %v1661 = vunpack.c.h.b16 %v985
    %v1662 = vunpack.c.l.b16 %v986
    %v1663 = vunpack.c.h.b16 %v986
    %v1664 = vunpack.c.l.b16 %v987
    %v1665 = vunpack.c.h.b16 %v987
    %v1666 = vunpack.c.l.b16 %v988
    %v1667 = vunpack.c.h.b16 %v988
    %v1668 = vunpack.c.l.b16 %v989
    %v1669 = vunpack.c.h.b16 %v989
    %v1670 = vunpack.c.l.b16 %v990
    %v1671 = vunpack.c.h.b16 %v990
    %v1672 = vunpack.c.l.b16 %v991
    %v1673 = vunpack.c.h.b16 %v991
    %v1674 = vunpack.c.l.b16 %v992
    %v1675 = vunpack.c.h.b16 %v992
    %v1676 = vunpack.c.l.b16 %v993
    %v1677 = vunpack.c.h.b16 %v993
    %v1678 = vunpack.c.l.b16 %v994
    %v1679 = vunpack.c.h.b16 %v994
    %v1680 = vunpack.c.l.b16 %v995
    %v1681 = vunpack.c.h.b16 %v995
    %v1682 = vunpack.c.l.b16 %v996
    %v1683 = vunpack.c.h.b16 %v996
    %v1684 = vunpack.c.l.b16 %v997
    %v1685 = vunpack.c.h.b16 %v997
    %v1686 = vunpack.c.l.b16 %v998
    %v1687 = vunpack.c.h.b16 %v998
    %v1688 = vunpack.c.l.b16 %v999
    %v1689 = vunpack.c.h.b16 %v999
    %v1690 = vunpack.c.l.b16 %v1000
    %v1691 = vunpack.c.h.b16 %v1000
    %v1692 = vunpack.c.l.b16 %v1001
    %v1693 = vunpack.c.h.b16 %v1001
    %v1694 = vunpack.c.l.b16 %v1002
    %v1695 = vunpack.c.h.b16 %v1002
    %v1696 = vunpack.c.l.b16 %v1003
    %v1697 = vunpack.c.h.b16 %v1003
    %v1698 = vpack.c.b16 %v1254, %v1250
    %v1699 = vpack.c.b16 %v1255, %v1251
    %v1700 = vpack.c.b16 %v1256, %v1252
    %v1701 = vpack.c.b16 %v1257, %v1253
    %v1702 = vpack.c.b16 %v1262, %v1258
    %v1703 = vpack.c.b16 %v1263, %v1259
    %v1704 = vpack.c.b16 %v1264, %v1260
    %v1705 = vpack.c.b16 %v1265, %v1261
    %v1706 = vpack.c.b16 %v1270, %v1266
    %v1707 = vpack.c.b16 %v1271, %v1267
    %v1708 = vpack.c.b16 %v1272, %v1268
    %v1709 = vpack.c.b16 %v1273, %v1269
    %v1710 = vpack.c.b16 %v1278, %v1274
    %v1711 = vpack.c.b16 %v1279, %v1275
    %v1712 = vpack.c.b16 %v1280, %v1276
    %v1713 = vpack.c.b16 %v1281, %v1277
    %v1714 = vpack.c.b16 %v1286, %v1282
    %v1715 = vpack.c.b16 %v1287, %v1283
    %v1716 = vpack.c.b16 %v1288, %v1284
    %v1717 = vpack.c.b16 %v1289, %v1285
    %v1718 = vpack.c.b16 %v1294, %v1290
    %v1719 = vpack.c.b16 %v1295, %v1291
    %v1720 = vpack.c.b16 %v1296, %v1292
    %v1721 = vpack.c.b16 %v1297, %v1293
    %v1722 = vpack.c.b16 %v1302, %v1298
    %v1723 = vpack.c.b16 %v1303, %v1299
    %v1724 = vpack.c.b16 %v1304, %v1300
    %v1725 = vpack.c.b16 %v1305, %v1301
    %v1726 = vpack.c.b16 %v1310, %v1306
    %v1727 = vpack.c.b16 %v1311, %v1307
    %v1728 = vpack.c.b16 %v1312, %v1308
    %v1729 = vpack.c.b16 %v1313, %v1309
    %v1730 = vpack.c.b16 %v1318, %v1314
    %v1731 = vpack.c.b16 %v1319, %v1315
    %v1732 = vpack.c.b16 %v1320, %v1316
    %v1733 = vpack.c.b16 %v1321, %v1317
    %v1734 = vpack.c.b16 %v1326, %v1322
    %v1735 = vpack.c.b16 %v1327, %v1323
    %v1736 = vpack.c.b16 %v1328, %v1324
    %v1737 = vpack.c.b16 %v1329, %v1325
    %v1738 = vpack.c.b16 %v1334, %v1330
    %v1739 = vpack.c.b16 %v1335, %v1331
    %v1740 = vpack.c.b16 %v1336, %v1332
    %v1741 = vpack.c.b16 %v1337, %v1333
    %v1742 = vpack.c.b16 %v1342, %v1338
    %v1743 = vpack.c.b16 %v1343, %v1339
    %v1744 = vpack.c.b16 %v1344, %v1340
    %v1745 = vpack.c.b16 %v1345, %v1341
    %v1746 = vpack.c.b16 %v1350, %v1346
    %v1747 = vpack.c.b16 %v1351, %v1347
    %v1748 = vpack.c.b16 %v1352, %v1348
    %v1749 = vpack.c.b16 %v1353, %v1349
    %v1750 = vpack.c.b16 %v1358, %v1354
    %v1751 = vpack.c.b16 %v1359, %v1355
    %v1752 = vpack.c.b16 %v1360, %v1356
    %v1753 = vpack.c.b16 %v1361, %v1357
    %v1754 = vpack.c.b16 %v1366, %v1362
    %v1755 = vpack.c.b16 %v1367, %v1363
    %v1756 = vpack.c.b16 %v1368, %v1364
    %v1757 = vpack.c.b16 %v1369, %v1365
    %v1758 = vpack.c.b16 %v1374, %v1370
    %v1759 = vpack.c.b16 %v1375, %v1371
    %v1760 = vpack.c.b16 %v1376, %v1372
    %v1761 = vpack.c.b16 %v1377, %v1373
    %v1762 = vpack.c.b16 %v1382, %v1378
    %v1763 = vpack.c.b16 %v1383, %v1379
    %v1764 = vpack.c.b16 %v1384, %v1380
    %v1765 = vpack.c.b16 %v1385, %v1381
    %v1766 = vpack.c.b16 %v1390, %v1386
    %v1767 = vpack.c.b16 %v1391, %v1387
    %v1768 = vpack.c.b16 %v1392, %v1388
    %v1769 = vpack.c.b16 %v1393, %v1389
    %v1770 = vpack.c.b16 %v1398, %v1394
    %v1771 = vpack.c.b16 %v1399, %v1395
    %v1772 = vpack.c.b16 %v1400, %v1396
    %v1773 = vpack.c.b16 %v1401, %v1397
    %v1774 = vpack.c.b16 %v1406, %v1402
    %v1775 = vpack.c.b16 %v1407, %v1403
    %v1776 = vpack.c.b16 %v1408, %v1404
    %v1777 = vpack.c.b16 %v1409, %v1405
    %v1778 = vpack.c.b16 %v1414, %v1410
    %v1779 = vpack.c.b16 %v1415, %v1411
    %v1780 = vpack.c.b16 %v1416, %v1412
    %v1781 = vpack.c.b16 %v1417, %v1413
    %v1782 = vpack.c.b16 %v1422, %v1418
    %v1783 = vpack.c.b16 %v1423, %v1419
    %v1784 = vpack.c.b16 %v1424, %v1420
    %v1785 = vpack.c.b16 %v1425, %v1421
    %v1786 = vpack.c.b16 %v1430, %v1426
    %v1787 = vpack.c.b16 %v1431, %v1427
    %v1788 = vpack.c.b16 %v1432, %v1428
    %v1789 = vpack.c.b16 %v1433, %v1429
    %v1790 = vpack.c.b16 %v1438, %v1434
    %v1791 = vpack.c.b16 %v1439, %v1435
    %v1792 = vpack.c.b16 %v1440, %v1436
    %v1793 = vpack.c.b16 %v1441, %v1437
    %v1794 = vpack.c.b16 %v1446, %v1442
    %v1795 = vpack.c.b16 %v1447, %v1443
    %v1796 = vpack.c.b16 %v1448, %v1444
    %v1797 = vpack.c.b16 %v1449, %v1445
    %v1798 = vpack.c.b16 %v1454, %v1450
    %v1799 = vpack.c.b16 %v1455, %v1451
    %v1800 = vpack.c.b16 %v1456, %v1452
    %v1801 = vpack.c.b16 %v1457, %v1453
    %v1802 = vpack.c.b16 %v1462, %v1458
    %v1803 = vpack.c.b16 %v1463, %v1459
    %v1804 = vpack.c.b16 %v1464, %v1460
    %v1805 = vpack.c.b16 %v1465, %v1461
    %v1806 = vpack.c.b16 %v1470, %v1466
    %v1807 = vpack.c.b16 %v1471, %v1467
    %v1808 = vpack.c.b16 %v1472, %v1468
    %v1809 = vpack.c.b16 %v1473, %v1469
    %v1810 = vpack.c.b16 %v1478, %v1474
    %v1811 = vpack.c.b16 %v1479, %v1475
    %v1812 = vpack.c.b16 %v1480, %v1476
    %v1813 = vpack.c.b16 %v1481, %v1477
    %v1814 = vpack.c.b16 %v1486, %v1482
    %v1815 = vpack.c.b16 %v1487, %v1483
    %v1816 = vpack.c.b16 %v1488, %v1484
    %v1817 = vpack.c.b16 %v1489, %v1485
    %v1818 = vpack.c.b16 %v1494, %v1490
    %v1819 = vpack.c.b16 %v1495, %v1491
    %v1820 = vpack.c.b16 %v1496, %v1492
    %v1821 = vpack.c.b16 %v1497, %v1493
    %v1822 = vpack.c.b16 %v1502, %v1498
    %v1823 = vpack.c.b16 %v1503, %v1499
    %v1824 = vpack.c.b16 %v1504, %v1500
    %v1825 = vpack.c.b16 %v1505, %v1501
    %v1826 = vpack.c.b16 %v1510, %v1506
    %v1827 = vpack.c.b16 %v1511, %v1507
    %v1828 = vpack.c.b16 %v1512, %v1508
    %v1829 = vpack.c.b16 %v1513, %v1509
    %v1830 = vpack.c.b16 %v1518, %v1514
    %v1831 = vpack.c.b16 %v1519, %v1515
    %v1832 = vpack.c.b16 %v1520, %v1516
    %v1833 = vpack.c.b16 %v1521, %v1517
    %v1834 = vpack.c.b16 %v1526, %v1522
    %v1835 = vpack.c.b16 %v1527, %v1523
    %v1836 = vpack.c.b16 %v1528, %v1524
    %v1837 = vpack.c.b16 %v1529, %v1525
    %v1838 = vpack.c.b16 %v1534, %v1530
    %v1839 = vpack.c.b16 %v1535, %v1531
    %v1840 = vpack.c.b16 %v1536, %v1532
    %v1841 = vpack.c.b16 %v1537, %v1533
    %v1842 = vpack.c.b16 %v1542, %v1538
    %v1843 = vpack.c.b16 %v1543, %v1539
    %v1844 = vpack.c.b16 %v1544, %v1540
    %v1845 = vpack.c.b16 %v1545, %v1541
    %v1846 = vpack.c.b16 %v1550, %v1546
    %v1847 = vpack.c.b16 %v1551, %v1547
    %v1848 = vpack.c.b16 %v1552, %v1548
    %v1849 = vpack.c.b16 %v1553, %v1549
    %v1850 = vpack.c.b16 %v1558, %v1554
    %v1851 = vpack.c.b16 %v1559, %v1555
    %v1852 = vpack.c.b16 %v1560, %v1556
    %v1853 = vpack.c.b16 %v1561, %v1557
    %v1854 = vpack.c.b16 %v1566, %v1562
    %v1855 = vpack.c.b16 %v1567, %v1563
    %v1856 = vpack.c.b16 %v1568, %v1564
    %v1857 = vpack.c.b16 %v1569, %v1565
    %v1858 = vpack.c.b16 %v1574, %v1570
    %v1859 = vpack.c.b16 %v1575, %v1571
    %v1860 = vpack.c.b16 %v1576, %v1572
    %v1861 = vpack.c.b16 %v1577, %v1573
    %v1862 = vpack.c.b16 %v1582, %v1578
    %v1863 = vpack.c.b16 %v1583, %v1579
    %v1864 = vpack.c.b16 %v1584, %v1580
    %v1865 = vpack.c.b16 %v1585, %v1581
    %v1866 = vpack.c.b16 %v1590, %v1586
    %v1867 = vpack.c.b16 %v1591, %v1587
    %v1868 = vpack.c.b16 %v1592, %v1588
    %v1869 = vpack.c.b16 %v1593, %v1589
    %v1870 = vpack.c.b16 %v1598, %v1594
    %v1871 = vpack.c.b16 %v1599, %v1595
    %v1872 = vpack.c.b16 %v1600, %v1596
    %v1873 = vpack.c.b16 %v1601, %v1597
    %v1874 = vpack.c.b16 %v1606, %v1602
    %v1875 = vpack.c.b16 %v1607, %v1603
    %v1876 = vpack.c.b16 %v1608, %v1604
    %v1877 = vpack.c.b16 %v1609, %v1605
    %v1878 = vpack.c.b16 %v1614, %v1610
    %v1879 = vpack.c.b16 %v1615, %v1611
    %v1880 = vpack.c.b16 %v1616, %v1612
    %v1881 = vpack.c.b16 %v1617, %v1613
    %v1882 = vpack.c.b16 %v1622, %v1618
    %v1883 = vpack.c.b16 %v1623, %v1619
    %v1884 = vpack.c.b16 %v1624, %v1620
    %v1885 = vpack.c.b16 %v1625, %v1621
    %v1886 = vpack.c.b16 %v1630, %v1626
    %v1887 = vpack.c.b16 %v1631, %v1627
    %v1888 = vpack.c.b16 %v1632, %v1628
    %v1889 = vpack.c.b16 %v1633, %v1629
    %v1890 = vpack.c.b16 %v1638, %v1634
    %v1891 = vpack.c.b16 %v1639, %v1635
    %v1892 = vpack.c.b16 %v1640, %v1636
    %v1893 = vpack.c.b16 %v1641, %v1637
    %v1894 = vpack.c.b16 %v1646, %v1642
    %v1895 = vpack.c.b16 %v1647, %v1643
    %v1896 = vpack.c.b16 %v1648, %v1644
    %v1897 = vpack.c.b16 %v1649, %v1645
    %v1898 = vpack.c.b16 %v1654, %v1650
    %v1899 = vpack.c.b16 %v1655, %v1651
    %v1900 = vpack.c.b16 %v1656, %v1652
    %v1901 = vpack.c.b16 %v1657, %v1653
    %v1902 = vpack.c.b16 %v1662, %v1658
    %v1903 = vpack.c.b16 %v1663, %v1659
    %v1904 = vpack.c.b16 %v1664, %v1660
    %v1905 = vpack.c.b16 %v1665, %v1661
    %v1906 = vpack.c.b16 %v1670, %v1666
    %v1907 = vpack.c.b16 %v1671, %v1667
    %v1908 = vpack.c.b16 %v1672, %v1668
    %v1909 = vpack.c.b16 %v1673, %v1669
    %v1910 = vpack.c.b16 %v1678, %v1674
    %v1911 = vpack.c.b16 %v1679, %v1675
    %v1912 = vpack.c.b16 %v1680, %v1676
    %v1913 = vpack.c.b16 %v1681, %v1677
    %v1914 = vpack.c.b16 %v1686, %v1682
    %v1915 = vpack.c.b16 %v1687, %v1683
    %v1916 = vpack.c.b16 %v1688, %v1684
    %v1917 = vpack.c.b16 %v1689, %v1685
    %v1918 = vpack.c.b16 %v1694, %v1690
    %v1919 = vpack.c.b16 %v1695, %v1691
    %v1920 = vpack.c.b16 %v1696, %v1692
    %v1921 = vpack.c.b16 %v1697, %v1693
    %2146 = vmatprep.subr.bf16.mxu0 %v1727
    %2147 = vmatpush1.bf16.msra.mxu0 %v1726
    %2148 = vmatprep.subr.bf16.mxu0 %v1723
    %2149 = vmatpush1.bf16.msra.mxu0 %v1722
    %2150 = vmatprep.subr.bf16.mxu0 %v1719
    %2151 = vmatpush1.bf16.msra.mxu0 %v1718
    %2152 = vmatprep.subr.bf16.mxu0 %v1715
    %2153 = vmatpush1.bf16.msra.mxu0 %v1714
    %2154 = vmatprep.subr.bf16.mxu0 %v1711
    %2155 = vmatpush1.bf16.msra.mxu0 %v1710
    %2156 = vmatprep.subr.bf16.mxu0 %v1707
    %2157 = vmatpush1.bf16.msra.mxu0 %v1706
    %2158 = vmatprep.subr.bf16.mxu0 %v1703
    %2159 = vmatpush1.bf16.msra.mxu0 %v1702
    %2160 = vmatprep.subr.bf16.mxu0 %v1699
    %2161 = vmatpush1.bf16.msra.mxu0 %v1698
    %2162 = vmatprep.subr.bf16.mxu0 %v1759
    %2163 = vmatpush2.bf16.msra.mxu0 %v1758
    %2164 = vmatprep.subr.bf16.mxu0 %v1755
    %2165 = vmatpush2.bf16.msra.mxu0 %v1754
    %2166 = vmatprep.subr.bf16.mxu0 %v1751
    %2167 = vmatpush2.bf16.msra.mxu0 %v1750
    %2168 = vmatprep.subr.bf16.mxu0 %v1747
    %2169 = vmatpush2.bf16.msra.mxu0 %v1746
    %2170 = vmatprep.subr.bf16.mxu0 %v1743
    %2171 = vmatpush2.bf16.msra.mxu0 %v1742
    %2172 = vmatprep.subr.bf16.mxu0 %v1739
    %2173 = vmatpush2.bf16.msra.mxu0 %v1738
    %2174 = vmatprep.subr.bf16.mxu0 %v1735
    %2175 = vmatpush2.bf16.msra.mxu0 %v1734
    %2176 = vmatprep.subr.bf16.mxu0 %v1731
    %2177 = vmatpush2.bf16.msra.mxu0 %v1730
    %2178 = vmatprep.mubr.bf16.mxu0 %v774
    %2179 = vmatmul.mubr.bf16.gmra.mxu0 %v773
    %v2180 = vpop.f32.mrf.mxu0
    %v2181 = vadd.f32 %v1009, %v2180
    %v2182 = vpop.f32.mrf.mxu0
    %v2183 = vadd.f32 %v1013, %v2182
    %v2184 = vpop.f32.mrf.mxu0
    %v2185 = vadd.f32 %v1009, %v2184
    %v2186 = vpop.f32.mrf.mxu0
    %v2187 = vadd.f32 %v1013, %v2186
    %2188 = vdwg.mxu0
    %2189 = vmatprep.subr.bf16.mxu0 %v1791
    %2190 = vmatpush1.bf16.msra.mxu0 %v1790
    %2191 = vmatprep.subr.bf16.mxu0 %v1787
    %2192 = vmatpush1.bf16.msra.mxu0 %v1786
    %2193 = vmatprep.subr.bf16.mxu0 %v1783
    %2194 = vmatpush1.bf16.msra.mxu0 %v1782
    %2195 = vmatprep.subr.bf16.mxu0 %v1779
    %2196 = vmatpush1.bf16.msra.mxu0 %v1778
    %2197 = vmatprep.subr.bf16.mxu0 %v1775
    %2198 = vmatpush1.bf16.msra.mxu0 %v1774
    %2199 = vmatprep.subr.bf16.mxu0 %v1771
    %2200 = vmatpush1.bf16.msra.mxu0 %v1770
    %2201 = vmatprep.subr.bf16.mxu0 %v1767
    %2202 = vmatpush1.bf16.msra.mxu0 %v1766
    %2203 = vmatprep.subr.bf16.mxu0 %v1763
    %2204 = vmatpush1.bf16.msra.mxu0 %v1762
    %2205 = vmatprep.subr.bf16.mxu0 %v1823
    %2206 = vmatpush2.bf16.msra.mxu0 %v1822
    %2207 = vmatprep.subr.bf16.mxu0 %v1819
    %2208 = vmatpush2.bf16.msra.mxu0 %v1818
    %2209 = vmatprep.subr.bf16.mxu0 %v1815
    %2210 = vmatpush2.bf16.msra.mxu0 %v1814
    %2211 = vmatprep.subr.bf16.mxu0 %v1811
    %2212 = vmatpush2.bf16.msra.mxu0 %v1810
    %2213 = vmatprep.subr.bf16.mxu0 %v1807
    %2214 = vmatpush2.bf16.msra.mxu0 %v1806
    %2215 = vmatprep.subr.bf16.mxu0 %v1803
    %2216 = vmatpush2.bf16.msra.mxu0 %v1802
    %2217 = vmatprep.subr.bf16.mxu0 %v1799
    %2218 = vmatpush2.bf16.msra.mxu0 %v1798
    %2219 = vmatprep.subr.bf16.mxu0 %v1795
    %2220 = vmatpush2.bf16.msra.mxu0 %v1794
    %2221 = vmatprep.mubr.bf16.mxu0 %v776
    %2222 = vmatmul.mubr.bf16.gmra.mxu0 %v775
    %v2223 = vpop.f32.mrf.mxu0
    %v2224 = vadd.f32 %v2181, %v2223
    %v2225 = vpop.f32.mrf.mxu0
    %v2226 = vadd.f32 %v2183, %v2225
    %v2227 = vpop.f32.mrf.mxu0
    %v2228 = vadd.f32 %v2185, %v2227
    %v2229 = vpop.f32.mrf.mxu0
    %v2230 = vadd.f32 %v2187, %v2229
    %2231 = vdwg.mxu0
    %2232 = vmatprep.subr.bf16.mxu0 %v1855
    %2233 = vmatpush1.bf16.msra.mxu0 %v1854
    %2234 = vmatprep.subr.bf16.mxu0 %v1851
    %2235 = vmatpush1.bf16.msra.mxu0 %v1850
    %2236 = vmatprep.subr.bf16.mxu0 %v1847
    %2237 = vmatpush1.bf16.msra.mxu0 %v1846
    %2238 = vmatprep.subr.bf16.mxu0 %v1843
    %2239 = vmatpush1.bf16.msra.mxu0 %v1842
    %2240 = vmatprep.subr.bf16.mxu0 %v1839
    %2241 = vmatpush1.bf16.msra.mxu0 %v1838
    %2242 = vmatprep.subr.bf16.mxu0 %v1835
    %2243 = vmatpush1.bf16.msra.mxu0 %v1834
    %2244 = vmatprep.subr.bf16.mxu0 %v1831
    %2245 = vmatpush1.bf16.msra.mxu0 %v1830
    %2246 = vmatprep.subr.bf16.mxu0 %v1827
    %2247 = vmatpush1.bf16.msra.mxu0 %v1826
    %2248 = vmatprep.subr.bf16.mxu0 %v1887
    %2249 = vmatpush2.bf16.msra.mxu0 %v1886
    %2250 = vmatprep.subr.bf16.mxu0 %v1883
    %2251 = vmatpush2.bf16.msra.mxu0 %v1882
    %2252 = vmatprep.subr.bf16.mxu0 %v1879
    %2253 = vmatpush2.bf16.msra.mxu0 %v1878
    %2254 = vmatprep.subr.bf16.mxu0 %v1875
    %2255 = vmatpush2.bf16.msra.mxu0 %v1874
    %2256 = vmatprep.subr.bf16.mxu0 %v1871
    %2257 = vmatpush2.bf16.msra.mxu0 %v1870
    %2258 = vmatprep.subr.bf16.mxu0 %v1867
    %2259 = vmatpush2.bf16.msra.mxu0 %v1866
    %2260 = vmatprep.subr.bf16.mxu0 %v1863
    %2261 = vmatpush2.bf16.msra.mxu0 %v1862
    %2262 = vmatprep.subr.bf16.mxu0 %v1859
    %2263 = vmatpush2.bf16.msra.mxu0 %v1858
    %2264 = vmatprep.mubr.bf16.mxu0 %v778
    %2265 = vmatmul.mubr.bf16.gmra.mxu0 %v777
    %v2266 = vpop.f32.mrf.mxu0
    %v2267 = vadd.f32 %v2224, %v2266
    %v2268 = vpop.f32.mrf.mxu0
    %v2269 = vadd.f32 %v2226, %v2268
    %v2270 = vpop.f32.mrf.mxu0
    %v2271 = vadd.f32 %v2228, %v2270
    %v2272 = vpop.f32.mrf.mxu0
    %v2273 = vadd.f32 %v2230, %v2272
    %2274 = vdwg.mxu0
    %2275 = vmatprep.subr.bf16.mxu0 %v1919
    %2276 = vmatpush1.bf16.msra.mxu0 %v1918
    %2277 = vmatprep.subr.bf16.mxu0 %v1915
    %2278 = vmatpush1.bf16.msra.mxu0 %v1914
    %2279 = vmatprep.subr.bf16.mxu0 %v1911
    %2280 = vmatpush1.bf16.msra.mxu0 %v1910
    %2281 = vmatprep.subr.bf16.mxu0 %v1907
    %2282 = vmatpush1.bf16.msra.mxu0 %v1906
    %2283 = vmatprep.subr.bf16.mxu0 %v1903
    %2284 = vmatpush1.bf16.msra.mxu0 %v1902
    %2285 = vmatprep.subr.bf16.mxu0 %v1899
    %2286 = vmatpush1.bf16.msra.mxu0 %v1898
    %2287 = vmatprep.subr.bf16.mxu0 %v1895
    %2288 = vmatpush1.bf16.msra.mxu0 %v1894
    %2289 = vmatprep.subr.bf16.mxu0 %v1891
    %2290 = vmatpush1.bf16.msra.mxu0 %v1890
    %2291 = vmatprep.subr.bf16.mxu0 0
    %2292 = vmatpush2.bf16.msra.mxu0 0
    %2293 = vmatprep.subr.bf16.mxu0 0
    %2294 = vmatpush2.bf16.msra.mxu0 0
    %2295 = vmatprep.subr.bf16.mxu0 0
    %2296 = vmatpush2.bf16.msra.mxu0 0
    %2297 = vmatprep.subr.bf16.mxu0 0
    %2298 = vmatpush2.bf16.msra.mxu0 0
    %2299 = vmatprep.subr.bf16.mxu0 0
    %2300 = vmatpush2.bf16.msra.mxu0 0
    %2301 = vmatprep.subr.bf16.mxu0 0
    %2302 = vmatpush2.bf16.msra.mxu0 0
    %2303 = vmatprep.subr.bf16.mxu0 0
    %2304 = vmatpush2.bf16.msra.mxu0 0
    %2305 = vmatprep.subr.bf16.mxu0 0
    %2306 = vmatpush2.bf16.msra.mxu0 0
    %2307 = vmatprep.mubr.bf16.mxu0 0
    %2308 = vmatmul.mubr.bf16.gmra.mxu0 %v779
    %v2309 = vpop.f32.mrf.mxu0
    %v2310 = vadd.f32 %v2267, %v2309
    %v2311 = vpop.f32.mrf.mxu0
    %v2312 = vadd.f32 %v2269, %v2311
    %v2313 = vpop.f32.mrf.mxu0
    %v2314 = vadd.f32 %v2271, %v2313
    %v2315 = vpop.f32.mrf.mxu0
    %v2316 = vadd.f32 %v2273, %v2315
    %2317 = vdwg.mxu0
    %2318 = vmatprep.subr.bf16.mxu0 %v1729
    %2319 = vmatpush1.bf16.msra.mxu0 %v1728
    %2320 = vmatprep.subr.bf16.mxu0 %v1725
    %2321 = vmatpush1.bf16.msra.mxu0 %v1724
    %2322 = vmatprep.subr.bf16.mxu0 %v1721
    %2323 = vmatpush1.bf16.msra.mxu0 %v1720
    %2324 = vmatprep.subr.bf16.mxu0 %v1717
    %2325 = vmatpush1.bf16.msra.mxu0 %v1716
    %2326 = vmatprep.subr.bf16.mxu0 %v1713
    %2327 = vmatpush1.bf16.msra.mxu0 %v1712
    %2328 = vmatprep.subr.bf16.mxu0 %v1709
    %2329 = vmatpush1.bf16.msra.mxu0 %v1708
    %2330 = vmatprep.subr.bf16.mxu0 %v1705
    %2331 = vmatpush1.bf16.msra.mxu0 %v1704
    %2332 = vmatprep.subr.bf16.mxu0 %v1701
    %2333 = vmatpush1.bf16.msra.mxu0 %v1700
    %2334 = vmatprep.subr.bf16.mxu0 %v1761
    %2335 = vmatpush2.bf16.msra.mxu0 %v1760
    %2336 = vmatprep.subr.bf16.mxu0 %v1757
    %2337 = vmatpush2.bf16.msra.mxu0 %v1756
    %2338 = vmatprep.subr.bf16.mxu0 %v1753
    %2339 = vmatpush2.bf16.msra.mxu0 %v1752
    %2340 = vmatprep.subr.bf16.mxu0 %v1749
    %2341 = vmatpush2.bf16.msra.mxu0 %v1748
    %2342 = vmatprep.subr.bf16.mxu0 %v1745
    %2343 = vmatpush2.bf16.msra.mxu0 %v1744
    %2344 = vmatprep.subr.bf16.mxu0 %v1741
    %2345 = vmatpush2.bf16.msra.mxu0 %v1740
    %2346 = vmatprep.subr.bf16.mxu0 %v1737
    %2347 = vmatpush2.bf16.msra.mxu0 %v1736
    %2348 = vmatprep.subr.bf16.mxu0 %v1733
    %2349 = vmatpush2.bf16.msra.mxu0 %v1732
    %2350 = vmatprep.mubr.bf16.mxu0 %v774
    %2351 = vmatmul.mubr.bf16.gmra.mxu0 %v773
    %v2352 = vpop.f32.mrf.mxu0
    %v2353 = vadd.f32 %v1017, %v2352
    %v2354 = vpop.f32.mrf.mxu0
    %v2355 = vadd.f32 %v1021, %v2354
    %v2356 = vpop.f32.mrf.mxu0
    %v2357 = vadd.f32 %v1017, %v2356
    %v2358 = vpop.f32.mrf.mxu0
    %v2359 = vadd.f32 %v1021, %v2358
    %2360 = vdwg.mxu0
    %2361 = vmatprep.subr.bf16.mxu0 %v1793
    %2362 = vmatpush1.bf16.msra.mxu0 %v1792
    %2363 = vmatprep.subr.bf16.mxu0 %v1789
    %2364 = vmatpush1.bf16.msra.mxu0 %v1788
    %2365 = vmatprep.subr.bf16.mxu0 %v1785
    %2366 = vmatpush1.bf16.msra.mxu0 %v1784
    %2367 = vmatprep.subr.bf16.mxu0 %v1781
    %2368 = vmatpush1.bf16.msra.mxu0 %v1780
    %2369 = vmatprep.subr.bf16.mxu0 %v1777
    %2370 = vmatpush1.bf16.msra.mxu0 %v1776
    %2371 = vmatprep.subr.bf16.mxu0 %v1773
    %2372 = vmatpush1.bf16.msra.mxu0 %v1772
    %2373 = vmatprep.subr.bf16.mxu0 %v1769
    %2374 = vmatpush1.bf16.msra.mxu0 %v1768
    %2375 = vmatprep.subr.bf16.mxu0 %v1765
    %2376 = vmatpush1.bf16.msra.mxu0 %v1764
    %2377 = vmatprep.subr.bf16.mxu0 %v1825
    %2378 = vmatpush2.bf16.msra.mxu0 %v1824
    %2379 = vmatprep.subr.bf16.mxu0 %v1821
    %2380 = vmatpush2.bf16.msra.mxu0 %v1820
    %2381 = vmatprep.subr.bf16.mxu0 %v1817
    %2382 = vmatpush2.bf16.msra.mxu0 %v1816
    %2383 = vmatprep.subr.bf16.mxu0 %v1813
    %2384 = vmatpush2.bf16.msra.mxu0 %v1812
    %2385 = vmatprep.subr.bf16.mxu0 %v1809
    %2386 = vmatpush2.bf16.msra.mxu0 %v1808
    %2387 = vmatprep.subr.bf16.mxu0 %v1805
    %2388 = vmatpush2.bf16.msra.mxu0 %v1804
    %2389 = vmatprep.subr.bf16.mxu0 %v1801
    %2390 = vmatpush2.bf16.msra.mxu0 %v1800
    %2391 = vmatprep.subr.bf16.mxu0 %v1797
    %2392 = vmatpush2.bf16.msra.mxu0 %v1796
    %2393 = vmatprep.mubr.bf16.mxu0 %v776
    %2394 = vmatmul.mubr.bf16.gmra.mxu0 %v775
    %v2395 = vpop.f32.mrf.mxu0
    %v2396 = vadd.f32 %v2353, %v2395
    %v2397 = vpop.f32.mrf.mxu0
    %v2398 = vadd.f32 %v2355, %v2397
    %v2399 = vpop.f32.mrf.mxu0
    %v2400 = vadd.f32 %v2357, %v2399
    %v2401 = vpop.f32.mrf.mxu0
    %v2402 = vadd.f32 %v2359, %v2401
    %2403 = vdwg.mxu0
    %2404 = vmatprep.subr.bf16.mxu0 %v1857
    %2405 = vmatpush1.bf16.msra.mxu0 %v1856
    %2406 = vmatprep.subr.bf16.mxu0 %v1853
    %2407 = vmatpush1.bf16.msra.mxu0 %v1852
    %2408 = vmatprep.subr.bf16.mxu0 %v1849
    %2409 = vmatpush1.bf16.msra.mxu0 %v1848
    %2410 = vmatprep.subr.bf16.mxu0 %v1845
    %2411 = vmatpush1.bf16.msra.mxu0 %v1844
    %2412 = vmatprep.subr.bf16.mxu0 %v1841
    %2413 = vmatpush1.bf16.msra.mxu0 %v1840
    %2414 = vmatprep.subr.bf16.mxu0 %v1837
    %2415 = vmatpush1.bf16.msra.mxu0 %v1836
    %2416 = vmatprep.subr.bf16.mxu0 %v1833
    %2417 = vmatpush1.bf16.msra.mxu0 %v1832
    %2418 = vmatprep.subr.bf16.mxu0 %v1829
    %2419 = vmatpush1.bf16.msra.mxu0 %v1828
    %2420 = vmatprep.subr.bf16.mxu0 %v1889
    %2421 = vmatpush2.bf16.msra.mxu0 %v1888
    %2422 = vmatprep.subr.bf16.mxu0 %v1885
    %2423 = vmatpush2.bf16.msra.mxu0 %v1884
    %2424 = vmatprep.subr.bf16.mxu0 %v1881
    %2425 = vmatpush2.bf16.msra.mxu0 %v1880
    %2426 = vmatprep.subr.bf16.mxu0 %v1877
    %2427 = vmatpush2.bf16.msra.mxu0 %v1876
    %2428 = vmatprep.subr.bf16.mxu0 %v1873
    %2429 = vmatpush2.bf16.msra.mxu0 %v1872
    %2430 = vmatprep.subr.bf16.mxu0 %v1869
    %2431 = vmatpush2.bf16.msra.mxu0 %v1868
    %2432 = vmatprep.subr.bf16.mxu0 %v1865
    %2433 = vmatpush2.bf16.msra.mxu0 %v1864
    %2434 = vmatprep.subr.bf16.mxu0 %v1861
    %2435 = vmatpush2.bf16.msra.mxu0 %v1860
    %2436 = vmatprep.mubr.bf16.mxu0 %v778
    %2437 = vmatmul.mubr.bf16.gmra.mxu0 %v777
    %v2438 = vpop.f32.mrf.mxu0
    %v2439 = vadd.f32 %v2396, %v2438
    %v2440 = vpop.f32.mrf.mxu0
    %v2441 = vadd.f32 %v2398, %v2440
    %v2442 = vpop.f32.mrf.mxu0
    %v2443 = vadd.f32 %v2400, %v2442
    %v2444 = vpop.f32.mrf.mxu0
    %v2445 = vadd.f32 %v2402, %v2444
    %2446 = vdwg.mxu0
    %2447 = vmatprep.subr.bf16.mxu0 %v1921
    %2448 = vmatpush1.bf16.msra.mxu0 %v1920
    %2449 = vmatprep.subr.bf16.mxu0 %v1917
    %2450 = vmatpush1.bf16.msra.mxu0 %v1916
    %2451 = vmatprep.subr.bf16.mxu0 %v1913
    %2452 = vmatpush1.bf16.msra.mxu0 %v1912
    %2453 = vmatprep.subr.bf16.mxu0 %v1909
    %2454 = vmatpush1.bf16.msra.mxu0 %v1908
    %2455 = vmatprep.subr.bf16.mxu0 %v1905
    %2456 = vmatpush1.bf16.msra.mxu0 %v1904
    %2457 = vmatprep.subr.bf16.mxu0 %v1901
    %2458 = vmatpush1.bf16.msra.mxu0 %v1900
    %2459 = vmatprep.subr.bf16.mxu0 %v1897
    %2460 = vmatpush1.bf16.msra.mxu0 %v1896
    %2461 = vmatprep.subr.bf16.mxu0 %v1893
    %2462 = vmatpush1.bf16.msra.mxu0 %v1892
    %2463 = vmatprep.subr.bf16.mxu0 0
    %2464 = vmatpush2.bf16.msra.mxu0 0
    %2465 = vmatprep.subr.bf16.mxu0 0
    %2466 = vmatpush2.bf16.msra.mxu0 0
    %2467 = vmatprep.subr.bf16.mxu0 0
    %2468 = vmatpush2.bf16.msra.mxu0 0
    %2469 = vmatprep.subr.bf16.mxu0 0
    %2470 = vmatpush2.bf16.msra.mxu0 0
    %2471 = vmatprep.subr.bf16.mxu0 0
    %2472 = vmatpush2.bf16.msra.mxu0 0
    %2473 = vmatprep.subr.bf16.mxu0 0
    %2474 = vmatpush2.bf16.msra.mxu0 0
    %2475 = vmatprep.subr.bf16.mxu0 0
    %2476 = vmatpush2.bf16.msra.mxu0 0
    %2477 = vmatprep.subr.bf16.mxu0 0
    %2478 = vmatpush2.bf16.msra.mxu0 0
    %2479 = vmatprep.mubr.bf16.mxu0 0
    %2480 = vmatmul.mubr.bf16.gmra.mxu0 %v779
    %v2481 = vpop.f32.mrf.mxu0
    %v2482 = vadd.f32 %v2439, %v2481
    %v2483 = vpop.f32.mrf.mxu0
    %v2484 = vadd.f32 %v2441, %v2483
    %v2485 = vpop.f32.mrf.mxu0
    %v2486 = vadd.f32 %v2443, %v2485
    %v2487 = vpop.f32.mrf.mxu0
    %v2488 = vadd.f32 %v2445, %v2487
    %2489 = vdwg.mxu0
    %v2490 = vmax.f32 %v2310, 0.0
    %v2491 = vmax.f32 %v2312, 0.0
    %v2492 = vmax.f32 %v2482, 0.0
    %v2493 = vmax.f32 %v2484, 0.0
    %v2494 = vmax.f32 %v2314, 0.0
    %v2495 = vmax.f32 %v2316, 0.0
    %v2496 = vmax.f32 %v2486, 0.0
    %v2497 = vmax.f32 %v2488, 0.0
    %v2498 = vpack.c.bf16 %v2494, %v2490
    %v2499 = vpack.c.bf16 %v2495, %v2491
    %v2500 = vpack.c.bf16 %v2496, %v2492
    %v2501 = vpack.c.bf16 %v2497, %v2493
    %v2502 = vld [vmem:[#allocation6] sm:$0xff]
    %v2503 = vld [vmem:[#allocation6 + $0x8] sm:$0xff]
    %v2504 = vld [vmem:[#allocation6 + $0x10] sm:$0xff]
    %v2505 = vld [vmem:[#allocation6 + $0x18] sm:$0xff]
    %v2506 = vld [vmem:[#allocation6 + $0x20] sm:$0xff]
    %v2507 = vld [vmem:[#allocation6 + $0x28] sm:$0xff]
    %v2508 = vld [vmem:[#allocation6 + $0x30] sm:$0xff]
    %v2509 = vld [vmem:[#allocation6 + $0x38] sm:$0xff]
    %v2510 = vld [vmem:[#allocation6 + $0x40] sm:$0xff]
    %v2511 = vld [vmem:[#allocation6 + $0x48] sm:$0xff]
    %v2512 = vld [vmem:[#allocation6 + $0x50] sm:$0xff]
    %v2513 = vld [vmem:[#allocation6 + $0x58] sm:$0xff]
    %v2514 = vld [vmem:[#allocation6 + $0x60] sm:$0xff]
    %v2515 = vld [vmem:[#allocation6 + $0x68] sm:$0xff]
    %v2516 = vld [vmem:[#allocation6 + $0x70] sm:$0xff]
    %v2517 = vld [vmem:[#allocation6 + $0x78] sm:$0xff]
    %v2518 = vld [vmem:[#allocation6 + $0x80] sm:$0xff]
    %v2519 = vld [vmem:[#allocation6 + $0x88] sm:$0xff]
    %v2520 = vld [vmem:[#allocation6 + $0x90] sm:$0xff]
    %v2521 = vld [vmem:[#allocation6 + $0x98] sm:$0xff]
    %v2522 = vld [vmem:[#allocation6 + $0xa0] sm:$0xff]
    %v2523 = vld [vmem:[#allocation6 + $0xa8] sm:$0xff]
    %v2524 = vld [vmem:[#allocation6 + $0xb0] sm:$0xff]
    %v2525 = vld [vmem:[#allocation6 + $0xb8] sm:$0xff]
    %v2526 = vld [vmem:[#allocation6 + $0xc0] sm:$0xff]
    %v2527 = vld [vmem:[#allocation6 + $0xc8] sm:$0xff]
    %v2528 = vld [vmem:[#allocation6 + $0xd0] sm:$0xff]
    %v2529 = vld [vmem:[#allocation6 + $0xd8] sm:$0xff]
    %v2530 = vld [vmem:[#allocation6 + $0xe0] sm:$0xff]
    %v2531 = vld [vmem:[#allocation6 + $0xe8] sm:$0xff]
    %v2532 = vld [vmem:[#allocation6 + $0xf0] sm:$0xff]
    %v2533 = vld [vmem:[#allocation6 + $0xf8] sm:$0xff]
    %v2534 = vld [vmem:[#allocation6 + $0x100] sm:$0xff]
    %v2535 = vld [vmem:[#allocation6 + $0x108] sm:$0xff]
    %v2536 = vld [vmem:[#allocation6 + $0x110] sm:$0xff]
    %v2537 = vld [vmem:[#allocation6 + $0x118] sm:$0xff]
    %v2538 = vld [vmem:[#allocation6 + $0x120] sm:$0xff]
    %v2539 = vld [vmem:[#allocation6 + $0x128] sm:$0xff]
    %v2540 = vld [vmem:[#allocation6 + $0x130] sm:$0xff]
    %v2541 = vld [vmem:[#allocation6 + $0x138] sm:$0xff]
    %v2542 = vld [vmem:[#allocation6 + $0x140] sm:$0xff]
    %v2543 = vld [vmem:[#allocation6 + $0x148] sm:$0xff]
    %v2544 = vld [vmem:[#allocation6 + $0x150] sm:$0xff]
    %v2545 = vld [vmem:[#allocation6 + $0x158] sm:$0xff]
    %v2546 = vld [vmem:[#allocation6 + $0x160] sm:$0xff]
    %v2547 = vld [vmem:[#allocation6 + $0x168] sm:$0xff]
    %v2548 = vld [vmem:[#allocation6 + $0x170] sm:$0xff]
    %v2549 = vld [vmem:[#allocation6 + $0x178] sm:$0xff]
    %v2550 = vld [vmem:[#allocation6 + $0x180] sm:$0xff]
    %v2551 = vld [vmem:[#allocation6 + $0x188] sm:$0xff]
    %v2552 = vld [vmem:[#allocation6 + $0x190] sm:$0xff]
    %v2553 = vld [vmem:[#allocation6 + $0x198] sm:$0xff]
    %v2554 = vld [vmem:[#allocation6 + $0x1a0] sm:$0xff]
    %v2555 = vld [vmem:[#allocation6 + $0x1a8] sm:$0xff]
    %v2556 = vld [vmem:[#allocation6 + $0x1b0] sm:$0xff]
    %v2557 = vld [vmem:[#allocation6 + $0x1b8] sm:$0xff]
    %v2558 = vld [vmem:[#allocation6 + $0x1c0] sm:$0xff]
    %v2559 = vld [vmem:[#allocation6 + $0x1c8] sm:$0xff]
    %v2560 = vld [vmem:[#allocation6 + $0x1d0] sm:$0xff]
    %v2561 = vld [vmem:[#allocation6 + $0x1d8] sm:$0xff]
    %v2562 = vld [vmem:[#allocation6 + $0x1e0] sm:$0xff]
    %v2563 = vld [vmem:[#allocation6 + $0x1e8] sm:$0xff]
    %v2564 = vld [vmem:[#allocation6 + $0x1f0] sm:$0xff]
    %v2565 = vld [vmem:[#allocation6 + $0x1f8] sm:$0xff]
    %v2566 = vld [vmem:[%s6] sm:$0x3]
    %v2568 = vlaneseq
    %v2569 = vshrl.u32 %v2568, 7
    %v2570 = vsub.s32 0, %v2569
    %v2571 = vrot.slane %v2566, %v2570
    %v2572 = vlaneseq
    %v2573 = vshrl.u32 %v2572, 7
    %v2574 = vsub.s32 1, %v2573
    %v2575 = vrot.slane %v2566, %v2574
    %v2642 = vunpack.c.l.b16 %v2502
    %v2643 = vunpack.c.h.b16 %v2502
    %v2644 = vunpack.c.l.b16 %v2503
    %v2645 = vunpack.c.h.b16 %v2503
    %v2646 = vunpack.c.l.b16 %v2504
    %v2647 = vunpack.c.h.b16 %v2504
    %v2648 = vunpack.c.l.b16 %v2505
    %v2649 = vunpack.c.h.b16 %v2505
    %v2650 = vunpack.c.l.b16 %v2506
    %v2651 = vunpack.c.h.b16 %v2506
    %v2652 = vunpack.c.l.b16 %v2507
    %v2653 = vunpack.c.h.b16 %v2507
    %v2654 = vunpack.c.l.b16 %v2508
    %v2655 = vunpack.c.h.b16 %v2508
    %v2656 = vunpack.c.l.b16 %v2509
    %v2657 = vunpack.c.h.b16 %v2509
    %v2658 = vunpack.c.l.b16 %v2510
    %v2659 = vunpack.c.h.b16 %v2510
    %v2660 = vunpack.c.l.b16 %v2511
    %v2661 = vunpack.c.h.b16 %v2511
    %v2662 = vunpack.c.l.b16 %v2512
    %v2663 = vunpack.c.h.b16 %v2512
    %v2664 = vunpack.c.l.b16 %v2513
    %v2665 = vunpack.c.h.b16 %v2513
    %v2666 = vunpack.c.l.b16 %v2514
    %v2667 = vunpack.c.h.b16 %v2514
    %v2668 = vunpack.c.l.b16 %v2515
    %v2669 = vunpack.c.h.b16 %v2515
    %v2670 = vunpack.c.l.b16 %v2516
    %v2671 = vunpack.c.h.b16 %v2516
    %v2672 = vunpack.c.l.b16 %v2517
    %v2673 = vunpack.c.h.b16 %v2517
    %v2674 = vunpack.c.l.b16 %v2518
    %v2675 = vunpack.c.h.b16 %v2518
    %v2676 = vunpack.c.l.b16 %v2519
    %v2677 = vunpack.c.h.b16 %v2519
    %v2678 = vunpack.c.l.b16 %v2520
    %v2679 = vunpack.c.h.b16 %v2520
    %v2680 = vunpack.c.l.b16 %v2521
    %v2681 = vunpack.c.h.b16 %v2521
    %v2682 = vunpack.c.l.b16 %v2522
    %v2683 = vunpack.c.h.b16 %v2522
    %v2684 = vunpack.c.l.b16 %v2523
    %v2685 = vunpack.c.h.b16 %v2523
    %v2686 = vunpack.c.l.b16 %v2524
    %v2687 = vunpack.c.h.b16 %v2524
    %v2688 = vunpack.c.l.b16 %v2525
    %v2689 = vunpack.c.h.b16 %v2525
    %v2690 = vunpack.c.l.b16 %v2526
    %v2691 = vunpack.c.h.b16 %v2526
    %v2692 = vunpack.c.l.b16 %v2527
    %v2693 = vunpack.c.h.b16 %v2527
    %v2694 = vunpack.c.l.b16 %v2528
    %v2695 = vunpack.c.h.b16 %v2528
    %v2696 = vunpack.c.l.b16 %v2529
    %v2697 = vunpack.c.h.b16 %v2529
    %v2698 = vunpack.c.l.b16 %v2530
    %v2699 = vunpack.c.h.b16 %v2530
    %v2700 = vunpack.c.l.b16 %v2531
    %v2701 = vunpack.c.h.b16 %v2531
    %v2702 = vunpack.c.l.b16 %v2532
    %v2703 = vunpack.c.h.b16 %v2532
    %v2704 = vunpack.c.l.b16 %v2533
    %v2705 = vunpack.c.h.b16 %v2533
    %v2706 = vunpack.c.l.b16 %v2534
    %v2707 = vunpack.c.h.b16 %v2534
    %v2708 = vunpack.c.l.b16 %v2535
    %v2709 = vunpack.c.h.b16 %v2535
    %v2710 = vunpack.c.l.b16 %v2536
    %v2711 = vunpack.c.h.b16 %v2536
    %v2712 = vunpack.c.l.b16 %v2537
    %v2713 = vunpack.c.h.b16 %v2537
    %v2714 = vunpack.c.l.b16 %v2538
    %v2715 = vunpack.c.h.b16 %v2538
    %v2716 = vunpack.c.l.b16 %v2539
    %v2717 = vunpack.c.h.b16 %v2539
    %v2718 = vunpack.c.l.b16 %v2540
    %v2719 = vunpack.c.h.b16 %v2540
    %v2720 = vunpack.c.l.b16 %v2541
    %v2721 = vunpack.c.h.b16 %v2541
    %v2722 = vunpack.c.l.b16 %v2542
    %v2723 = vunpack.c.h.b16 %v2542
    %v2724 = vunpack.c.l.b16 %v2543
    %v2725 = vunpack.c.h.b16 %v2543
    %v2726 = vunpack.c.l.b16 %v2544
    %v2727 = vunpack.c.h.b16 %v2544
    %v2728 = vunpack.c.l.b16 %v2545
    %v2729 = vunpack.c.h.b16 %v2545
    %v2730 = vunpack.c.l.b16 %v2546
    %v2731 = vunpack.c.h.b16 %v2546
    %v2732 = vunpack.c.l.b16 %v2547
    %v2733 = vunpack.c.h.b16 %v2547
    %v2734 = vunpack.c.l.b16 %v2548
    %v2735 = vunpack.c.h.b16 %v2548
    %v2736 = vunpack.c.l.b16 %v2549
    %v2737 = vunpack.c.h.b16 %v2549
    %v2738 = vunpack.c.l.b16 %v2550
    %v2739 = vunpack.c.h.b16 %v2550
    %v2740 = vunpack.c.l.b16 %v2551
    %v2741 = vunpack.c.h.b16 %v2551
    %v2742 = vunpack.c.l.b16 %v2552
    %v2743 = vunpack.c.h.b16 %v2552
    %v2744 = vunpack.c.l.b16 %v2553
    %v2745 = vunpack.c.h.b16 %v2553
    %v2746 = vunpack.c.l.b16 %v2554
    %v2747 = vunpack.c.h.b16 %v2554
    %v2748 = vunpack.c.l.b16 %v2555
    %v2749 = vunpack.c.h.b16 %v2555
    %v2750 = vunpack.c.l.b16 %v2556
    %v2751 = vunpack.c.h.b16 %v2556
    %v2752 = vunpack.c.l.b16 %v2557
    %v2753 = vunpack.c.h.b16 %v2557
    %v2754 = vunpack.c.l.b16 %v2558
    %v2755 = vunpack.c.h.b16 %v2558
    %v2756 = vunpack.c.l.b16 %v2559
    %v2757 = vunpack.c.h.b16 %v2559
    %v2758 = vunpack.c.l.b16 %v2560
    %v2759 = vunpack.c.h.b16 %v2560
    %v2760 = vunpack.c.l.b16 %v2561
    %v2761 = vunpack.c.h.b16 %v2561
    %v2762 = vunpack.c.l.b16 %v2562
    %v2763 = vunpack.c.h.b16 %v2562
    %v2764 = vunpack.c.l.b16 %v2563
    %v2765 = vunpack.c.h.b16 %v2563
    %v2766 = vunpack.c.l.b16 %v2564
    %v2767 = vunpack.c.h.b16 %v2564
    %v2768 = vunpack.c.l.b16 %v2565
    %v2769 = vunpack.c.h.b16 %v2565
    %v2770 = vpack.c.b16 %v2644, %v2642
    %v2771 = vpack.c.b16 %v2645, %v2643
    %v2772 = vpack.c.b16 %v2648, %v2646
    %v2773 = vpack.c.b16 %v2649, %v2647
    %v2774 = vpack.c.b16 %v2652, %v2650
    %v2775 = vpack.c.b16 %v2653, %v2651
    %v2776 = vpack.c.b16 %v2656, %v2654
    %v2777 = vpack.c.b16 %v2657, %v2655
    %v2778 = vpack.c.b16 %v2660, %v2658
    %v2779 = vpack.c.b16 %v2661, %v2659
    %v2780 = vpack.c.b16 %v2664, %v2662
    %v2781 = vpack.c.b16 %v2665, %v2663
    %v2782 = vpack.c.b16 %v2668, %v2666
    %v2783 = vpack.c.b16 %v2669, %v2667
    %v2784 = vpack.c.b16 %v2672, %v2670
    %v2785 = vpack.c.b16 %v2673, %v2671
    %v2786 = vpack.c.b16 %v2676, %v2674
    %v2787 = vpack.c.b16 %v2677, %v2675
    %v2788 = vpack.c.b16 %v2680, %v2678
    %v2789 = vpack.c.b16 %v2681, %v2679
    %v2790 = vpack.c.b16 %v2684, %v2682
    %v2791 = vpack.c.b16 %v2685, %v2683
    %v2792 = vpack.c.b16 %v2688, %v2686
    %v2793 = vpack.c.b16 %v2689, %v2687
    %v2794 = vpack.c.b16 %v2692, %v2690
    %v2795 = vpack.c.b16 %v2693, %v2691
    %v2796 = vpack.c.b16 %v2696, %v2694
    %v2797 = vpack.c.b16 %v2697, %v2695
    %v2798 = vpack.c.b16 %v2700, %v2698
    %v2799 = vpack.c.b16 %v2701, %v2699
    %v2800 = vpack.c.b16 %v2704, %v2702
    %v2801 = vpack.c.b16 %v2705, %v2703
    %v2802 = vpack.c.b16 %v2708, %v2706
    %v2803 = vpack.c.b16 %v2709, %v2707
    %v2804 = vpack.c.b16 %v2712, %v2710
    %v2805 = vpack.c.b16 %v2713, %v2711
    %v2806 = vpack.c.b16 %v2716, %v2714
    %v2807 = vpack.c.b16 %v2717, %v2715
    %v2808 = vpack.c.b16 %v2720, %v2718
    %v2809 = vpack.c.b16 %v2721, %v2719
    %v2810 = vpack.c.b16 %v2724, %v2722
    %v2811 = vpack.c.b16 %v2725, %v2723
    %v2812 = vpack.c.b16 %v2728, %v2726
    %v2813 = vpack.c.b16 %v2729, %v2727
    %v2814 = vpack.c.b16 %v2732, %v2730
    %v2815 = vpack.c.b16 %v2733, %v2731
    %v2816 = vpack.c.b16 %v2736, %v2734
    %v2817 = vpack.c.b16 %v2737, %v2735
    %v2818 = vpack.c.b16 %v2740, %v2738
    %v2819 = vpack.c.b16 %v2741, %v2739
    %v2820 = vpack.c.b16 %v2744, %v2742
    %v2821 = vpack.c.b16 %v2745, %v2743
    %v2822 = vpack.c.b16 %v2748, %v2746
    %v2823 = vpack.c.b16 %v2749, %v2747
    %v2824 = vpack.c.b16 %v2752, %v2750
    %v2825 = vpack.c.b16 %v2753, %v2751
    %v2826 = vpack.c.b16 %v2756, %v2754
    %v2827 = vpack.c.b16 %v2757, %v2755
    %v2828 = vpack.c.b16 %v2760, %v2758
    %v2829 = vpack.c.b16 %v2761, %v2759
    %v2830 = vpack.c.b16 %v2764, %v2762
    %v2831 = vpack.c.b16 %v2765, %v2763
    %v2832 = vpack.c.b16 %v2768, %v2766
    %v2833 = vpack.c.b16 %v2769, %v2767
    %2898 = vmatprep.subr.bf16.mxu0 %v2785
    %2899 = vmatpush1.bf16.msra.mxu0 %v2784
    %2900 = vmatprep.subr.bf16.mxu0 %v2783
    %2901 = vmatpush1.bf16.msra.mxu0 %v2782
    %2902 = vmatprep.subr.bf16.mxu0 %v2781
    %2903 = vmatpush1.bf16.msra.mxu0 %v2780
    %2904 = vmatprep.subr.bf16.mxu0 %v2779
    %2905 = vmatpush1.bf16.msra.mxu0 %v2778
    %2906 = vmatprep.subr.bf16.mxu0 %v2777
    %2907 = vmatpush1.bf16.msra.mxu0 %v2776
    %2908 = vmatprep.subr.bf16.mxu0 %v2775
    %2909 = vmatpush1.bf16.msra.mxu0 %v2774
    %2910 = vmatprep.subr.bf16.mxu0 %v2773
    %2911 = vmatpush1.bf16.msra.mxu0 %v2772
    %2912 = vmatprep.subr.bf16.mxu0 %v2771
    %2913 = vmatpush1.bf16.msra.mxu0 %v2770
    %2914 = vmatprep.subr.bf16.mxu0 %v2801
    %2915 = vmatpush2.bf16.msra.mxu0 %v2800
    %2916 = vmatprep.subr.bf16.mxu0 %v2799
    %2917 = vmatpush2.bf16.msra.mxu0 %v2798
    %2918 = vmatprep.subr.bf16.mxu0 %v2797
    %2919 = vmatpush2.bf16.msra.mxu0 %v2796
    %2920 = vmatprep.subr.bf16.mxu0 %v2795
    %2921 = vmatpush2.bf16.msra.mxu0 %v2794
    %2922 = vmatprep.subr.bf16.mxu0 %v2793
    %2923 = vmatpush2.bf16.msra.mxu0 %v2792
    %2924 = vmatprep.subr.bf16.mxu0 %v2791
    %2925 = vmatpush2.bf16.msra.mxu0 %v2790
    %2926 = vmatprep.subr.bf16.mxu0 %v2789
    %2927 = vmatpush2.bf16.msra.mxu0 %v2788
    %2928 = vmatprep.subr.bf16.mxu0 %v2787
    %2929 = vmatpush2.bf16.msra.mxu0 %v2786
    %2930 = vmatprep.mubr.bf16.mxu0 %v2499
    %2931 = vmatmul.mubr.bf16.gmra.mxu0 %v2498
    %v2932 = vpop.f32.mrf.mxu0
    %v2933 = vadd.f32 %v2571, %v2932
    %v2934 = vpop.f32.mrf.mxu0
    %v2935 = vadd.f32 %v2575, %v2934
    %v2936 = vpop.f32.mrf.mxu0
    %v2937 = vadd.f32 %v2571, %v2936
    %v2938 = vpop.f32.mrf.mxu0
    %v2939 = vadd.f32 %v2575, %v2938
    %2940 = vdwg.mxu0
    %2941 = vmatprep.subr.bf16.mxu0 %v2817
    %2942 = vmatpush1.bf16.msra.mxu0 %v2816
    %2943 = vmatprep.subr.bf16.mxu0 %v2815
    %2944 = vmatpush1.bf16.msra.mxu0 %v2814
    %2945 = vmatprep.subr.bf16.mxu0 %v2813
    %2946 = vmatpush1.bf16.msra.mxu0 %v2812
    %2947 = vmatprep.subr.bf16.mxu0 %v2811
    %2948 = vmatpush1.bf16.msra.mxu0 %v2810
    %2949 = vmatprep.subr.bf16.mxu0 %v2809
    %2950 = vmatpush1.bf16.msra.mxu0 %v2808
    %2951 = vmatprep.subr.bf16.mxu0 %v2807
    %2952 = vmatpush1.bf16.msra.mxu0 %v2806
    %2953 = vmatprep.subr.bf16.mxu0 %v2805
    %2954 = vmatpush1.bf16.msra.mxu0 %v2804
    %2955 = vmatprep.subr.bf16.mxu0 %v2803
    %2956 = vmatpush1.bf16.msra.mxu0 %v2802
    %2957 = vmatprep.subr.bf16.mxu0 %v2833
    %2958 = vmatpush2.bf16.msra.mxu0 %v2832
    %2959 = vmatprep.subr.bf16.mxu0 %v2831
    %2960 = vmatpush2.bf16.msra.mxu0 %v2830
    %2961 = vmatprep.subr.bf16.mxu0 %v2829
    %2962 = vmatpush2.bf16.msra.mxu0 %v2828
    %2963 = vmatprep.subr.bf16.mxu0 %v2827
    %2964 = vmatpush2.bf16.msra.mxu0 %v2826
    %2965 = vmatprep.subr.bf16.mxu0 %v2825
    %2966 = vmatpush2.bf16.msra.mxu0 %v2824
    %2967 = vmatprep.subr.bf16.mxu0 %v2823
    %2968 = vmatpush2.bf16.msra.mxu0 %v2822
    %2969 = vmatprep.subr.bf16.mxu0 %v2821
    %2970 = vmatpush2.bf16.msra.mxu0 %v2820
    %2971 = vmatprep.subr.bf16.mxu0 %v2819
    %2972 = vmatpush2.bf16.msra.mxu0 %v2818
    %2973 = vmatprep.mubr.bf16.mxu0 %v2501
    %2974 = vmatmul.mubr.bf16.gmra.mxu0 %v2500
    %v2975 = vpop.f32.mrf.mxu0
    %v2976 = vadd.f32 %v2933, %v2975
    %v2977 = vpop.f32.mrf.mxu0
    %v2978 = vadd.f32 %v2935, %v2977
    %v2979 = vpop.f32.mrf.mxu0
    %v2980 = vadd.f32 %v2937, %v2979
    %v2981 = vpop.f32.mrf.mxu0
    %v2982 = vadd.f32 %v2939, %v2981
    %2983 = vdwg.mxu0
    %v2984 = vmax.f32 %v2976, 0.0
    %v2985 = vmax.f32 %v2978, 0.0
    %v2986 = vmax.f32 %v2980, 0.0
    %v2987 = vmax.f32 %v2982, 0.0
    %v2988 = vld [vmem:[%s2] sm:$0xff]
    %v2989 = vld [vmem:[%s2 + $0x8] sm:$0xff]
    %v2990 = vunpack.c.l.bf16 %v2988
    %v2991 = vunpack.c.h.bf16 %v2988
    %v2992 = vunpack.c.l.bf16 %v2989
    %v2993 = vunpack.c.h.bf16 %v2989
    %v2994 = vadd.f32 %v2984, %v2990
    %v2995 = vadd.f32 %v2985, %v2991
    %v2996 = vadd.f32 %v2986, %v2992
    %v2997 = vadd.f32 %v2987, %v2993
    %v2998 = vpack.c.bf16 %v2996, %v2994
    %v2999 = vpack.c.bf16 %v2997, %v2995
    %v3000 = vld [vmem:[#allocation8] sm:$0xff]
    %v3001 = vld [vmem:[#allocation8 + $0x8] sm:$0xff]
    %v3002 = vld [vmem:[#allocation8 + $0x10] sm:$0xff]
    %v3003 = vld [vmem:[#allocation8 + $0x18] sm:$0xff]
    %v3004 = vld [vmem:[#allocation8 + $0x20] sm:$0xff]
    %v3005 = vld [vmem:[#allocation8 + $0x28] sm:$0xff]
    %v3006 = vld [vmem:[#allocation8 + $0x30] sm:$0xff]
    %v3007 = vld [vmem:[#allocation8 + $0x38] sm:$0xff]
    %v3008 = vld [vmem:[#allocation8 + $0x40] sm:$0xff]
    %v3009 = vld [vmem:[#allocation8 + $0x48] sm:$0xff]
    %v3010 = vld [vmem:[#allocation8 + $0x50] sm:$0xff]
    %v3011 = vld [vmem:[#allocation8 + $0x58] sm:$0xff]
    %v3012 = vld [vmem:[#allocation8 + $0x60] sm:$0xff]
    %v3013 = vld [vmem:[#allocation8 + $0x68] sm:$0xff]
    %v3014 = vld [vmem:[#allocation8 + $0x70] sm:$0xff]
    %v3015 = vld [vmem:[#allocation8 + $0x78] sm:$0xff]
    %v3016 = vld [vmem:[#allocation8 + $0x80] sm:$0xff]
    %v3017 = vld [vmem:[#allocation8 + $0x88] sm:$0xff]
    %v3018 = vld [vmem:[#allocation8 + $0x90] sm:$0xff]
    %v3019 = vld [vmem:[#allocation8 + $0x98] sm:$0xff]
    %v3020 = vld [vmem:[#allocation8 + $0xa0] sm:$0xff]
    %v3021 = vld [vmem:[#allocation8 + $0xa8] sm:$0xff]
    %v3022 = vld [vmem:[#allocation8 + $0xb0] sm:$0xff]
    %v3023 = vld [vmem:[#allocation8 + $0xb8] sm:$0xff]
    %v3024 = vld [vmem:[#allocation8 + $0xc0] sm:$0xff]
    %v3025 = vld [vmem:[#allocation8 + $0xc8] sm:$0xff]
    %v3026 = vld [vmem:[#allocation8 + $0xd0] sm:$0xff]
    %v3027 = vld [vmem:[#allocation8 + $0xd8] sm:$0xff]
    %v3028 = vld [vmem:[#allocation8 + $0xe0] sm:$0xff]
    %v3029 = vld [vmem:[#allocation8 + $0xe8] sm:$0xff]
    %v3030 = vld [vmem:[#allocation8 + $0xf0] sm:$0xff]
    %v3031 = vld [vmem:[#allocation8 + $0xf8] sm:$0xff]
    %v3032 = vld [vmem:[%s8] sm:$0x3]
    %v3034 = vlaneseq
    %v3035 = vshrl.u32 %v3034, 7
    %v3036 = vsub.s32 0, %v3035
    %v3037 = vrot.slane %v3032, %v3036
    %v3038 = vlaneseq
    %v3039 = vshrl.u32 %v3038, 7
    %v3040 = vsub.s32 1, %v3039
    %v3041 = vrot.slane %v3032, %v3040
    %v3076 = vunpack.c.l.b16 %v3000
    %v3077 = vunpack.c.h.b16 %v3000
    %v3078 = vunpack.c.l.b16 %v3001
    %v3079 = vunpack.c.h.b16 %v3001
    %v3080 = vunpack.c.l.b16 %v3002
    %v3081 = vunpack.c.h.b16 %v3002
    %v3082 = vunpack.c.l.b16 %v3003
    %v3083 = vunpack.c.h.b16 %v3003
    %v3084 = vunpack.c.l.b16 %v3004
    %v3085 = vunpack.c.h.b16 %v3004
    %v3086 = vunpack.c.l.b16 %v3005
    %v3087 = vunpack.c.h.b16 %v3005
    %v3088 = vunpack.c.l.b16 %v3006
    %v3089 = vunpack.c.h.b16 %v3006
    %v3090 = vunpack.c.l.b16 %v3007
    %v3091 = vunpack.c.h.b16 %v3007
    %v3092 = vunpack.c.l.b16 %v3008
    %v3093 = vunpack.c.h.b16 %v3008
    %v3094 = vunpack.c.l.b16 %v3009
    %v3095 = vunpack.c.h.b16 %v3009
    %v3096 = vunpack.c.l.b16 %v3010
    %v3097 = vunpack.c.h.b16 %v3010
    %v3098 = vunpack.c.l.b16 %v3011
    %v3099 = vunpack.c.h.b16 %v3011
    %v3100 = vunpack.c.l.b16 %v3012
    %v3101 = vunpack.c.h.b16 %v3012
    %v3102 = vunpack.c.l.b16 %v3013
    %v3103 = vunpack.c.h.b16 %v3013
    %v3104 = vunpack.c.l.b16 %v3014
    %v3105 = vunpack.c.h.b16 %v3014
    %v3106 = vunpack.c.l.b16 %v3015
    %v3107 = vunpack.c.h.b16 %v3015
    %v3108 = vunpack.c.l.b16 %v3016
    %v3109 = vunpack.c.h.b16 %v3016
    %v3110 = vunpack.c.l.b16 %v3017
    %v3111 = vunpack.c.h.b16 %v3017
    %v3112 = vunpack.c.l.b16 %v3018
    %v3113 = vunpack.c.h.b16 %v3018
    %v3114 = vunpack.c.l.b16 %v3019
    %v3115 = vunpack.c.h.b16 %v3019
    %v3116 = vunpack.c.l.b16 %v3020
    %v3117 = vunpack.c.h.b16 %v3020
    %v3118 = vunpack.c.l.b16 %v3021
    %v3119 = vunpack.c.h.b16 %v3021
    %v3120 = vunpack.c.l.b16 %v3022
    %v3121 = vunpack.c.h.b16 %v3022
    %v3122 = vunpack.c.l.b16 %v3023
    %v3123 = vunpack.c.h.b16 %v3023
    %v3124 = vunpack.c.l.b16 %v3024
    %v3125 = vunpack.c.h.b16 %v3024
    %v3126 = vunpack.c.l.b16 %v3025
    %v3127 = vunpack.c.h.b16 %v3025
    %v3128 = vunpack.c.l.b16 %v3026
    %v3129 = vunpack.c.h.b16 %v3026
    %v3130 = vunpack.c.l.b16 %v3027
    %v3131 = vunpack.c.h.b16 %v3027
    %v3132 = vunpack.c.l.b16 %v3028
    %v3133 = vunpack.c.h.b16 %v3028
    %v3134 = vunpack.c.l.b16 %v3029
    %v3135 = vunpack.c.h.b16 %v3029
    %v3136 = vunpack.c.l.b16 %v3030
    %v3137 = vunpack.c.h.b16 %v3030
    %v3138 = vunpack.c.l.b16 %v3031
    %v3139 = vunpack.c.h.b16 %v3031
    %v3140 = vpack.c.b16 %v3078, %v3076
    %v3141 = vpack.c.b16 %v3079, %v3077
    %v3142 = vpack.c.b16 %v3082, %v3080
    %v3143 = vpack.c.b16 %v3083, %v3081
    %v3144 = vpack.c.b16 %v3086, %v3084
    %v3145 = vpack.c.b16 %v3087, %v3085
    %v3146 = vpack.c.b16 %v3090, %v3088
    %v3147 = vpack.c.b16 %v3091, %v3089
    %v3148 = vpack.c.b16 %v3094, %v3092
    %v3149 = vpack.c.b16 %v3095, %v3093
    %v3150 = vpack.c.b16 %v3098, %v3096
    %v3151 = vpack.c.b16 %v3099, %v3097
    %v3152 = vpack.c.b16 %v3102, %v3100
    %v3153 = vpack.c.b16 %v3103, %v3101
    %v3154 = vpack.c.b16 %v3106, %v3104
    %v3155 = vpack.c.b16 %v3107, %v3105
    %v3156 = vpack.c.b16 %v3110, %v3108
    %v3157 = vpack.c.b16 %v3111, %v3109
    %v3158 = vpack.c.b16 %v3114, %v3112
    %v3159 = vpack.c.b16 %v3115, %v3113
    %v3160 = vpack.c.b16 %v3118, %v3116
    %v3161 = vpack.c.b16 %v3119, %v3117
    %v3162 = vpack.c.b16 %v3122, %v3120
    %v3163 = vpack.c.b16 %v3123, %v3121
    %v3164 = vpack.c.b16 %v3126, %v3124
    %v3165 = vpack.c.b16 %v3127, %v3125
    %v3166 = vpack.c.b16 %v3130, %v3128
    %v3167 = vpack.c.b16 %v3131, %v3129
    %v3168 = vpack.c.b16 %v3134, %v3132
    %v3169 = vpack.c.b16 %v3135, %v3133
    %v3170 = vpack.c.b16 %v3138, %v3136
    %v3171 = vpack.c.b16 %v3139, %v3137
    %3204 = vmatprep.subr.bf16.mxu0 %v3155
    %3205 = vmatpush1.bf16.msra.mxu0 %v3154
    %3206 = vmatprep.subr.bf16.mxu0 %v3153
    %3207 = vmatpush1.bf16.msra.mxu0 %v3152
    %3208 = vmatprep.subr.bf16.mxu0 %v3151
    %3209 = vmatpush1.bf16.msra.mxu0 %v3150
    %3210 = vmatprep.subr.bf16.mxu0 %v3149
    %3211 = vmatpush1.bf16.msra.mxu0 %v3148
    %3212 = vmatprep.subr.bf16.mxu0 %v3147
    %3213 = vmatpush1.bf16.msra.mxu0 %v3146
    %3214 = vmatprep.subr.bf16.mxu0 %v3145
    %3215 = vmatpush1.bf16.msra.mxu0 %v3144
    %3216 = vmatprep.subr.bf16.mxu0 %v3143
    %3217 = vmatpush1.bf16.msra.mxu0 %v3142
    %3218 = vmatprep.subr.bf16.mxu0 %v3141
    %3219 = vmatpush1.bf16.msra.mxu0 %v3140
    %3220 = vmatprep.subr.bf16.mxu0 %v3171
    %3221 = vmatpush2.bf16.msra.mxu0 %v3170
    %3222 = vmatprep.subr.bf16.mxu0 %v3169
    %3223 = vmatpush2.bf16.msra.mxu0 %v3168
    %3224 = vmatprep.subr.bf16.mxu0 %v3167
    %3225 = vmatpush2.bf16.msra.mxu0 %v3166
    %3226 = vmatprep.subr.bf16.mxu0 %v3165
    %3227 = vmatpush2.bf16.msra.mxu0 %v3164
    %3228 = vmatprep.subr.bf16.mxu0 %v3163
    %3229 = vmatpush2.bf16.msra.mxu0 %v3162
    %3230 = vmatprep.subr.bf16.mxu0 %v3161
    %3231 = vmatpush2.bf16.msra.mxu0 %v3160
    %3232 = vmatprep.subr.bf16.mxu0 %v3159
    %3233 = vmatpush2.bf16.msra.mxu0 %v3158
    %3234 = vmatprep.subr.bf16.mxu0 %v3157
    %3235 = vmatpush2.bf16.msra.mxu0 %v3156
    %3236 = vmatprep.mubr.bf16.mxu0 %v2999
    %3237 = vmatmul.mubr.bf16.gmra.mxu0 %v2998
    %v3238 = vpop.f32.mrf.mxu0
    %v3239 = vadd.f32 %v3037, %v3238
    %v3240 = vpop.f32.mrf.mxu0
    %v3241 = vadd.f32 %v3041, %v3240
    %v3242 = vpop.f32.mrf.mxu0
    %v3243 = vadd.f32 %v3037, %v3242
    %v3244 = vpop.f32.mrf.mxu0
    %v3245 = vadd.f32 %v3041, %v3244
    %3246 = vdwg.mxu0
    %v3247 = vmax.f32 %v3239, 0.0
    %v3248 = vmax.f32 %v3241, 0.0
    %v3249 = vmax.f32 %v3243, 0.0
    %v3250 = vmax.f32 %v3245, 0.0
    %v3251 = vpack.c.bf16 %v3249, %v3247
    %v3252 = vpack.c.bf16 %v3250, %v3248
    %v3253 = vld [vmem:[#allocation9] sm:$0xff]
    %v3254 = vld [vmem:[#allocation9 + $0x8] sm:$0xff]
    %v3255 = vld [vmem:[#allocation9 + $0x10] sm:$0xff]
    %v3256 = vld [vmem:[#allocation9 + $0x18] sm:$0xff]
    %v3257 = vld [vmem:[#allocation9 + $0x20] sm:$0xff]
    %v3258 = vld [vmem:[#allocation9 + $0x28] sm:$0xff]
    %v3259 = vld [vmem:[#allocation9 + $0x30] sm:$0xff]
    %v3260 = vld [vmem:[#allocation9 + $0x38] sm:$0xff]
    %v3261 = vld [vmem:[#allocation9 + $0x40] sm:$0xff]
    %v3262 = vld [vmem:[#allocation9 + $0x48] sm:$0xff]
    %v3263 = vld [vmem:[#allocation9 + $0x50] sm:$0xff]
    %v3264 = vld [vmem:[#allocation9 + $0x58] sm:$0xff]
    %v3265 = vld [vmem:[#allocation9 + $0x60] sm:$0xff]
    %v3266 = vld [vmem:[#allocation9 + $0x68] sm:$0xff]
    %v3267 = vld [vmem:[#allocation9 + $0x70] sm:$0xff]
    %v3268 = vld [vmem:[#allocation9 + $0x78] sm:$0xff]
    %v3269 = vld [vmem:[#allocation9 + $0x80] sm:$0xff]
    %v3270 = vld [vmem:[#allocation9 + $0x88] sm:$0xff]
    %v3271 = vld [vmem:[#allocation9 + $0x90] sm:$0xff]
    %v3272 = vld [vmem:[#allocation9 + $0x98] sm:$0xff]
    %v3273 = vld [vmem:[#allocation9 + $0xa0] sm:$0xff]
    %v3274 = vld [vmem:[#allocation9 + $0xa8] sm:$0xff]
    %v3275 = vld [vmem:[#allocation9 + $0xb0] sm:$0xff]
    %v3276 = vld [vmem:[#allocation9 + $0xb8] sm:$0xff]
    %v3277 = vld [vmem:[#allocation9 + $0xc0] sm:$0xff]
    %v3278 = vld [vmem:[#allocation9 + $0xc8] sm:$0xff]
    %v3279 = vld [vmem:[#allocation9 + $0xd0] sm:$0xff]
    %v3280 = vld [vmem:[#allocation9 + $0xd8] sm:$0xff]
    %v3281 = vld [vmem:[#allocation9 + $0xe0] sm:$0xff]
    %v3282 = vld [vmem:[#allocation9 + $0xe8] sm:$0xff]
    %v3283 = vld [vmem:[#allocation9 + $0xf0] sm:$0xff]
    %v3284 = vld [vmem:[#allocation9 + $0xf8] sm:$0xff]
    %v3285 = vld [vmem:[%s10] sm:$0x3]
    %v3287 = vlaneseq
    %v3288 = vshrl.u32 %v3287, 7
    %v3289 = vsub.s32 0, %v3288
    %v3290 = vrot.slane %v3285, %v3289
    %v3291 = vlaneseq
    %v3292 = vshrl.u32 %v3291, 7
    %v3293 = vsub.s32 1, %v3292
    %v3294 = vrot.slane %v3285, %v3293
    %v3329 = vunpack.c.l.b16 %v3253
    %v3330 = vunpack.c.h.b16 %v3253
    %v3331 = vunpack.c.l.b16 %v3254
    %v3332 = vunpack.c.h.b16 %v3254
    %v3333 = vunpack.c.l.b16 %v3255
    %v3334 = vunpack.c.h.b16 %v3255
    %v3335 = vunpack.c.l.b16 %v3256
    %v3336 = vunpack.c.h.b16 %v3256
    %v3337 = vunpack.c.l.b16 %v3257
    %v3338 = vunpack.c.h.b16 %v3257
    %v3339 = vunpack.c.l.b16 %v3258
    %v3340 = vunpack.c.h.b16 %v3258
    %v3341 = vunpack.c.l.b16 %v3259
    %v3342 = vunpack.c.h.b16 %v3259
    %v3343 = vunpack.c.l.b16 %v3260
    %v3344 = vunpack.c.h.b16 %v3260
    %v3345 = vunpack.c.l.b16 %v3261
    %v3346 = vunpack.c.h.b16 %v3261
    %v3347 = vunpack.c.l.b16 %v3262
    %v3348 = vunpack.c.h.b16 %v3262
    %v3349 = vunpack.c.l.b16 %v3263
    %v3350 = vunpack.c.h.b16 %v3263
    %v3351 = vunpack.c.l.b16 %v3264
    %v3352 = vunpack.c.h.b16 %v3264
    %v3353 = vunpack.c.l.b16 %v3265
    %v3354 = vunpack.c.h.b16 %v3265
    %v3355 = vunpack.c.l.b16 %v3266
    %v3356 = vunpack.c.h.b16 %v3266
    %v3357 = vunpack.c.l.b16 %v3267
    %v3358 = vunpack.c.h.b16 %v3267
    %v3359 = vunpack.c.l.b16 %v3268
    %v3360 = vunpack.c.h.b16 %v3268
    %v3361 = vunpack.c.l.b16 %v3269
    %v3362 = vunpack.c.h.b16 %v3269
    %v3363 = vunpack.c.l.b16 %v3270
    %v3364 = vunpack.c.h.b16 %v3270
    %v3365 = vunpack.c.l.b16 %v3271
    %v3366 = vunpack.c.h.b16 %v3271
    %v3367 = vunpack.c.l.b16 %v3272
    %v3368 = vunpack.c.h.b16 %v3272
    %v3369 = vunpack.c.l.b16 %v3273
    %v3370 = vunpack.c.h.b16 %v3273
    %v3371 = vunpack.c.l.b16 %v3274
    %v3372 = vunpack.c.h.b16 %v3274
    %v3373 = vunpack.c.l.b16 %v3275
    %v3374 = vunpack.c.h.b16 %v3275
    %v3375 = vunpack.c.l.b16 %v3276
    %v3376 = vunpack.c.h.b16 %v3276
    %v3377 = vunpack.c.l.b16 %v3277
    %v3378 = vunpack.c.h.b16 %v3277
    %v3379 = vunpack.c.l.b16 %v3278
    %v3380 = vunpack.c.h.b16 %v3278
    %v3381 = vunpack.c.l.b16 %v3279
    %v3382 = vunpack.c.h.b16 %v3279
    %v3383 = vunpack.c.l.b16 %v3280
    %v3384 = vunpack.c.h.b16 %v3280
    %v3385 = vunpack.c.l.b16 %v3281
    %v3386 = vunpack.c.h.b16 %v3281
    %v3387 = vunpack.c.l.b16 %v3282
    %v3388 = vunpack.c.h.b16 %v3282
    %v3389 = vunpack.c.l.b16 %v3283
    %v3390 = vunpack.c.h.b16 %v3283
    %v3391 = vunpack.c.l.b16 %v3284
    %v3392 = vunpack.c.h.b16 %v3284
    %v3393 = vpack.c.b16 %v3331, %v3329
    %v3394 = vpack.c.b16 %v3332, %v3330
    %v3395 = vpack.c.b16 %v3335, %v3333
    %v3396 = vpack.c.b16 %v3336, %v3334
    %v3397 = vpack.c.b16 %v3339, %v3337
    %v3398 = vpack.c.b16 %v3340, %v3338
    %v3399 = vpack.c.b16 %v3343, %v3341
    %v3400 = vpack.c.b16 %v3344, %v3342
    %v3401 = vpack.c.b16 %v3347, %v3345
    %v3402 = vpack.c.b16 %v3348, %v3346
    %v3403 = vpack.c.b16 %v3351, %v3349
    %v3404 = vpack.c.b16 %v3352, %v3350
    %v3405 = vpack.c.b16 %v3355, %v3353
    %v3406 = vpack.c.b16 %v3356, %v3354
    %v3407 = vpack.c.b16 %v3359, %v3357
    %v3408 = vpack.c.b16 %v3360, %v3358
    %v3409 = vpack.c.b16 %v3363, %v3361
    %v3410 = vpack.c.b16 %v3364, %v3362
    %v3411 = vpack.c.b16 %v3367, %v3365
    %v3412 = vpack.c.b16 %v3368, %v3366
    %v3413 = vpack.c.b16 %v3371, %v3369
    %v3414 = vpack.c.b16 %v3372, %v3370
    %v3415 = vpack.c.b16 %v3375, %v3373
    %v3416 = vpack.c.b16 %v3376, %v3374
    %v3417 = vpack.c.b16 %v3379, %v3377
    %v3418 = vpack.c.b16 %v3380, %v3378
    %v3419 = vpack.c.b16 %v3383, %v3381
    %v3420 = vpack.c.b16 %v3384, %v3382
    %v3421 = vpack.c.b16 %v3387, %v3385
    %v3422 = vpack.c.b16 %v3388, %v3386
    %v3423 = vpack.c.b16 %v3391, %v3389
    %v3424 = vpack.c.b16 %v3392, %v3390
    %3457 = vmatprep.subr.bf16.mxu0 %v3408
    %3458 = vmatpush1.bf16.msra.mxu0 %v3407
    %3459 = vmatprep.subr.bf16.mxu0 %v3406
    %3460 = vmatpush1.bf16.msra.mxu0 %v3405
    %3461 = vmatprep.subr.bf16.mxu0 %v3404
    %3462 = vmatpush1.bf16.msra.mxu0 %v3403
    %3463 = vmatprep.subr.bf16.mxu0 %v3402
    %3464 = vmatpush1.bf16.msra.mxu0 %v3401
    %3465 = vmatprep.subr.bf16.mxu0 %v3400
    %3466 = vmatpush1.bf16.msra.mxu0 %v3399
    %3467 = vmatprep.subr.bf16.mxu0 %v3398
    %3468 = vmatpush1.bf16.msra.mxu0 %v3397
    %3469 = vmatprep.subr.bf16.mxu0 %v3396
    %3470 = vmatpush1.bf16.msra.mxu0 %v3395
    %3471 = vmatprep.subr.bf16.mxu0 %v3394
    %3472 = vmatpush1.bf16.msra.mxu0 %v3393
    %3473 = vmatprep.subr.bf16.mxu0 %v3424
    %3474 = vmatpush2.bf16.msra.mxu0 %v3423
    %3475 = vmatprep.subr.bf16.mxu0 %v3422
    %3476 = vmatpush2.bf16.msra.mxu0 %v3421
    %3477 = vmatprep.subr.bf16.mxu0 %v3420
    %3478 = vmatpush2.bf16.msra.mxu0 %v3419
    %3479 = vmatprep.subr.bf16.mxu0 %v3418
    %3480 = vmatpush2.bf16.msra.mxu0 %v3417
    %3481 = vmatprep.subr.bf16.mxu0 %v3416
    %3482 = vmatpush2.bf16.msra.mxu0 %v3415
    %3483 = vmatprep.subr.bf16.mxu0 %v3414
    %3484 = vmatpush2.bf16.msra.mxu0 %v3413
    %3485 = vmatprep.subr.bf16.mxu0 %v3412
    %3486 = vmatpush2.bf16.msra.mxu0 %v3411
    %3487 = vmatprep.subr.bf16.mxu0 %v3410
    %3488 = vmatpush2.bf16.msra.mxu0 %v3409
    %3489 = vmatprep.mubr.bf16.mxu0 %v3252
    %3490 = vmatmul.mubr.bf16.gmra.mxu0 %v3251
    %v3491 = vpop.f32.mrf.mxu0
    %v3492 = vadd.f32 %v3290, %v3491
    %v3493 = vpop.f32.mrf.mxu0
    %v3494 = vadd.f32 %v3294, %v3493
    %v3495 = vpop.f32.mrf.mxu0
    %v3496 = vadd.f32 %v3290, %v3495
    %v3497 = vpop.f32.mrf.mxu0
    %v3498 = vadd.f32 %v3294, %v3497
    %3499 = vdwg.mxu0
    %v3500 = vmax.f32 %v3492, 0.0
    %v3501 = vmax.f32 %v3494, 0.0
    %v3502 = vmax.f32 %v3496, 0.0
    %v3503 = vmax.f32 %v3498, 0.0
    %v3504 = vpack.c.bf16 %v3502, %v3500
    %v3505 = vpack.c.bf16 %v3503, %v3501
    %v3506 = vld [vmem:[#allocation11] sm:$0xf]
    %v3507 = vld [vmem:[#allocation11 + $0x4] sm:$0xf]
    %v3508 = vld [vmem:[#allocation11 + $0x8] sm:$0xf]
    %v3509 = vld [vmem:[#allocation11 + $0xc] sm:$0xf]
    %v3510 = vld [vmem:[#allocation11 + $0x10] sm:$0xf]
    %v3511 = vld [vmem:[#allocation11 + $0x14] sm:$0xf]
    %v3512 = vld [vmem:[#allocation11 + $0x18] sm:$0xf]
    %v3513 = vld [vmem:[#allocation11 + $0x1c] sm:$0xf]
    %v3514 = vld [vmem:[#allocation11 + $0x20] sm:$0xf]
    %v3515 = vld [vmem:[#allocation11 + $0x24] sm:$0xf]
    %v3516 = vld [vmem:[#allocation11 + $0x28] sm:$0xf]
    %v3517 = vld [vmem:[#allocation11 + $0x2c] sm:$0xf]
    %v3518 = vld [vmem:[#allocation11 + $0x30] sm:$0xf]
    %v3519 = vld [vmem:[#allocation11 + $0x34] sm:$0xf]
    %v3520 = vld [vmem:[#allocation11 + $0x38] sm:$0xf]
    %v3521 = vld [vmem:[#allocation11 + $0x3c] sm:$0xf]
    %v3522 = vld [vmem:[#allocation11 + $0x40] sm:$0xf]
    %v3523 = vld [vmem:[#allocation11 + $0x44] sm:$0xf]
    %v3524 = vld [vmem:[#allocation11 + $0x48] sm:$0xf]
    %v3525 = vld [vmem:[#allocation11 + $0x4c] sm:$0xf]
    %v3526 = vld [vmem:[#allocation11 + $0x50] sm:$0xf]
    %v3527 = vld [vmem:[#allocation11 + $0x54] sm:$0xf]
    %v3528 = vld [vmem:[#allocation11 + $0x58] sm:$0xf]
    %v3529 = vld [vmem:[#allocation11 + $0x5c] sm:$0xf]
    %v3530 = vld [vmem:[#allocation11 + $0x60] sm:$0xf]
    %v3531 = vld [vmem:[#allocation11 + $0x64] sm:$0xf]
    %v3532 = vld [vmem:[#allocation11 + $0x68] sm:$0xf]
    %v3533 = vld [vmem:[#allocation11 + $0x6c] sm:$0xf]
    %v3534 = vld [vmem:[#allocation11 + $0x70] sm:$0xf]
    %v3535 = vld [vmem:[#allocation11 + $0x74] sm:$0xf]
    %v3536 = vld [vmem:[#allocation11 + $0x78] sm:$0xf]
    %v3537 = vld [vmem:[#allocation11 + $0x7c] sm:$0xf]
    %v3538 = vld [vmem:[%s12] sm:$0x1]
    %v3540 = vlaneseq
    %v3541 = vshrl.u32 %v3540, 7
    %v3542 = vsub.s32 0, %v3541
    %v3543 = vrot.slane %v3538, %v3542
    %v3577 = vunpack.c.l.b16 %v3506
    %v3578 = vunpack.c.l.b16 %v3507
    %v3579 = vunpack.c.l.b16 %v3508
    %v3580 = vunpack.c.l.b16 %v3509
    %v3581 = vunpack.c.l.b16 %v3510
    %v3582 = vunpack.c.l.b16 %v3511
    %v3583 = vunpack.c.l.b16 %v3512
    %v3584 = vunpack.c.l.b16 %v3513
    %v3585 = vunpack.c.l.b16 %v3514
    %v3586 = vunpack.c.l.b16 %v3515
    %v3587 = vunpack.c.l.b16 %v3516
    %v3588 = vunpack.c.l.b16 %v3517
    %v3589 = vunpack.c.l.b16 %v3518
    %v3590 = vunpack.c.l.b16 %v3519
    %v3591 = vunpack.c.l.b16 %v3520
    %v3592 = vunpack.c.l.b16 %v3521
    %v3593 = vunpack.c.l.b16 %v3522
    %v3594 = vunpack.c.l.b16 %v3523
    %v3595 = vunpack.c.l.b16 %v3524
    %v3596 = vunpack.c.l.b16 %v3525
    %v3597 = vunpack.c.l.b16 %v3526
    %v3598 = vunpack.c.l.b16 %v3527
    %v3599 = vunpack.c.l.b16 %v3528
    %v3600 = vunpack.c.l.b16 %v3529
    %v3601 = vunpack.c.l.b16 %v3530
    %v3602 = vunpack.c.l.b16 %v3531
    %v3603 = vunpack.c.l.b16 %v3532
    %v3604 = vunpack.c.l.b16 %v3533
    %v3605 = vunpack.c.l.b16 %v3534
    %v3606 = vunpack.c.l.b16 %v3535
    %v3607 = vunpack.c.l.b16 %v3536
    %v3608 = vunpack.c.l.b16 %v3537
    %v3609 = vpack.c.b16 %v3578, %v3577
    %v3610 = vpack.c.b16 %v3580, %v3579
    %v3611 = vpack.c.b16 %v3582, %v3581
    %v3612 = vpack.c.b16 %v3584, %v3583
    %v3613 = vpack.c.b16 %v3586, %v3585
    %v3614 = vpack.c.b16 %v3588, %v3587
    %v3615 = vpack.c.b16 %v3590, %v3589
    %v3616 = vpack.c.b16 %v3592, %v3591
    %v3617 = vpack.c.b16 %v3594, %v3593
    %v3618 = vpack.c.b16 %v3596, %v3595
    %v3619 = vpack.c.b16 %v3598, %v3597
    %v3620 = vpack.c.b16 %v3600, %v3599
    %v3621 = vpack.c.b16 %v3602, %v3601
    %v3622 = vpack.c.b16 %v3604, %v3603
    %v3623 = vpack.c.b16 %v3606, %v3605
    %v3624 = vpack.c.b16 %v3608, %v3607
    %3641 = vmatprep.subr.bf16.mxu0 0
    %3642 = vmatpush1.bf16.msra.mxu0 %v3616
    %3643 = vmatprep.subr.bf16.mxu0 0
    %3644 = vmatpush1.bf16.msra.mxu0 %v3615
    %3645 = vmatprep.subr.bf16.mxu0 0
    %3646 = vmatpush1.bf16.msra.mxu0 %v3614
    %3647 = vmatprep.subr.bf16.mxu0 0
    %3648 = vmatpush1.bf16.msra.mxu0 %v3613
    %3649 = vmatprep.subr.bf16.mxu0 0
    %3650 = vmatpush1.bf16.msra.mxu0 %v3612
    %3651 = vmatprep.subr.bf16.mxu0 0
    %3652 = vmatpush1.bf16.msra.mxu0 %v3611
    %3653 = vmatprep.subr.bf16.mxu0 0
    %3654 = vmatpush1.bf16.msra.mxu0 %v3610
    %3655 = vmatprep.subr.bf16.mxu0 0
    %3656 = vmatpush1.bf16.msra.mxu0 %v3609
    %3657 = vmatprep.subr.bf16.mxu0 0
    %3658 = vmatpush2.bf16.msra.mxu0 %v3624
    %3659 = vmatprep.subr.bf16.mxu0 0
    %3660 = vmatpush2.bf16.msra.mxu0 %v3623
    %3661 = vmatprep.subr.bf16.mxu0 0
    %3662 = vmatpush2.bf16.msra.mxu0 %v3622
    %3663 = vmatprep.subr.bf16.mxu0 0
    %3664 = vmatpush2.bf16.msra.mxu0 %v3621
    %3665 = vmatprep.subr.bf16.mxu0 0
    %3666 = vmatpush2.bf16.msra.mxu0 %v3620
    %3667 = vmatprep.subr.bf16.mxu0 0
    %3668 = vmatpush2.bf16.msra.mxu0 %v3619
    %3669 = vmatprep.subr.bf16.mxu0 0
    %3670 = vmatpush2.bf16.msra.mxu0 %v3618
    %3671 = vmatprep.subr.bf16.mxu0 0
    %3672 = vmatpush2.bf16.msra.mxu0 %v3617
    %3673 = vmatprep.mubr.bf16.mxu0 %v3505
    %3674 = vmatmul.mubr.bf16.gmra.mxu0 %v3504
    %v3675 = vpop.f32.mrf.mxu0
    %v3676 = vadd.f32 %v3543, %v3675
    %v3677 = vpop.f32.mrf.mxu0
    %v3678 = vpop.f32.mrf.mxu0
    %v3679 = vadd.f32 %v3543, %v3678
    %v3680 = vpop.f32.mrf.mxu0
    %3681 = vdwg.mxu0
    %v3682 = vmax.f32 %v3676, 0.0
    %v3683 = vmax.f32 %v3679, 0.0
    %v3684 = vld [vmem:[%s13] sm:$0x1]
    %v3686 = vlaneseq
    %v3687 = vshrl.u32 %v3686, 7
    %v3688 = vsub.s32 0, %v3687
    %v3689 = vrot.slane %v3684, %v3688
    %v3691 = vmul.f32 %v3682, %v3689
    %v3692 = vmul.f32 %v3683, %v3689
    %3693 = vadd.xlane.f32.xlu0 %v3691
    %v3694 = vpop.xlane.xlu0 %3693
    %3695 = vadd.xlane.f32.xlu0 %v3692
    %v3696 = vpop.xlane.xlu0 %3695
    %s3697 = sld [smem:[#allocation3 + $0x1e]]
    %v3698 = vstv %s3697
    %v3699 = vadd.f32 %v3694, %v3698
    %v3700 = vadd.f32 %v3696, %v3698
    %vm3701 = vcmask 7168
    %3702 = vst.msk [vmem:[%s14] sm:$0xff] %vm3701, %v3699
    %3703 = vst.msk [vmem:[%s14 + $0x8] sm:$0xff] %vm3701, %v3700
    // Predicated region
    $region74: #{critic_forward.1} parent=1 // pred_check
      _
    $region75: #{critic_forward.1} parent=1 // pred_check_branch
      %3705 = sbr.rel (0) target = $region77
    $region76: #{critic_forward.1} parent=1 // pred_region
      _
    $region77: #{critic_forward.1} parent=1 // pred_fallthru
      _
    // Predicated region
    $region78: #{critic_forward.1} parent=1 // pred_check
      _
    $region79: #{critic_forward.1} parent=1 // pred_check_branch
      %3707 = sbr.rel (0) target = $region81
    $region80: #{critic_forward.1} parent=1 // pred_region
      _
    $region81: #{critic_forward.1} parent=1 // pred_fallthru
      _
    %3708 = vsyncpa [#allocation5], 1
    %3709 = vsyncpa [#allocation7], 1
    %3710 = vsyncpa [#allocation10], 1

</llo_original>
